<compile_context>
chip_gen: v7x
topology: tpu7x:2x2x1
jax: 0.10.0
libtpu: 0.0.40
codegen_flags: <defaults>
</compile_context>

<pallas_src>
import functools

import jax
import jax.numpy as jnp
from jax.experimental import pallas as pl
from jax.experimental.pallas import tpu as pltpu

_LANE = 128


def _round_up(v, m):
    return -(-v // m) * m


def _vmem_capacity_bytes():
    """Per-core VMEM capacity; conservative fallback = v7x's 64 MiB per TC."""
    try:
        info = pltpu.get_tpu_info()
        for name in ("vmem_capacity_bytes", "vmem_size_bytes", "vmem_bytes"):
            v = getattr(info, name, None)
            if v:
                return int(v)
    except Exception:
        pass
    return 64 * 1024 * 1024


def _pick_row_tile(H, W, Cp, budget_bytes):
    """Largest divisor of H whose per-tile working set fits the VMEM budget."""
    for Ht in range(H, 0, -1):
        if H % Ht:
            continue
        blk = Ht * W * Cp
        need = (2 * blk * (2 + 4 + 4)             # bf16 in + f32 residual + f32 out, 2x buffered
                + (Ht + 2) * (W + 2) * Cp * 2     # bf16 padded-activation scratch
                + blk * 4                         # f32 accumulator scratch
                + blk * 3 * 2                     # bf16 im2col temporary
                + 2 * 2 * 9 * Cp * Cp             # folded bf16 weights (2x buffered)
                + 4 * W * Cp * 4)                 # halo rows
        if need <= budget_bytes:
            return Ht
    return 1


# --------------------------------------------------------------------------- #
# Kernels
# --------------------------------------------------------------------------- #
def _bn_relu_conv_tile(scale_ref, shift_ref, wf_ref,
                       xm_ref, xt_ref, xb_ref, pad_ref, acc_ref,
                       *, Ht, W, C):
    """Fused BN(affine, precomputed scale/shift) + ReLU + 3x3 conv (pad=1) on
    one (Ht, W, C) row block.  Halo rows arrive via xt_ref/xb_ref; halos that
    fall outside the image are zeroed (== Conv2d zero padding, which in
    ResBlock2d is applied *after* BN+ReLU).  Result (f32, no bias) -> acc_ref."""
    r = pl.program_id(1)
    last = pl.num_programs(1) - 1
    scale = scale_ref[...]                        # (1, C) f32
    shift = shift_ref[...]                        # (1, C) f32

    def bn_relu(v):                               # elementwise, promotes to f32
        return jnp.maximum(v * scale + shift, 0.0)

    a_main = bn_relu(xm_ref[0]).astype(jnp.bfloat16)                            # (Ht, W, C)
    a_top = jnp.where(r > 0, bn_relu(xt_ref[0, 0]), 0.0).astype(jnp.bfloat16)   # (W, C)
    a_bot = jnp.where(r < last, bn_relu(xb_ref[0, 0]), 0.0).astype(jnp.bfloat16)

    # Only the two border columns need zeroing each tile; the halo rows and the
    # interior are fully overwritten below (no full-buffer zero per tile).
    zcol = jnp.zeros((Ht + 2, 1, C), jnp.bfloat16)
    pad_ref[:, 0:1, :] = zcol
    pad_ref[:, W + 1:W + 2, :] = zcol
    pad_ref[1:Ht + 1, 1:W + 1, :] = a_main
    pad_ref[0, 1:W + 1, :] = a_top
    pad_ref[Ht + 1, 1:W + 1, :] = a_bot

    # 3x3 conv as 3 MXU matmuls: dx taps folded into the contraction (K = 3*C),
    # bf16 operands, f32 accumulation.  Conv bias is added in the caller's
    # epilogue (saves an accumulator init round-trip).
    # TODO(synk): per-tap matmuls via pltpu.roll if bundle dumps show the
    #             im2col temporaries saturating the vst/XLU slots before the MXU.
    for dy in range(3):                           # static unroll
        rows = pad_ref[dy:dy + Ht, :, :]          # (Ht, W+2, C) bf16
        patches = jnp.concatenate(
            [rows[:, 0:W, :], rows[:, 1:W + 1, :], rows[:, 2:W + 2, :]],
            axis=-1).reshape(Ht * W, 3 * C)       # (Ht*W, 3C)
        contrib = jnp.dot(patches, wf_ref[dy], preferred_element_type=jnp.float32)
        if dy == 0:
            acc_ref[...] = contrib
        else:
            acc_ref[...] += contrib


def _bn_relu_conv_stats_kernel(scale_ref, shift_ref, wf_ref, b_ref,
                               xm_ref, xt_ref, xb_ref,
                               y_ref, stats_ref, pad_ref, acc_ref,
                               *, Ht, W, C):
    """Pass A: BN1+ReLU+conv1 on one tile.  Emits y1 in bf16 plus per-block
    channel sum / sumsq of the f32 conv output (used for BN2 batch stats)."""
    _bn_relu_conv_tile(scale_ref, shift_ref, wf_ref,
                       xm_ref, xt_ref, xb_ref, pad_ref, acc_ref,
                       Ht=Ht, W=W, C=C)
    y = acc_ref[...] + b_ref[...]                 # (Ht*W, C) f32, bias folded here
    stats_ref[...] = jnp.stack(
        [jnp.sum(y, axis=0), jnp.sum(y * y, axis=0)]).reshape(1, 1, 2, C)
    y_ref[...] = y.astype(jnp.bfloat16).reshape(1, Ht, W, C)


def _bn_relu_conv_residual_kernel(scale_ref, shift_ref, wf_ref, b_ref,
                                  ym_ref, yt_ref, yb_ref, res_ref,
                                  out_ref, pad_ref, acc_ref,
                                  *, Ht, W, C):
    """Pass B: BN2+ReLU+conv2 on one tile + residual add (f32 output)."""
    _bn_relu_conv_tile(scale_ref, shift_ref, wf_ref,
                       ym_ref, yt_ref, yb_ref, pad_ref, acc_ref,
                       Ht=Ht, W=W, C=C)
    y = acc_ref[...] + b_ref[...]
    out_ref[...] = y.reshape(1, Ht, W, C) + res_ref[...]


# --------------------------------------------------------------------------- #
# pallas_call wrappers
# --------------------------------------------------------------------------- #
def _compiler_params(vmem_limit):
    return pltpu.CompilerParams(
        dimension_semantics=("parallel", "parallel"),
        vmem_limit_bytes=int(vmem_limit))


def _halo_in_specs(H, W, Cp, Ht):
    """BlockSpecs for (main rows, top halo row, bottom halo row) of one array."""
    return [
        pl.BlockSpec((1, Ht, W, Cp), lambda n, r: (n, r, 0, 0)),
        pl.BlockSpec((1, 1, W, Cp),
                     lambda n, r: (n, jnp.maximum(r * Ht - 1, 0), 0, 0)),
        pl.BlockSpec((1, 1, W, Cp),
                     lambda n, r: (n, jnp.minimum((r + 1) * Ht, H - 1), 0, 0)),
    ]


def _param_in_specs(Cp):
    return [
        pl.BlockSpec((1, Cp), lambda n, r: (0, 0)),              # scale
        pl.BlockSpec((1, Cp), lambda n, r: (0, 0)),              # shift
        pl.BlockSpec((3, 3 * Cp, Cp), lambda n, r: (0, 0, 0)),   # folded weights
        pl.BlockSpec((1, Cp), lambda n, r: (0, 0)),              # bias
    ]


def _scratch(Ht, W, Cp):
    return [pltpu.VMEM((Ht + 2, W + 2, Cp), jnp.bfloat16),       # padded activations
            pltpu.VMEM((Ht * W, Cp), jnp.float32)]               # f32 accumulator


def _bn_relu_conv_stats_call(x, scale, shift, wf, bias, Ht, vmem_limit):
    N, H, W, Cp = x.shape
    R = H // Ht
    kern = functools.partial(_bn_relu_conv_stats_kernel, Ht=Ht, W=W, C=Cp)
    grid_spec = pltpu.PrefetchScalarGridSpec(
        num_scalar_prefetch=0, grid=(N, R),
        in_specs=_param_in_specs(Cp) + _halo_in_specs(H, W, Cp, Ht),
        out_specs=[pl.BlockSpec((1, Ht, W, Cp), lambda n, r: (n, r, 0, 0)),
                   pl.BlockSpec((1, 1, 2, Cp), lambda n, r: (n, r, 0, 0))],
        scratch_shapes=_scratch(Ht, W, Cp))
    return pl.pallas_call(
        kern, grid_spec=grid_spec,
        out_shape=(jax.ShapeDtypeStruct((N, H, W, Cp), jnp.bfloat16),   # y1 in bf16
                   jax.ShapeDtypeStruct((N, R, 2, Cp), jnp.float32)),
        compiler_params=_compiler_params(vmem_limit))(scale, shift, wf, bias, x, x, x)


def _bn_relu_conv_residual_call(y, xres, scale, shift, wf, bias, Ht, vmem_limit):
    N, H, W, Cp = y.shape
    R = H // Ht
    kern = functools.partial(_bn_relu_conv_residual_kernel, Ht=Ht, W=W, C=Cp)
    grid_spec = pltpu.PrefetchScalarGridSpec(
        num_scalar_prefetch=0, grid=(N, R),
        in_specs=(_param_in_specs(Cp) + _halo_in_specs(H, W, Cp, Ht)
                  + [pl.BlockSpec((1, Ht, W, Cp), lambda n, r: (n, r, 0, 0))]),
        out_specs=pl.BlockSpec((1, Ht, W, Cp), lambda n, r: (n, r, 0, 0)),
        scratch_shapes=_scratch(Ht, W, Cp))
    return pl.pallas_call(
        kern, grid_spec=grid_spec,
        out_shape=jax.ShapeDtypeStruct((N, H, W, Cp), jnp.float32),
        compiler_params=_compiler_params(vmem_limit))(scale, shift, wf, bias, y, y, y, xres)


# --------------------------------------------------------------------------- #
# Public forward + parameter helpers
# --------------------------------------------------------------------------- #
def _pad_vec(v, Cp):
    v = v.astype(jnp.float32)
    return jnp.pad(v, (0, Cp - v.shape[0])) if v.shape[0] != Cp else v


def _fold_weights(w, Cp):
    """HWIO (3,3,Cin,Cout) -> (3, 3*Cp, Cp) bf16 with the dx taps stacked along
    the contraction axis (matches the in-kernel im2col concat order)."""
    kh, kw, cin, cout = w.shape
    wp = jnp.zeros((kh, kw, Cp, Cp), jnp.float32).at[:, :, :cin, :cout].set(w)
    wf = jnp.concatenate([wp[:, 0], wp[:, 1], wp[:, 2]], axis=1)
    return wf.astype(jnp.bfloat16)


def res_block2d_forward(x_nchw, params, *, eps=1e-5, row_tile=None):
    """ResBlock2d forward (train-mode batch-stat BN).  NCHW in / NCHW out.

    params = (w1, b1, gamma1, beta1, w2, b2, gamma2, beta2), conv weights HWIO.
    """
    # TODO(synk): general kernel_size/padding and non-multiple-of-8 W (would need
    #             masked BN2 stats); this implements the (3,3)/(1,1) spatially-
    #             preserving configuration ResBlock2d is used with in EAMM.
    # TODO(synk): BatchNorm running_mean/running_var buffer updates (a training
    #             side effect of the PyTorch module) are not reproduced.
    w1, b1, g1, be1, w2, b2, g2, be2 = params
    N, C, H, W = x_nchw.shape
    Cp = _round_up(C, _LANE)
    assert W % 8 == 0, "W must be a multiple of 8 (sublane-aligned output stores)"

    x_nchw = x_nchw.astype(jnp.float32)
    cnt = N * H * W

    # ---- BN1 statistics from the original NCHW tensor (plain XLA reduction:
    #      avoids an extra Pallas pass over the lane-padded activation) ----
    mean1 = jnp.mean(x_nchw, axis=(0, 2, 3))
    var1 = jnp.maximum(jnp.mean(x_nchw * x_nchw, axis=(0, 2, 3)) - mean1 * mean1, 0.0)
    inv1 = jax.lax.rsqrt(var1 + eps)
    scale1 = _pad_vec(g1.astype(jnp.float32) * inv1, Cp).reshape(1, Cp)
    shift1 = _pad_vec(be1.astype(jnp.float32) - mean1 * g1 * inv1, Cp).reshape(1, Cp)

    x = jnp.transpose(x_nchw, (0, 2, 3, 1))                           # -> NHWC
    if Cp != C:                                                       # lane-dense channels
        x = jnp.pad(x, ((0, 0), (0, 0), (0, 0), (0, Cp - C)))

    # Per-generation VMEM accounting (v5e/v6e: 128 MiB; v7x: 64 MiB per TC).
    vmem = _vmem_capacity_bytes()
    vmem_limit = (vmem * 3) // 4
    Ht = row_tile if row_tile is not None else _pick_row_tile(H, W, Cp, vmem // 2)
    assert H % Ht == 0, f"row tile {Ht} must divide H={H}"

    wf1, wf2 = _fold_weights(w1, Cp), _fold_weights(w2, Cp)
    b1p = _pad_vec(b1, Cp).reshape(1, Cp)
    b2p = _pad_vec(b2, Cp).reshape(1, Cp)
    g2p, be2p = _pad_vec(g2, Cp), _pad_vec(be2, Cp)

    # ---- Pass A: BN1 + ReLU + conv1 (+ per-block channel sums for BN2) ----
    y1, st2 = _bn_relu_conv_stats_call(x, scale1, shift1, wf1, b1p, Ht, vmem_limit)
    s2 = jnp.sum(st2, axis=(0, 1))                                    # (2, Cp)
    mean2 = s2[0] / cnt
    var2 = jnp.maximum(s2[1] / cnt - mean2 * mean2, 0.0)
    inv2 = jax.lax.rsqrt(var2 + eps)
    scale2 = (g2p * inv2).reshape(1, Cp)
    shift2 = (be2p - mean2 * g2p * inv2).reshape(1, Cp)

    # ---- Pass B: BN2 + ReLU + conv2 + residual ----
    out = _bn_relu_conv_residual_call(y1, x, scale2, shift2, wf2, b2p, Ht, vmem_limit)

    out = out[..., :C]                                                # strip lane pad
    return jnp.transpose(out, (0, 3, 1, 2))                           # -> NCHW


def init_res_block_params(key, in_features):
    """Deterministic synthetic parameters matching the PyTorch module's shapes."""
    C = in_features
    ks = jax.random.split(key, 8)
    fan_in = C * 9

    def conv_w(k):
        return jax.random.normal(k, (3, 3, C, C), jnp.float32) * (1.0 / fan_in) ** 0.5

    w1 = conv_w(ks[0]); b1 = 0.01 * jax.random.normal(ks[1], (C,), jnp.float32)
    g1 = 1.0 + 0.1 * jax.random.normal(ks[2], (C,), jnp.float32)
    be1 = 0.1 * jax.random.normal(ks[3], (C,), jnp.float32)
    w2 = conv_w(ks[4]); b2 = 0.01 * jax.random.normal(ks[5], (C,), jnp.float32)
    g2 = 1.0 + 0.1 * jax.random.normal(ks[6], (C,), jnp.float32)
    be2 = 0.1 * jax.random.normal(ks[7], (C,), jnp.float32)
    return (w1, b1, g1, be1, w2, b2, g2, be2)


def res_block2d_reference(x_nchw, params, eps=1e-5):
    """Pure-JAX reference (f32) mirroring the PyTorch forward."""
    w1, b1, g1, be1, w2, b2, g2, be2 = params

    def bn(v, g, be):
        mean = jnp.mean(v, axis=(0, 2, 3), keepdims=True)
        var = jnp.mean((v - mean) ** 2, axis=(0, 2, 3), keepdims=True)
        return ((v - mean) * jax.lax.rsqrt(var + eps)
                * g[None, :, None, None] + be[None, :, None, None])

    def conv(v, w, b):
        out = jax.lax.conv_general_dilated(
            v, w, window_strides=(1, 1), padding=((1, 1), (1, 1)),
            dimension_numbers=("NCHW", "HWIO", "NCHW"))
        return out + b[None, :, None, None]

    h = jnp.maximum(bn(x_nchw, g1, be1), 0.0)
    h = conv(h, w1, b1)
    h = jnp.maximum(bn(h, g2, be2), 0.0)
    h = conv(h, w2, b2)
    return h + x_nchw


if __name__ == "__main__":
    key = jax.random.PRNGKey(0)
    kx, kp = jax.random.split(key)

    # Small config consistent with the module: ResBlock2d(in_features=4,
    # kernel_size=3, padding=1) applied to (2, 4, 16, 16).
    N, C, H, W = 2, 4, 16, 16
    x = jax.random.normal(kx, (N, C, H, W), jnp.float32)
    params = init_res_block_params(kp, C)

    ref = res_block2d_reference(x, params)

    # row_tile=8 exercises the multi-block grid + halo path; None -> auto tile.
    for rt in (8, None):
        out = jax.block_until_ready(res_block2d_forward(x, params, row_tile=rt))
        assert out.shape == (N, C, H, W), f"got {out.shape}"
        assert bool(jnp.all(jnp.isfinite(out)))
        err = float(jnp.max(jnp.abs(out - ref)))
        assert err < 5e-2, f"row_tile={rt}: max abs err {err}"

    print("KERNEL_OK")
</pallas_src>

<mosaic_0001>
module attributes {stable_mosaic.version = 11 : i64} {
  func.func @_bn_relu_conv_stats_kernel(%arg0: i32, %arg1: i32, %arg2: memref<1x128xf32, #tpu.memory_space<vmem>>, %arg3: memref<1x128xf32, #tpu.memory_space<vmem>>, %arg4: memref<3x384x128xbf16, #tpu.memory_space<vmem>>, %arg5: memref<1x128xf32, #tpu.memory_space<vmem>>, %arg6: memref<1x8x16x128xf32, #tpu.memory_space<vmem>>, %arg7: memref<1x1x16x128xf32, #tpu.memory_space<vmem>>, %arg8: memref<1x1x16x128xf32, #tpu.memory_space<vmem>>, %arg9: memref<1x8x16x128xbf16, #tpu.memory_space<vmem>>, %arg10: memref<1x1x2x128xf32, #tpu.memory_space<vmem>>, %arg11: memref<10x18x128xbf16, #tpu.memory_space<vmem>>, %arg12: memref<128x128xf32, #tpu.memory_space<vmem>>) attributes {dimension_semantics = [#tpu.dimension_semantics<parallel>, #tpu.dimension_semantics<parallel>], iteration_bounds = array<i64: 2, 2>, scalar_prefetch = 0 : i64, scratch_operands = 2 : i64, tpu.core_type = #tpu.core_type<tc>, window_params = [{pipeline_mode = #tpu.pipeline_mode<synchronous>, transform_indices = @transform_0, window_bounds = array<i64: 1, 128>}, {pipeline_mode = #tpu.pipeline_mode<synchronous>, transform_indices = @transform_1, window_bounds = array<i64: 1, 128>}, {pipeline_mode = #tpu.pipeline_mode<synchronous>, transform_indices = @transform_2, window_bounds = array<i64: 3, 384, 128>}, {pipeline_mode = #tpu.pipeline_mode<synchronous>, transform_indices = @transform_3, window_bounds = array<i64: 1, 128>}, {transform_indices = @transform_4, window_bounds = array<i64: 1, 8, 16, 128>}, {transform_indices = @transform_5, window_bounds = array<i64: 1, 1, 16, 128>}, {transform_indices = @transform_6, window_bounds = array<i64: 1, 1, 16, 128>}, {transform_indices = @transform_7, window_bounds = array<i64: 1, 8, 16, 128>}, {transform_indices = @transform_8, window_bounds = array<i64: 1, 1, 2, 128>}]} {
    %c0 = arith.constant 0 : index
    %c0_0 = arith.constant 0 : index
    %0 = vector.load %arg2[%c0, %c0_0] : memref<1x128xf32, #tpu.memory_space<vmem>>, vector<1x128xf32>
    %c0_1 = arith.constant 0 : index
    %c0_2 = arith.constant 0 : index
    %1 = vector.load %arg3[%c0_1, %c0_2] : memref<1x128xf32, #tpu.memory_space<vmem>>, vector<1x128xf32>
    %c0_3 = arith.constant 0 : index
    %c0_4 = arith.constant 0 : index
    %c0_5 = arith.constant 0 : index
    %c0_6 = arith.constant 0 : index
    %2 = vector.load %arg6[%c0_3, %c0_4, %c0_5, %c0_6] : memref<1x8x16x128xf32, #tpu.memory_space<vmem>>, vector<1x8x16x128xf32>
    %3 = vector.shape_cast %2 : vector<1x8x16x128xf32> to vector<8x16x128xf32>
    %4 = vector.shape_cast %0 : vector<1x128xf32> to vector<1x1x128xf32>
    %5 = vector.broadcast %4 : vector<1x1x128xf32> to vector<8x16x128xf32>
    %6 = arith.mulf %3, %5 : vector<8x16x128xf32>
    %7 = vector.shape_cast %1 : vector<1x128xf32> to vector<1x1x128xf32>
    %8 = vector.broadcast %7 : vector<1x1x128xf32> to vector<8x16x128xf32>
    %9 = arith.addf %6, %8 : vector<8x16x128xf32>
    %cst = arith.constant 0.000000e+00 : f32
    %10 = vector.broadcast %cst : f32 to vector<8x16x128xf32>
    %11 = arith.maximumf %9, %10 : vector<8x16x128xf32>
    %12 = arith.truncf %11 : vector<8x16x128xf32> to vector<8x16x128xbf16>
    %c0_i32 = arith.constant 0 : i32
    %13 = arith.cmpi sgt, %arg1, %c0_i32 : i32
    %c0_7 = arith.constant 0 : index
    %c0_8 = arith.constant 0 : index
    %c0_9 = arith.constant 0 : index
    %c0_10 = arith.constant 0 : index
    %14 = vector.load %arg7[%c0_7, %c0_8, %c0_9, %c0_10] : memref<1x1x16x128xf32, #tpu.memory_space<vmem>>, vector<1x1x16x128xf32>
    %15 = vector.shape_cast %14 : vector<1x1x16x128xf32> to vector<16x128xf32>
    %16 = vector.broadcast %0 : vector<1x128xf32> to vector<16x128xf32>
    %17 = arith.mulf %15, %16 : vector<16x128xf32>
    %18 = vector.broadcast %1 : vector<1x128xf32> to vector<16x128xf32>
    %19 = arith.addf %17, %18 : vector<16x128xf32>
    %cst_11 = arith.constant 0.000000e+00 : f32
    %20 = vector.broadcast %cst_11 : f32 to vector<16x128xf32>
    %21 = arith.maximumf %19, %20 : vector<16x128xf32>
    %cst_12 = arith.constant 0.000000e+00 : f32
    %22 = vector.broadcast %cst_12 : f32 to vector<16x128xf32>
    %23 = arith.select %13, %21, %22 : vector<16x128xf32>
    %24 = arith.truncf %23 : vector<16x128xf32> to vector<16x128xbf16>
    %c1_i32 = arith.constant 1 : i32
    %25 = arith.cmpi slt, %arg1, %c1_i32 : i32
    %c0_13 = arith.constant 0 : index
    %c0_14 = arith.constant 0 : index
    %c0_15 = arith.constant 0 : index
    %c0_16 = arith.constant 0 : index
    %26 = vector.load %arg8[%c0_13, %c0_14, %c0_15, %c0_16] : memref<1x1x16x128xf32, #tpu.memory_space<vmem>>, vector<1x1x16x128xf32>
    %27 = vector.shape_cast %26 : vector<1x1x16x128xf32> to vector<16x128xf32>
    %28 = vector.broadcast %0 : vector<1x128xf32> to vector<16x128xf32>
    %29 = arith.mulf %27, %28 : vector<16x128xf32>
    %30 = vector.broadcast %1 : vector<1x128xf32> to vector<16x128xf32>
    %31 = arith.addf %29, %30 : vector<16x128xf32>
    %cst_17 = arith.constant 0.000000e+00 : f32
    %32 = vector.broadcast %cst_17 : f32 to vector<16x128xf32>
    %33 = arith.maximumf %31, %32 : vector<16x128xf32>
    %cst_18 = arith.constant 0.000000e+00 : f32
    %34 = vector.broadcast %cst_18 : f32 to vector<16x128xf32>
    %35 = arith.select %25, %33, %34 : vector<16x128xf32>
    %36 = arith.truncf %35 : vector<16x128xf32> to vector<16x128xbf16>
    %cst_19 = arith.constant 0.000000e+00 : bf16
    %37 = vector.broadcast %cst_19 : bf16 to vector<10x1x128xbf16>
    %c0_20 = arith.constant 0 : index
    %c0_21 = arith.constant 0 : index
    %c0_22 = arith.constant 0 : index
    %38 = vector.load %arg11[%c0_20, %c0_21, %c0_22] : memref<10x18x128xbf16, #tpu.memory_space<vmem>>, vector<10x1x128xbf16>
    tpu.vector_store %arg11[%c0_20, %c0_21, %c0_22], %37 {strides = array<i32>} : memref<10x18x128xbf16, #tpu.memory_space<vmem>>, vector<10x1x128xbf16>,
    %c0_23 = arith.constant 0 : index
    %c17 = arith.constant 17 : index
    %c0_24 = arith.constant 0 : index
    %39 = vector.load %arg11[%c0_23, %c17, %c0_24] : memref<10x18x128xbf16, #tpu.memory_space<vmem>>, vector<10x1x128xbf16>
    tpu.vector_store %arg11[%c0_23, %c17, %c0_24], %37 {strides = array<i32>} : memref<10x18x128xbf16, #tpu.memory_space<vmem>>, vector<10x1x128xbf16>,
    %c1 = arith.constant 1 : index
    %c1_25 = arith.constant 1 : index
    %c0_26 = arith.constant 0 : index
    %40 = vector.load %arg11[%c1, %c1_25, %c0_26] : memref<10x18x128xbf16, #tpu.memory_space<vmem>>, vector<8x16x128xbf16>
    tpu.vector_store %arg11[%c1, %c1_25, %c0_26], %12 {strides = array<i32>} : memref<10x18x128xbf16, #tpu.memory_space<vmem>>, vector<8x16x128xbf16>,
    %c0_27 = arith.constant 0 : index
    %c1_28 = arith.constant 1 : index
    %c0_29 = arith.constant 0 : index
    %41 = vector.load %arg11[%c0_27, %c1_28, %c0_29] : memref<10x18x128xbf16, #tpu.memory_space<vmem>>, vector<1x16x128xbf16>
    %42 = vector.shape_cast %41 : vector<1x16x128xbf16> to vector<16x128xbf16>
    %43 = vector.shape_cast %24 : vector<16x128xbf16> to vector<1x16x128xbf16>
    tpu.vector_store %arg11[%c0_27, %c1_28, %c0_29], %43 {strides = array<i32>} : memref<10x18x128xbf16, #tpu.memory_space<vmem>>, vector<1x16x128xbf16>,
    %c9 = arith.constant 9 : index
    %c1_30 = arith.constant 1 : index
    %c0_31 = arith.constant 0 : index
    %44 = vector.load %arg11[%c9, %c1_30, %c0_31] : memref<10x18x128xbf16, #tpu.memory_space<vmem>>, vector<1x16x128xbf16>
    %45 = vector.shape_cast %44 : vector<1x16x128xbf16> to vector<16x128xbf16>
    %46 = vector.shape_cast %36 : vector<16x128xbf16> to vector<1x16x128xbf16>
    tpu.vector_store %arg11[%c9, %c1_30, %c0_31], %46 {strides = array<i32>} : memref<10x18x128xbf16, #tpu.memory_space<vmem>>, vector<1x16x128xbf16>,
    %c0_32 = arith.constant 0 : index
    %c0_33 = arith.constant 0 : index
    %c0_34 = arith.constant 0 : index
    %47 = vector.load %arg11[%c0_32, %c0_33, %c0_34] : memref<10x18x128xbf16, #tpu.memory_space<vmem>>, vector<8x18x128xbf16>
    %48 = vector.extract_strided_slice %47 {offsets = [0, 0, 0], sizes = [8, 16, 128], strides = [1, 1, 1]} : vector<8x18x128xbf16> to vector<8x16x128xbf16>
    %49 = vector.extract_strided_slice %47 {offsets = [0, 1, 0], sizes = [8, 16, 128], strides = [1, 1, 1]} : vector<8x18x128xbf16> to vector<8x16x128xbf16>
    %50 = vector.extract_strided_slice %47 {offsets = [0, 2, 0], sizes = [8, 16, 128], strides = [1, 1, 1]} : vector<8x18x128xbf16> to vector<8x16x128xbf16>
    %51 = tpu.concatenate %48, %49, %50 in 2 : vector<8x16x128xbf16>, vector<8x16x128xbf16>, vector<8x16x128xbf16> -> vector<8x16x384xbf16>
    %52 = vector.shape_cast %51 : vector<8x16x384xbf16> to vector<128x384xbf16>
    %c0_35 = arith.constant 0 : index
    %c0_36 = arith.constant 0 : index
    %c0_37 = arith.constant 0 : index
    %53 = vector.load %arg4[%c0_35, %c0_36, %c0_37] : memref<3x384x128xbf16, #tpu.memory_space<vmem>>, vector<1x384x128xbf16>
    %54 = vector.shape_cast %53 : vector<1x384x128xbf16> to vector<384x128xbf16>
    %cst_38 = arith.constant dense<0.000000e+00> : vector<128x128xf32>
    %55 = tpu.matmul %52, %54, %cst_38 {dimension_numbers = #tpu.dot_dimension_numbers<[1], [0], [0], [1], [0, 0, 1, 1], [], []>} : vector<128x384xbf16>, vector<384x128xbf16>, vector<128x128xf32> -> vector<128x128xf32>
    %c0_39 = arith.constant 0 : index
    %c0_40 = arith.constant 0 : index
    %56 = vector.load %arg12[%c0_39, %c0_40] : memref<128x128xf32, #tpu.memory_space<vmem>>, vector<128x128xf32>
    tpu.vector_store %arg12[%c0_39, %c0_40], %55 {strides = array<i32>} : memref<128x128xf32, #tpu.memory_space<vmem>>, vector<128x128xf32>,
    %c1_41 = arith.constant 1 : index
    %c0_42 = arith.constant 0 : index
    %c0_43 = arith.constant 0 : index
    %57 = vector.load %arg11[%c1_41, %c0_42, %c0_43] : memref<10x18x128xbf16, #tpu.memory_space<vmem>>, vector<8x18x128xbf16>
    %58 = vector.extract_strided_slice %57 {offsets = [0, 0, 0], sizes = [8, 16, 128], strides = [1, 1, 1]} : vector<8x18x128xbf16> to vector<8x16x128xbf16>
    %59 = vector.extract_strided_slice %57 {offsets = [0, 1, 0], sizes = [8, 16, 128], strides = [1, 1, 1]} : vector<8x18x128xbf16> to vector<8x16x128xbf16>
    %60 = vector.extract_strided_slice %57 {offsets = [0, 2, 0], sizes = [8, 16, 128], strides = [1, 1, 1]} : vector<8x18x128xbf16> to vector<8x16x128xbf16>
    %61 = tpu.concatenate %58, %59, %60 in 2 : vector<8x16x128xbf16>, vector<8x16x128xbf16>, vector<8x16x128xbf16> -> vector<8x16x384xbf16>
    %62 = vector.shape_cast %61 : vector<8x16x384xbf16> to vector<128x384xbf16>
    %c1_44 = arith.constant 1 : index
    %c0_45 = arith.constant 0 : index
    %c0_46 = arith.constant 0 : index
    %63 = vector.load %arg4[%c1_44, %c0_45, %c0_46] : memref<3x384x128xbf16, #tpu.memory_space<vmem>>, vector<1x384x128xbf16>
    %64 = vector.shape_cast %63 : vector<1x384x128xbf16> to vector<384x128xbf16>
    %cst_47 = arith.constant dense<0.000000e+00> : vector<128x128xf32>
    %65 = tpu.matmul %62, %64, %cst_47 {dimension_numbers = #tpu.dot_dimension_numbers<[1], [0], [0], [1], [0, 0, 1, 1], [], []>} : vector<128x384xbf16>, vector<384x128xbf16>, vector<128x128xf32> -> vector<128x128xf32>
    %c0_48 = arith.constant 0 : index
    %c0_49 = arith.constant 0 : index
    %66 = vector.load %arg12[%c0_48, %c0_49] : memref<128x128xf32, #tpu.memory_space<vmem>>, vector<128x128xf32>
    %67 = arith.addf %66, %65 : vector<128x128xf32>
    %c0_50 = arith.constant 0 : index
    %c0_51 = arith.constant 0 : index
    %68 = vector.load %arg12[%c0_50, %c0_51] : memref<128x128xf32, #tpu.memory_space<vmem>>, vector<128x128xf32>
    tpu.vector_store %arg12[%c0_50, %c0_51], %67 {strides = array<i32>} : memref<128x128xf32, #tpu.memory_space<vmem>>, vector<128x128xf32>,
    %c2 = arith.constant 2 : index
    %c0_52 = arith.constant 0 : index
    %c0_53 = arith.constant 0 : index
    %69 = vector.load %arg11[%c2, %c0_52, %c0_53] : memref<10x18x128xbf16, #tpu.memory_space<vmem>>, vector<8x18x128xbf16>
    %70 = vector.extract_strided_slice %69 {offsets = [0, 0, 0], sizes = [8, 16, 128], strides = [1, 1, 1]} : vector<8x18x128xbf16> to vector<8x16x128xbf16>
    %71 = vector.extract_strided_slice %69 {offsets = [0, 1, 0], sizes = [8, 16, 128], strides = [1, 1, 1]} : vector<8x18x128xbf16> to vector<8x16x128xbf16>
    %72 = vector.extract_strided_slice %69 {offsets = [0, 2, 0], sizes = [8, 16, 128], strides = [1, 1, 1]} : vector<8x18x128xbf16> to vector<8x16x128xbf16>
    %73 = tpu.concatenate %70, %71, %72 in 2 : vector<8x16x128xbf16>, vector<8x16x128xbf16>, vector<8x16x128xbf16> -> vector<8x16x384xbf16>
    %74 = vector.shape_cast %73 : vector<8x16x384xbf16> to vector<128x384xbf16>
    %c2_54 = arith.constant 2 : index
    %c0_55 = arith.constant 0 : index
    %c0_56 = arith.constant 0 : index
    %75 = vector.load %arg4[%c2_54, %c0_55, %c0_56] : memref<3x384x128xbf16, #tpu.memory_space<vmem>>, vector<1x384x128xbf16>
    %76 = vector.shape_cast %75 : vector<1x384x128xbf16> to vector<384x128xbf16>
    %cst_57 = arith.constant dense<0.000000e+00> : vector<128x128xf32>
    %77 = tpu.matmul %74, %76, %cst_57 {dimension_numbers = #tpu.dot_dimension_numbers<[1], [0], [0], [1], [0, 0, 1, 1], [], []>} : vector<128x384xbf16>, vector<384x128xbf16>, vector<128x128xf32> -> vector<128x128xf32>
    %c0_58 = arith.constant 0 : index
    %c0_59 = arith.constant 0 : index
    %78 = vector.load %arg12[%c0_58, %c0_59] : memref<128x128xf32, #tpu.memory_space<vmem>>, vector<128x128xf32>
    %79 = arith.addf %78, %77 : vector<128x128xf32>
    %c0_60 = arith.constant 0 : index
    %c0_61 = arith.constant 0 : index
    %80 = vector.load %arg12[%c0_60, %c0_61] : memref<128x128xf32, #tpu.memory_space<vmem>>, vector<128x128xf32>
    tpu.vector_store %arg12[%c0_60, %c0_61], %79 {strides = array<i32>} : memref<128x128xf32, #tpu.memory_space<vmem>>, vector<128x128xf32>,
    %c0_62 = arith.constant 0 : index
    %c0_63 = arith.constant 0 : index
    %81 = vector.load %arg12[%c0_62, %c0_63] : memref<128x128xf32, #tpu.memory_space<vmem>>, vector<128x128xf32>
    %c0_64 = arith.constant 0 : index
    %c0_65 = arith.constant 0 : index
    %82 = vector.load %arg5[%c0_64, %c0_65] : memref<1x128xf32, #tpu.memory_space<vmem>>, vector<1x128xf32>
    %83 = vector.broadcast %82 : vector<1x128xf32> to vector<128x128xf32>
    %84 = arith.addf %81, %83 : vector<128x128xf32>
    %cst_66 = arith.constant dense<0.000000e+00> : vector<128xf32>
    %85 = vector.multi_reduction <add>, %84, %cst_66 [0] : vector<128x128xf32> to vector<128xf32>
    %86 = arith.mulf %84, %84 : vector<128x128xf32>
    %cst_67 = arith.constant dense<0.000000e+00> : vector<128xf32>
    %87 = vector.multi_reduction <add>, %86, %cst_67 [0] : vector<128x128xf32> to vector<128xf32>
    %88 = vector.shape_cast %85 : vector<128xf32> to vector<1x128xf32>
    %89 = vector.shape_cast %87 : vector<128xf32> to vector<1x128xf32>
    %90 = tpu.concatenate %88, %89 in 0 : vector<1x128xf32>, vector<1x128xf32> -> vector<2x128xf32>
    %91 = vector.shape_cast %90 : vector<2x128xf32> to vector<1x1x2x128xf32>
    %c0_68 = arith.constant 0 : index
    %c0_69 = arith.constant 0 : index
    %c0_70 = arith.constant 0 : index
    %c0_71 = arith.constant 0 : index
    %92 = vector.load %arg10[%c0_68, %c0_69, %c0_70, %c0_71] : memref<1x1x2x128xf32, #tpu.memory_space<vmem>>, vector<1x1x2x128xf32>
    tpu.vector_store %arg10[%c0_68, %c0_69, %c0_70, %c0_71], %91 {strides = array<i32>} : memref<1x1x2x128xf32, #tpu.memory_space<vmem>>, vector<1x1x2x128xf32>,
    %93 = arith.truncf %84 : vector<128x128xf32> to vector<128x128xbf16>
    %94 = vector.shape_cast %93 : vector<128x128xbf16> to vector<1x8x16x128xbf16>
    %c0_72 = arith.constant 0 : index
    %c0_73 = arith.constant 0 : index
    %c0_74 = arith.constant 0 : index
    %c0_75 = arith.constant 0 : index
    %95 = vector.load %arg9[%c0_72, %c0_73, %c0_74, %c0_75] : memref<1x8x16x128xbf16, #tpu.memory_space<vmem>>, vector<1x8x16x128xbf16>
    tpu.vector_store %arg9[%c0_72, %c0_73, %c0_74, %c0_75], %94 {strides = array<i32>} : memref<1x8x16x128xbf16, #tpu.memory_space<vmem>>, vector<1x8x16x128xbf16>,
    return
  }
  func.func @transform_0(%arg0: i32, %arg1: i32) -> (i32, i32) {
    %c0_i32 = arith.constant 0 : i32
    %c0_i32_0 = arith.constant 0 : i32
    %c0_i32_1 = arith.constant 0 : i32
    return %c0_i32, %c0_i32_0 : i32, i32
  }
  func.func @transform_1(%arg0: i32, %arg1: i32) -> (i32, i32) {
    %c0_i32 = arith.constant 0 : i32
    %c0_i32_0 = arith.constant 0 : i32
    %c0_i32_1 = arith.constant 0 : i32
    return %c0_i32, %c0_i32_0 : i32, i32
  }
  func.func @transform_2(%arg0: i32, %arg1: i32) -> (i32, i32, i32) {
    %c0_i32 = arith.constant 0 : i32
    %c0_i32_0 = arith.constant 0 : i32
    %c0_i32_1 = arith.constant 0 : i32
    %c0_i32_2 = arith.constant 0 : i32
    return %c0_i32, %c0_i32_0, %c0_i32_1 : i32, i32, i32
  }
  func.func @transform_3(%arg0: i32, %arg1: i32) -> (i32, i32) {
    %c0_i32 = arith.constant 0 : i32
    %c0_i32_0 = arith.constant 0 : i32
    %c0_i32_1 = arith.constant 0 : i32
    return %c0_i32, %c0_i32_0 : i32, i32
  }
  func.func @transform_4(%arg0: i32, %arg1: i32) -> (i32, i32, i32, i32) {
    %c0_i32 = arith.constant 0 : i32
    %c0_i32_0 = arith.constant 0 : i32
    %c0_i32_1 = arith.constant 0 : i32
    return %arg0, %arg1, %c0_i32, %c0_i32_0 : i32, i32, i32, i32
  }
  func.func @transform_5(%arg0: i32, %arg1: i32) -> (i32, i32, i32, i32) {
    %c8_i32 = arith.constant 8 : i32
    %0 = arith.muli %arg1, %c8_i32 : i32
    %c1_i32 = arith.constant 1 : i32
    %1 = arith.subi %0, %c1_i32 : i32
    %c0_i32 = arith.constant 0 : i32
    %2 = arith.maxsi %1, %c0_i32 : i32
    %c0_i32_0 = arith.constant 0 : i32
    %c0_i32_1 = arith.constant 0 : i32
    %c0_i32_2 = arith.constant 0 : i32
    return %arg0, %2, %c0_i32_0, %c0_i32_1 : i32, i32, i32, i32
  }
  func.func @transform_6(%arg0: i32, %arg1: i32) -> (i32, i32, i32, i32) {
    %c1_i32 = arith.constant 1 : i32
    %0 = arith.addi %arg1, %c1_i32 : i32
    %c8_i32 = arith.constant 8 : i32
    %1 = arith.muli %0, %c8_i32 : i32
    %c15_i32 = arith.constant 15 : i32
    %2 = arith.minsi %1, %c15_i32 : i32
    %c0_i32 = arith.constant 0 : i32
    %c0_i32_0 = arith.constant 0 : i32
    %c0_i32_1 = arith.constant 0 : i32
    return %arg0, %2, %c0_i32, %c0_i32_0 : i32, i32, i32, i32
  }
  func.func @transform_7(%arg0: i32, %arg1: i32) -> (i32, i32, i32, i32) {
    %c0_i32 = arith.constant 0 : i32
    %c0_i32_0 = arith.constant 0 : i32
    %c0_i32_1 = arith.constant 0 : i32
    return %arg0, %arg1, %c0_i32, %c0_i32_0 : i32, i32, i32, i32
  }
  func.func @transform_8(%arg0: i32, %arg1: i32) -> (i32, i32, i32, i32) {
    %c0_i32 = arith.constant 0 : i32
    %c0_i32_0 = arith.constant 0 : i32
    %c0_i32_1 = arith.constant 0 : i32
    return %arg0, %arg1, %c0_i32, %c0_i32_0 : i32, i32, i32, i32
  }
}

</mosaic_0001>

<llo_original>
// kernel: tpu_custom_call.1
$region0: #{tpu_custom_call.1}
  #allocation0 [shape = 'u32[]', space=smem, size = 0x4, offset = 0x4, fixed_abs, tag = 'smem constant byte address 0x4 - core index']
  #allocation1 [shape = 'u32[144,128]{1,0:T(1,128)}', space=vmem, size = 0x12000, scoped, tag = 'internal scratch']
  #allocation2 [shape = 'bf16[10,18,128]{2,1,0:T(8,128)(2,1)}', space=vmem, size = 0xf000, scoped, tag = 'scratch operand']
  #allocation3 [shape = 'f32[128,128]{1,0:T(8,128)}', space=vmem, size = 0x10000, scoped, tag = 'scratch operand']
  %s0 = inlined_call_operand.hbm [shape: f32[1,128], index: 0, kind: input, shape index: {}]
  %s1 = inlined_call_operand.vmem [shape: f32[1,128], index: 1, kind: input, shape index: {}]
  %s2 = inlined_call_operand.hbm [shape: bf16[3,384,128], index: 2, kind: input, shape index: {}]
  %s3 = inlined_call_operand.vmem [shape: f32[1,128], index: 3, kind: input, shape index: {}]
  %s4 = inlined_call_operand.hbm [shape: f32[2,16,16,128], index: 4, kind: input, shape index: {}]
  %s5 = inlined_call_operand.hbm [shape: f32[2,16,16,128], index: 5, kind: input, shape index: {}]
  %s6 = inlined_call_operand.hbm [shape: f32[2,16,16,128], index: 6, kind: input, shape index: {}]
  %s7 = inlined_call_operand.hbm [shape: bf16[2,16,16,128], index: 7, kind: output, shape index: {0}]
  %s8 = inlined_call_operand.hbm [shape: f32[2,2,2,128], index: 8, kind: output, shape index: {1}]
  %9 = xla_tuple %s7, %s8
  %s10 = sld [smem:[#allocation0]]
  $region89: #{tpu_custom_call.1} parent=0
    _
  %s12 = ssub.s32 1, %s10
  %s13 = scalar_select 0, %s12, %s10
  $region1: #{tpu_custom_call.1} parent=0
    #allocation4 [shape = 'u8[512]{0}', space=vmem, size = 0x400, scoped, tag = 'input window, operand 0, single buffered']
    #allocation5 [shape = 's32[2]{0}', space=sflag, size = 0x8, scoped, tag = 'scoped memory for tpu_custom_call.1']
    #allocation6 [shape = 's32[2]{0}', space=sflag, size = 0x8, scoped, tag = 'scoped memory for tpu_custom_call.1']
    #allocation7 [shape = 'u8[294912]{0}', space=vmem, size = 0x48000, scoped, tag = 'input window, operand 2, single buffered']
    #allocation8 [shape = 's32[1]{0}', space=sflag, size = 0x4, scoped, tag = 'scoped memory for tpu_custom_call.1']
    #allocation9 [shape = 'u8[131072]{0}', space=vmem, size = 0x20000, scoped, tag = 'input window, operand 4']
    #allocation10 [shape = 'u8[16384]{0}', space=vmem, size = 0x4000, scoped, tag = 'input window, operand 5']
    #allocation11 [shape = 'u8[16384]{0}', space=vmem, size = 0x4000, scoped, tag = 'input window, operand 6']
    #allocation12 [shape = 'u8[65536]{0}', space=vmem, size = 0x10000, scoped, tag = 'output window, operand 0']
    #allocation13 [shape = 'u8[2048]{0}', space=vmem, size = 0x800, scoped, tag = 'output window, operand 1']
    #allocation14 [shape = 's32[2]{0}', space=sflag, size = 0x8, scoped, tag = 'scoped memory for tpu_custom_call.1']
    %14 = vsyncpa [#allocation5], 0
    %15 = vsyncpa [#allocation8], 0
    %16 = vsyncpa [#allocation6], 0
    %s17 = scalar_lea.sflag [#allocation6], 1
    %18 = vsyncpa %s17, 0
    %19 = vsyncpa [#allocation14], 0
    %s20 = scalar_lea.sflag [#allocation14], 1
    %21 = vsyncpa %s20, 0
    loop: start=0, step=1, limit=6
    $region2: #{tpu_custom_call.1} parent=1 // loop_pre_header
      _
    $region3: #{tpu_custom_call.1} parent=1 // loop_header
      %s23 = sphi 0, %s27
      %p24 = scmp.ge.s32.totalorder %s23, 6
      %s30 = sphi 0, %s42
      %s31 = sphi 0, %s38
      %s32 = sphi 0, %s30
      %s33 = sphi 0, %s31
      %s34 = sphi 0, %s32
      %s35 = sphi 0, %s33
      %s43 = sphi 0, %s43
      %s45 = sphi 0, %s43
      %s46 = sphi 0, %s45
      %s60 = sphi 0, %s46
      %s64 = sphi 0, %s64
      %s66 = sphi 0, %s64
      %s67 = sphi 0, %s66
      %s81 = sphi 0, %s67
      %s85 = sphi 0, %s85
      %s87 = sphi 0, %s85
      %s88 = sphi 0, %s87
      %s102 = sphi 0, %s88
      %s106 = sphi 0, %s106
      %s108 = sphi 0, %s106
      %s109 = sphi 0, %s108
      %s123 = sphi 0, %s109
      %s131 = sphi 0, %s133
      %s134 = sphi 0, %s131
      %s135 = sphi 0, %s134
      %s151 = sphi 0, %s135
      %s167 = sphi 0, %s169
      %s170 = sphi 0, %s167
      %s171 = sphi 0, %s170
      %s187 = sphi 0, %s171
      %s203 = sphi 0, %s205
      %s206 = sphi 0, %s203
      %s207 = sphi 0, %s206
      %s223 = sphi 0, %s207
      %s231 = sphi 0, %s233
      %s234 = sphi 0, %s231
      %s235 = sphi 0, %s234
      %s251 = sphi 0, %s235
      %s259 = sphi 0, %s261
      %s262 = sphi 0, %s259
      %s263 = sphi 0, %s262
      %s279 = sphi 0, %s263
    $region4: #{tpu_custom_call.1} parent=1 // loop_header_branch
      %26 = sbr.rel (%p24) target = $region8
    $region5: #{tpu_custom_call.1} parent=1 // loop_body
      %s28 = ssub.s32 %s23, 1
      %s29 = ssub.s32 %s23, 2
      %s36 = sadd.s32 1, %s31
      %p37 = scmp.ge.s32.totalorder %s36, 2
      %s38 = scalar_select %p37, 0, %s36
      %s39 = sadd.s32 1, %s30
      %s40 = scalar_select %p37, %s39, %s30
      %p41 = scmp.ge.s32.totalorder %s40, 2
      %s42 = scalar_select %p41, 0, %s40
      %s44 = sadd.s32 %s43, 1
      %p47 = scmp.eq.s32.totalorder %s23, 3
      %p48 = scmp.ne.s32.totalorder %s43, %s45
      %p49 = scmp.eq.s32.totalorder %s23, 0
      %p50 = por %p48, %p49
      %p51 = scmp.ne.s32.totalorder %s43, %s45
      %p52 = scmp.eq.s32.totalorder %s28, 3
      %p53 = por %p51, %p52
      %p54 = scmp.ne.s32.totalorder %s45, %s46
      %p55 = scmp.eq.s32.totalorder %s28, 0
      %p56 = por %p54, %p55
      %p57 = scmp.ne.s32.totalorder %s45, %s46
      %p58 = scmp.eq.s32.totalorder %s29, 3
      %p59 = por %p57, %p58
      %p61 = scmp.ne.s32.totalorder %s46, %s60
      %p62 = scmp.eq.s32.totalorder %s29, 0
      %p63 = por %p61, %p62
      %s65 = sadd.s32 %s64, 1
      %p68 = scmp.eq.s32.totalorder %s23, 3
      %p69 = scmp.ne.s32.totalorder %s64, %s66
      %p70 = scmp.eq.s32.totalorder %s23, 0
      %p71 = por %p69, %p70
      %p72 = scmp.ne.s32.totalorder %s64, %s66
      %p73 = scmp.eq.s32.totalorder %s28, 3
      %p74 = por %p72, %p73
      %p75 = scmp.ne.s32.totalorder %s66, %s67
      %p76 = scmp.eq.s32.totalorder %s28, 0
      %p77 = por %p75, %p76
      %p78 = scmp.ne.s32.totalorder %s66, %s67
      %p79 = scmp.eq.s32.totalorder %s29, 3
      %p80 = por %p78, %p79
      %p82 = scmp.ne.s32.totalorder %s67, %s81
      %p83 = scmp.eq.s32.totalorder %s29, 0
      %p84 = por %p82, %p83
      %s86 = sadd.s32 %s85, 1
      %p89 = scmp.eq.s32.totalorder %s23, 3
      %p90 = scmp.ne.s32.totalorder %s85, %s87
      %p91 = scmp.eq.s32.totalorder %s23, 0
      %p92 = por %p90, %p91
      %p93 = scmp.ne.s32.totalorder %s85, %s87
      %p94 = scmp.eq.s32.totalorder %s28, 3
      %p95 = por %p93, %p94
      %p96 = scmp.ne.s32.totalorder %s87, %s88
      %p97 = scmp.eq.s32.totalorder %s28, 0
      %p98 = por %p96, %p97
      %p99 = scmp.ne.s32.totalorder %s87, %s88
      %p100 = scmp.eq.s32.totalorder %s29, 3
      %p101 = por %p99, %p100
      %p103 = scmp.ne.s32.totalorder %s88, %s102
      %p104 = scmp.eq.s32.totalorder %s29, 0
      %p105 = por %p103, %p104
      %s107 = sadd.s32 %s106, 1
      %p110 = scmp.eq.s32.totalorder %s23, 3
      %p111 = scmp.ne.s32.totalorder %s106, %s108
      %p112 = scmp.eq.s32.totalorder %s23, 0
      %p113 = por %p111, %p112
      %p114 = scmp.ne.s32.totalorder %s106, %s108
      %p115 = scmp.eq.s32.totalorder %s28, 3
      %p116 = por %p114, %p115
      %p117 = scmp.ne.s32.totalorder %s108, %s109
      %p118 = scmp.eq.s32.totalorder %s28, 0
      %p119 = por %p117, %p118
      %p120 = scmp.ne.s32.totalorder %s108, %s109
      %p121 = scmp.eq.s32.totalorder %s29, 3
      %p122 = por %p120, %p121
      %p124 = scmp.ne.s32.totalorder %s109, %s123
      %p125 = scmp.eq.s32.totalorder %s29, 0
      %p126 = por %p124, %p125
      %s127 = ssub.s32 %s30, %s42
      %s128 = ssub.s32 %s31, %s38
      %s129 = sor.u32 %s127, %s128
      %p130 = scmp.eq.s32.totalorder %s129, 0
      %s132 = sadd.s32 %s131, 1
      %s133 = scalar_select %p130, %s131, %s132
      %p136 = pneg %p130
      %p137 = scmp.eq.s32.totalorder %s23, 3
      %p138 = por %p136, %p137
      %p139 = scmp.ne.s32.totalorder %s131, %s134
      %p140 = scmp.eq.s32.totalorder %s23, 0
      %p141 = por %p139, %p140
      %p142 = scmp.ne.s32.totalorder %s131, %s134
      %p143 = scmp.eq.s32.totalorder %s28, 3
      %p144 = por %p142, %p143
      %p145 = scmp.ne.s32.totalorder %s134, %s135
      %p146 = scmp.eq.s32.totalorder %s28, 0
      %p147 = por %p145, %p146
      %p148 = scmp.ne.s32.totalorder %s134, %s135
      %p149 = scmp.eq.s32.totalorder %s29, 3
      %p150 = por %p148, %p149
      %p152 = scmp.ne.s32.totalorder %s135, %s151
      %p153 = scmp.eq.s32.totalorder %s29, 0
      %p154 = por %p152, %p153
      %s155 = smul.u32 %s31, 8
      %s156 = ssub.s32 %s155, 1
      %p157 = scmp.gt.s32.totalorder %s156, 0
      %s158 = scalar_select %p157, %s156, 0
      %s159 = smul.u32 %s38, 8
      %s160 = ssub.s32 %s159, 1
      %p161 = scmp.gt.s32.totalorder %s160, 0
      %s162 = scalar_select %p161, %s160, 0
      %s163 = ssub.s32 %s30, %s42
      %s164 = ssub.s32 %s158, %s162
      %s165 = sor.u32 %s163, %s164
      %p166 = scmp.eq.s32.totalorder %s165, 0
      %s168 = sadd.s32 %s167, 1
      %s169 = scalar_select %p166, %s167, %s168
      %p172 = pneg %p166
      %p173 = scmp.eq.s32.totalorder %s23, 3
      %p174 = por %p172, %p173
      %p175 = scmp.ne.s32.totalorder %s167, %s170
      %p176 = scmp.eq.s32.totalorder %s23, 0
      %p177 = por %p175, %p176
      %p178 = scmp.ne.s32.totalorder %s167, %s170
      %p179 = scmp.eq.s32.totalorder %s28, 3
      %p180 = por %p178, %p179
      %p181 = scmp.ne.s32.totalorder %s170, %s171
      %p182 = scmp.eq.s32.totalorder %s28, 0
      %p183 = por %p181, %p182
      %p184 = scmp.ne.s32.totalorder %s170, %s171
      %p185 = scmp.eq.s32.totalorder %s29, 3
      %p186 = por %p184, %p185
      %p188 = scmp.ne.s32.totalorder %s171, %s187
      %p189 = scmp.eq.s32.totalorder %s29, 0
      %p190 = por %p188, %p189
      %s191 = sadd.s32 %s31, 1
      %s192 = smul.u32 %s191, 8
      %p193 = scmp.lt.s32.totalorder %s192, 15
      %s194 = scalar_select %p193, %s192, 15
      %s195 = sadd.s32 %s38, 1
      %s196 = smul.u32 %s195, 8
      %p197 = scmp.lt.s32.totalorder %s196, 15
      %s198 = scalar_select %p197, %s196, 15
      %s199 = ssub.s32 %s30, %s42
      %s200 = ssub.s32 %s194, %s198
      %s201 = sor.u32 %s199, %s200
      %p202 = scmp.eq.s32.totalorder %s201, 0
      %s204 = sadd.s32 %s203, 1
      %s205 = scalar_select %p202, %s203, %s204
      %p208 = pneg %p202
      %p209 = scmp.eq.s32.totalorder %s23, 3
      %p210 = por %p208, %p209
      %p211 = scmp.ne.s32.totalorder %s203, %s206
      %p212 = scmp.eq.s32.totalorder %s23, 0
      %p213 = por %p211, %p212
      %p214 = scmp.ne.s32.totalorder %s203, %s206
      %p215 = scmp.eq.s32.totalorder %s28, 3
      %p216 = por %p214, %p215
      %p217 = scmp.ne.s32.totalorder %s206, %s207
      %p218 = scmp.eq.s32.totalorder %s28, 0
      %p219 = por %p217, %p218
      %p220 = scmp.ne.s32.totalorder %s206, %s207
      %p221 = scmp.eq.s32.totalorder %s29, 3
      %p222 = por %p220, %p221
      %p224 = scmp.ne.s32.totalorder %s207, %s223
      %p225 = scmp.eq.s32.totalorder %s29, 0
      %p226 = por %p224, %p225
      %s227 = ssub.s32 %s30, %s42
      %s228 = ssub.s32 %s31, %s38
      %s229 = sor.u32 %s227, %s228
      %p230 = scmp.eq.s32.totalorder %s229, 0
      %s232 = sadd.s32 %s231, 1
      %s233 = scalar_select %p230, %s231, %s232
      %p236 = pneg %p230
      %p237 = scmp.eq.s32.totalorder %s23, 3
      %p238 = por %p236, %p237
      %p239 = scmp.ne.s32.totalorder %s231, %s234
      %p240 = scmp.eq.s32.totalorder %s23, 0
      %p241 = por %p239, %p240
      %p242 = scmp.ne.s32.totalorder %s231, %s234
      %p243 = scmp.eq.s32.totalorder %s28, 3
      %p244 = por %p242, %p243
      %p245 = scmp.ne.s32.totalorder %s234, %s235
      %p246 = scmp.eq.s32.totalorder %s28, 0
      %p247 = por %p245, %p246
      %p248 = scmp.ne.s32.totalorder %s234, %s235
      %p249 = scmp.eq.s32.totalorder %s29, 3
      %p250 = por %p248, %p249
      %p252 = scmp.ne.s32.totalorder %s235, %s251
      %p253 = scmp.eq.s32.totalorder %s29, 0
      %p254 = por %p252, %p253
      %s255 = ssub.s32 %s30, %s42
      %s256 = ssub.s32 %s31, %s38
      %s257 = sor.u32 %s255, %s256
      %p258 = scmp.eq.s32.totalorder %s257, 0
      %s260 = sadd.s32 %s259, 1
      %s261 = scalar_select %p258, %s259, %s260
      %p264 = pneg %p258
      %p265 = scmp.eq.s32.totalorder %s23, 3
      %p266 = por %p264, %p265
      %p267 = scmp.ne.s32.totalorder %s259, %s262
      %p268 = scmp.eq.s32.totalorder %s23, 0
      %p269 = por %p267, %p268
      %p270 = scmp.ne.s32.totalorder %s259, %s262
      %p271 = scmp.eq.s32.totalorder %s28, 3
      %p272 = por %p270, %p271
      %p273 = scmp.ne.s32.totalorder %s262, %s263
      %p274 = scmp.eq.s32.totalorder %s28, 0
      %p275 = por %p273, %p274
      %p276 = scmp.ne.s32.totalorder %s262, %s263
      %p277 = scmp.eq.s32.totalorder %s29, 3
      %p278 = por %p276, %p277
      %p280 = scmp.ne.s32.totalorder %s263, %s279
      %p281 = scmp.eq.s32.totalorder %s29, 0
      %p282 = por %p280, %p281
      %p283 = scmp.le.s32.totalorder 1, %s23
      %p284 = scmp.lt.s32.totalorder %s23, 5
      %p285 = pnand %p283, %p284
      %p286 = pneg %p285
      // Predicated region
      $region9: #{tpu_custom_call.1} parent=5 // pred_check
        _
      $region10: #{tpu_custom_call.1} parent=5 // pred_check_branch
        %288 = sbr.rel (%p285) target = $region12
      $region11: #{tpu_custom_call.1} parent=5 // pred_region
        %s289 = ssub.s32 %s23, 1
        // Predicated region
        $region13: #{tpu_custom_call.1} parent=11 // pred_check
          %p290 = pneg %p56
        $region14: #{tpu_custom_call.1} parent=11 // pred_check_branch
          %292 = sbr.rel (%p290) target = $region16
        $region15: #{tpu_custom_call.1} parent=11 // pred_region
          %s294 = ssub.s32 16, 16
          %295 = vsyncadd [#allocation5], %s294
          %s297 = sshll.u32 [#allocation4], 4
          %s298 = int_to_ptr.vmem [resolvable:$true] %s297
          %300 = dma.hbm_to_vmem [thread:$0]  %s0, 16, %s298, [#allocation5]
        $region16: #{tpu_custom_call.1} parent=11 // pred_fallthru
          _
        // Predicated region
        $region17: #{tpu_custom_call.1} parent=11 // pred_check
          %p301 = pneg %p77
        $region18: #{tpu_custom_call.1} parent=11 // pred_check_branch
          %303 = sbr.rel (%p301) target = $region20
        $region19: #{tpu_custom_call.1} parent=11 // pred_region
          _
        $region20: #{tpu_custom_call.1} parent=11 // pred_fallthru
          _
        // Predicated region
        $region21: #{tpu_custom_call.1} parent=11 // pred_check
          %p304 = pneg %p98
        $region22: #{tpu_custom_call.1} parent=11 // pred_check_branch
          %306 = sbr.rel (%p304) target = $region24
        $region23: #{tpu_custom_call.1} parent=11 // pred_region
          %s308 = ssub.s32 9216, 9216
          %309 = vsyncadd [#allocation8], %s308
          %s310 = sshll.u32 [#allocation7], 4
          %s311 = int_to_ptr.vmem [resolvable:$true] %s310
          %316 = dma.hbm_to_vmem [thread:$0]  %s2, 9216, %s311, [#allocation8], 64, 64, 4
        $region24: #{tpu_custom_call.1} parent=11 // pred_fallthru
          _
        // Predicated region
        $region25: #{tpu_custom_call.1} parent=11 // pred_check
          %p317 = pneg %p119
        $region26: #{tpu_custom_call.1} parent=11 // pred_check_branch
          %319 = sbr.rel (%p317) target = $region28
        $region27: #{tpu_custom_call.1} parent=11 // pred_region
          _
        $region28: #{tpu_custom_call.1} parent=11 // pred_fallthru
          _
      $region12: #{tpu_custom_call.1} parent=5 // pred_fallthru
        _
      %p320 = scmp.lt.s32.totalorder %s23, 4
      // Predicated region
      $region29: #{tpu_custom_call.1} parent=5 // pred_check
        %p321 = pneg %p320
      $region30: #{tpu_custom_call.1} parent=5 // pred_check_branch
        %323 = sbr.rel (%p321) target = $region32
      $region31: #{tpu_custom_call.1} parent=5 // pred_region
        // Predicated region
        $region33: #{tpu_custom_call.1} parent=31 // pred_check
          %p324 = pneg %p141
        $region34: #{tpu_custom_call.1} parent=31 // pred_check_branch
          %326 = sbr.rel (%p324) target = $region36
        $region35: #{tpu_custom_call.1} parent=31 // pred_region
          %s327 = sand.u32 %s23, 1
          %s328 = scalar_lea.sflag [#allocation5], %s327
          %s329 = sand.u32 %s131, 1
          %s330 = smul.addr %s329, 128
          %s331 = scalar_lea.vmem [#allocation9], %s330
          %s332 = smul.u32 8, %s31
          %s334 = ssub.s32 2048, 2048
          %335 = vsyncadd %s328, %s334
          %s336 = smul.addr %s332, 2
          %s337 = smul.addr %s30, 32
          %s338 = sadd.s32 %s336, %s337
          %s339 = smul.addr %s338, 128
          %s340 = scalar_lea.hbm %s4, %s339
          %s341 = sshll.u32 %s331, 4
          %s342 = int_to_ptr.vmem [resolvable:$true] %s341
          %347 = dma.hbm_to_vmem [thread:$0]  %s340, 2048, %s342, %s328, 128, 128, 8
        $region36: #{tpu_custom_call.1} parent=31 // pred_fallthru
          _
        // Predicated region
        $region37: #{tpu_custom_call.1} parent=31 // pred_check
          %p348 = pneg %p177
        $region38: #{tpu_custom_call.1} parent=31 // pred_check_branch
          %350 = sbr.rel (%p348) target = $region40
        $region39: #{tpu_custom_call.1} parent=31 // pred_region
          %s351 = sand.u32 %s23, 1
          %s352 = scalar_lea.sflag [#allocation5], %s351
          %s353 = sand.u32 %s167, 1
          %s354 = smul.addr %s353, 16
          %s355 = scalar_lea.vmem [#allocation10], %s354
          %s356 = smul.u32 %s31, 8
          %s357 = ssub.s32 %s356, 1
          %p358 = scmp.gt.s32.totalorder %s357, 0
          %s359 = scalar_select %p358, %s357, 0
          %s361 = ssub.s32 256, 256
          %362 = vsyncadd %s352, %s361
          %s363 = smul.addr %s359, 2
          %s364 = smul.addr %s30, 32
          %s365 = sadd.s32 %s363, %s364
          %s366 = smul.addr %s365, 128
          %s367 = scalar_lea.hbm %s5, %s366
          %s368 = sshll.u32 %s355, 4
          %s369 = int_to_ptr.vmem [resolvable:$true] %s368
          %374 = dma.hbm_to_vmem [thread:$0]  %s367, 256, %s369, %s352, 128, 128, 8
        $region40: #{tpu_custom_call.1} parent=31 // pred_fallthru
          _
        // Predicated region
        $region41: #{tpu_custom_call.1} parent=31 // pred_check
          %p375 = pneg %p213
        $region42: #{tpu_custom_call.1} parent=31 // pred_check_branch
          %377 = sbr.rel (%p375) target = $region44
        $region43: #{tpu_custom_call.1} parent=31 // pred_region
          %s378 = sand.u32 %s23, 1
          %s379 = scalar_lea.sflag [#allocation5], %s378
          %s380 = sand.u32 %s203, 1
          %s381 = smul.addr %s380, 16
          %s382 = scalar_lea.vmem [#allocation11], %s381
          %s383 = sadd.s32 %s31, 1
          %s384 = smul.u32 %s383, 8
          %p385 = scmp.lt.s32.totalorder %s384, 15
          %s386 = scalar_select %p385, %s384, 15
          %s388 = ssub.s32 256, 256
          %389 = vsyncadd %s379, %s388
          %s390 = smul.addr %s386, 2
          %s391 = smul.addr %s30, 32
          %s392 = sadd.s32 %s390, %s391
          %s393 = smul.addr %s392, 128
          %s394 = scalar_lea.hbm %s6, %s393
          %s395 = sshll.u32 %s382, 4
          %s396 = int_to_ptr.vmem [resolvable:$true] %s395
          %401 = dma.hbm_to_vmem [thread:$0]  %s394, 256, %s396, %s379, 128, 128, 8
        $region44: #{tpu_custom_call.1} parent=31 // pred_fallthru
          _
      $region32: #{tpu_custom_call.1} parent=5 // pred_fallthru
        _
      %p402 = scmp.le.s32.totalorder 1, %s23
      %p403 = scmp.lt.s32.totalorder %s23, 5
      %p404 = pnand %p402, %p403
      %p405 = pneg %p404
      // Predicated region
      $region45: #{tpu_custom_call.1} parent=5 // pred_check
        _
      $region46: #{tpu_custom_call.1} parent=5 // pred_check_branch
        %407 = sbr.rel (%p404) target = $region48
      $region47: #{tpu_custom_call.1} parent=5 // pred_region
        %s408 = ssub.s32 %s23, 1
        // Predicated region
        $region49: #{tpu_custom_call.1} parent=47 // pred_check
          %p409 = pneg %p56
        $region50: #{tpu_custom_call.1} parent=47 // pred_check_branch
          %411 = sbr.rel (%p409) target = $region52
        $region51: #{tpu_custom_call.1} parent=47 // pred_region
          %412 = dma.done [#allocation5], 16
        $region52: #{tpu_custom_call.1} parent=47 // pred_fallthru
          _
        // Predicated region
        $region53: #{tpu_custom_call.1} parent=47 // pred_check
          %p413 = pneg %p98
        $region54: #{tpu_custom_call.1} parent=47 // pred_check_branch
          %415 = sbr.rel (%p413) target = $region56
        $region55: #{tpu_custom_call.1} parent=47 // pred_region
          %416 = dma.done [#allocation8], 9216
        $region56: #{tpu_custom_call.1} parent=47 // pred_fallthru
          _
        %s417 = sand.u32 %s28, 1
        %s418 = scalar_lea.sflag [#allocation5], %s417
        %s419 = sand.u32 %s134, 1
        %s420 = smul.addr %s419, 128
        %s421 = scalar_lea.vmem [#allocation9], %s420
        // Predicated region
        $region57: #{tpu_custom_call.1} parent=47 // pred_check
          %p422 = pneg %p147
        $region58: #{tpu_custom_call.1} parent=47 // pred_check_branch
          %424 = sbr.rel (%p422) target = $region60
        $region59: #{tpu_custom_call.1} parent=47 // pred_region
          %425 = dma.done %s418, 2048
        $region60: #{tpu_custom_call.1} parent=47 // pred_fallthru
          _
        %s426 = sand.u32 %s28, 1
        %s427 = scalar_lea.sflag [#allocation5], %s426
        %s428 = sand.u32 %s170, 1
        %s429 = smul.addr %s428, 16
        %s430 = scalar_lea.vmem [#allocation10], %s429
        // Predicated region
        $region61: #{tpu_custom_call.1} parent=47 // pred_check
          %p431 = pneg %p183
        $region62: #{tpu_custom_call.1} parent=47 // pred_check_branch
          %433 = sbr.rel (%p431) target = $region64
        $region63: #{tpu_custom_call.1} parent=47 // pred_region
          %434 = dma.done %s427, 256
        $region64: #{tpu_custom_call.1} parent=47 // pred_fallthru
          _
        %s435 = sand.u32 %s28, 1
        %s436 = scalar_lea.sflag [#allocation5], %s435
        %s437 = sand.u32 %s206, 1
        %s438 = smul.addr %s437, 16
        %s439 = scalar_lea.vmem [#allocation11], %s438
        // Predicated region
        $region65: #{tpu_custom_call.1} parent=47 // pred_check
          %p440 = pneg %p219
        $region66: #{tpu_custom_call.1} parent=47 // pred_check_branch
          %442 = sbr.rel (%p440) target = $region68
        $region67: #{tpu_custom_call.1} parent=47 // pred_region
          %443 = dma.done %s436, 256
        $region68: #{tpu_custom_call.1} parent=47 // pred_fallthru
          _
        %p444 = pneg %p56
        %p445 = pneg %p53
        %p446 = pneg %p77
        %p447 = pneg %p74
        %p448 = pneg %p98
        %p449 = pneg %p95
        %p450 = pneg %p119
        %p451 = pneg %p116
        %s452 = sand.u32 %s28, 1
        %s453 = scalar_lea.sflag [#allocation5], %s452
        %s454 = sand.u32 %s134, 1
        %s455 = smul.addr %s454, 128
        %s456 = scalar_lea.vmem [#allocation9], %s455
        %p457 = pneg %p147
        %p458 = pneg %p144
        %s459 = sand.u32 %s28, 1
        %s460 = scalar_lea.sflag [#allocation5], %s459
        %s461 = sand.u32 %s170, 1
        %s462 = smul.addr %s461, 16
        %s463 = scalar_lea.vmem [#allocation10], %s462
        %p464 = pneg %p183
        %p465 = pneg %p180
        %s466 = sand.u32 %s28, 1
        %s467 = scalar_lea.sflag [#allocation5], %s466
        %s468 = sand.u32 %s206, 1
        %s469 = smul.addr %s468, 16
        %s470 = scalar_lea.vmem [#allocation11], %s469
        %p471 = pneg %p219
        %p472 = pneg %p216
        %p473 = pneg %p247
        %p474 = pneg %p244
        %s475 = sand.u32 %s234, 1
        %s476 = scalar_lea.sflag [#allocation6], %s475
        %s477 = sand.u32 %s234, 1
        %s478 = smul.addr %s477, 64
        %s479 = scalar_lea.vmem [#allocation12], %s478
        %p480 = pneg %p275
        %p481 = pneg %p272
        %s482 = sand.u32 %s262, 1
        %s483 = scalar_lea.sflag [#allocation14], %s482
        %s484 = sand.u32 %s262, 1
        %s485 = smul.addr %s484, 2
        %s486 = scalar_lea.vmem [#allocation13], %s485
        %s487 = smul.u32 8, %s33
        %s488 = smul.u32 %s33, 8
        %s489 = ssub.s32 %s488, 1
        %p490 = scmp.gt.s32.totalorder %s489, 0
        %s491 = scalar_select %p490, %s489, 0
        %s492 = sadd.s32 %s33, 1
        %s493 = smul.u32 %s492, 8
        %p494 = scmp.lt.s32.totalorder %s493, 15
        %s495 = scalar_select %p494, %s493, 15
        %s496 = smul.u32 8, %s33
        %v498 = vld [vmem:[#allocation4] sm:$0x1]
        %v499 = vld [vmem:[%s1] sm:$0x1]
        %v500 = vld [vmem:[%s421] sm:$0xff]
        %v501 = vld [vmem:[%s421 + $0x8] sm:$0xff]
        %v502 = vld [vmem:[%s421 + $0x10] sm:$0xff]
        %v503 = vld [vmem:[%s421 + $0x18] sm:$0xff]
        %v504 = vld [vmem:[%s421 + $0x20] sm:$0xff]
        %v505 = vld [vmem:[%s421 + $0x28] sm:$0xff]
        %v506 = vld [vmem:[%s421 + $0x30] sm:$0xff]
        %v507 = vld [vmem:[%s421 + $0x38] sm:$0xff]
        %v508 = vld [vmem:[%s421 + $0x40] sm:$0xff]
        %v509 = vld [vmem:[%s421 + $0x48] sm:$0xff]
        %v510 = vld [vmem:[%s421 + $0x50] sm:$0xff]
        %v511 = vld [vmem:[%s421 + $0x58] sm:$0xff]
        %v512 = vld [vmem:[%s421 + $0x60] sm:$0xff]
        %v513 = vld [vmem:[%s421 + $0x68] sm:$0xff]
        %v514 = vld [vmem:[%s421 + $0x70] sm:$0xff]
        %v515 = vld [vmem:[%s421 + $0x78] sm:$0xff]
        %v517 = vlaneseq
        %v518 = vshrl.u32 %v517, 7
        %v519 = vsub.s32 0, %v518
        %v520 = vrot.slane %v498, %v519
        %v522 = vmul.f32 %v500, %v520
        %v523 = vmul.f32 %v501, %v520
        %v524 = vmul.f32 %v502, %v520
        %v525 = vmul.f32 %v503, %v520
        %v526 = vmul.f32 %v504, %v520
        %v527 = vmul.f32 %v505, %v520
        %v528 = vmul.f32 %v506, %v520
        %v529 = vmul.f32 %v507, %v520
        %v530 = vmul.f32 %v508, %v520
        %v531 = vmul.f32 %v509, %v520
        %v532 = vmul.f32 %v510, %v520
        %v533 = vmul.f32 %v511, %v520
        %v534 = vmul.f32 %v512, %v520
        %v535 = vmul.f32 %v513, %v520
        %v536 = vmul.f32 %v514, %v520
        %v537 = vmul.f32 %v515, %v520
        %v539 = vlaneseq
        %v540 = vshrl.u32 %v539, 7
        %v541 = vsub.s32 0, %v540
        %v542 = vrot.slane %v499, %v541
        %v544 = vadd.f32 %v522, %v542
        %v545 = vadd.f32 %v523, %v542
        %v546 = vadd.f32 %v524, %v542
        %v547 = vadd.f32 %v525, %v542
        %v548 = vadd.f32 %v526, %v542
        %v549 = vadd.f32 %v527, %v542
        %v550 = vadd.f32 %v528, %v542
        %v551 = vadd.f32 %v529, %v542
        %v552 = vadd.f32 %v530, %v542
        %v553 = vadd.f32 %v531, %v542
        %v554 = vadd.f32 %v532, %v542
        %v555 = vadd.f32 %v533, %v542
        %v556 = vadd.f32 %v534, %v542
        %v557 = vadd.f32 %v535, %v542
        %v558 = vadd.f32 %v536, %v542
        %v559 = vadd.f32 %v537, %v542
        %v560 = vmax.f32 %v544, 0.0
        %v561 = vmax.f32 %v545, 0.0
        %v562 = vmax.f32 %v546, 0.0
        %v563 = vmax.f32 %v547, 0.0
        %v564 = vmax.f32 %v548, 0.0
        %v565 = vmax.f32 %v549, 0.0
        %v566 = vmax.f32 %v550, 0.0
        %v567 = vmax.f32 %v551, 0.0
        %v568 = vmax.f32 %v552, 0.0
        %v569 = vmax.f32 %v553, 0.0
        %v570 = vmax.f32 %v554, 0.0
        %v571 = vmax.f32 %v555, 0.0
        %v572 = vmax.f32 %v556, 0.0
        %v573 = vmax.f32 %v557, 0.0
        %v574 = vmax.f32 %v558, 0.0
        %v575 = vmax.f32 %v559, 0.0
        %v576 = vpack.c.bf16 %v561, %v560
        %v577 = vpack.c.bf16 %v563, %v562
        %v578 = vpack.c.bf16 %v565, %v564
        %v579 = vpack.c.bf16 %v567, %v566
        %v580 = vpack.c.bf16 %v569, %v568
        %v581 = vpack.c.bf16 %v571, %v570
        %v582 = vpack.c.bf16 %v573, %v572
        %v583 = vpack.c.bf16 %v575, %v574
        %p584 = scmp.gt.s32.totalorder %s33, 0
        %v585 = vld [vmem:[%s430] sm:$0xff]
        %v586 = vld [vmem:[%s430 + $0x8] sm:$0xff]
        %v587 = vmul.f32 %v585, %v520
        %v588 = vmul.f32 %v586, %v520
        %v589 = vadd.f32 %v587, %v542
        %v590 = vadd.f32 %v588, %v542
        %v591 = vmax.f32 %v589, 0.0
        %v592 = vmax.f32 %v590, 0.0
        %s593 = scalar_select %p584, 1, 0
        %v594 = vstv %s593
        %vm595 = vcmp.eq.s32.totalorder %v594, 1
        %v596 = vsel %vm595, %v591, 0.0
        %v597 = vsel %vm595, %v592, 0.0
        %v598 = vpack.c.bf16 %v597, %v596
        %p599 = scmp.lt.s32.totalorder %s33, 1
        %v600 = vld [vmem:[%s439] sm:$0xff]
        %v601 = vld [vmem:[%s439 + $0x8] sm:$0xff]
        %v602 = vmul.f32 %v600, %v520
        %v603 = vmul.f32 %v601, %v520
        %v604 = vadd.f32 %v602, %v542
        %v605 = vadd.f32 %v603, %v542
        %v606 = vmax.f32 %v604, 0.0
        %v607 = vmax.f32 %v605, 0.0
        %s608 = scalar_select %p599, 1, 0
        %v609 = vstv %s608
        %vm610 = vcmp.eq.s32.totalorder %v609, 1
        %v611 = vsel %vm610, %v606, 0.0
        %v612 = vsel %vm610, %v607, 0.0
        %v613 = vpack.c.bf16 %v612, %v611
        %vm614 = vcmask 1040384
        %vm615 = vsmask.f32 256
        %vm616 = vmand %vm614, %vm615
        %v617 = vld [vmem:[#allocation2] sm:$0x1]
        %v618 = vsel %vm616, 0, %v617
        %619 = vst [vmem:[#allocation2] sm:$0x1] %v618
        %v620 = vld [vmem:[#allocation2 + $0xc] sm:$0x1]
        %v621 = vsel %vm616, 0, %v620
        %622 = vst [vmem:[#allocation2 + $0xc] sm:$0x1] %v621
        %v623 = vld [vmem:[#allocation2 + $0x18] sm:$0x1]
        %v624 = vsel %vm616, 0, %v623
        %625 = vst [vmem:[#allocation2 + $0x18] sm:$0x1] %v624
        %v626 = vld [vmem:[#allocation2 + $0x24] sm:$0x1]
        %v627 = vsel %vm616, 0, %v626
        %628 = vst [vmem:[#allocation2 + $0x24] sm:$0x1] %v627
        %v629 = vld [vmem:[#allocation2 + $0x30] sm:$0x1]
        %v630 = vsel %vm616, 0, %v629
        %631 = vst [vmem:[#allocation2 + $0x30] sm:$0x1] %v630
        %v632 = vld [vmem:[#allocation2 + $0x3c] sm:$0x1]
        %v633 = vsel %vm616, 0, %v632
        %634 = vst [vmem:[#allocation2 + $0x3c] sm:$0x1] %v633
        %v635 = vld [vmem:[#allocation2 + $0x48] sm:$0x1]
        %v636 = vsel %vm616, 0, %v635
        %637 = vst [vmem:[#allocation2 + $0x48] sm:$0x1] %v636
        %v638 = vld [vmem:[#allocation2 + $0x54] sm:$0x1]
        %v639 = vsel %vm616, 0, %v638
        %640 = vst [vmem:[#allocation2 + $0x54] sm:$0x1] %v639
        %v641 = vld [vmem:[#allocation2 + $0x60] sm:$0x1]
        %v642 = vsel %vm616, 0, %v641
        %643 = vst [vmem:[#allocation2 + $0x60] sm:$0x1] %v642
        %v644 = vld [vmem:[#allocation2 + $0x6c] sm:$0x1]
        %v645 = vsel %vm616, 0, %v644
        %646 = vst [vmem:[#allocation2 + $0x6c] sm:$0x1] %v645
        %vm647 = vsmask.f32 7938
        %vm648 = vmand %vm614, %vm647
        %v649 = vld [vmem:[#allocation2 + $0x8] sm:$0x1]
        %v650 = vsel %vm648, 0, %v649
        %651 = vst [vmem:[#allocation2 + $0x8] sm:$0x1] %v650
        %v652 = vld [vmem:[#allocation2 + $0x14] sm:$0x1]
        %v653 = vsel %vm648, 0, %v652
        %654 = vst [vmem:[#allocation2 + $0x14] sm:$0x1] %v653
        %v655 = vld [vmem:[#allocation2 + $0x20] sm:$0x1]
        %v656 = vsel %vm648, 0, %v655
        %657 = vst [vmem:[#allocation2 + $0x20] sm:$0x1] %v656
        %v658 = vld [vmem:[#allocation2 + $0x2c] sm:$0x1]
        %v659 = vsel %vm648, 0, %v658
        %660 = vst [vmem:[#allocation2 + $0x2c] sm:$0x1] %v659
        %v661 = vld [vmem:[#allocation2 + $0x38] sm:$0x1]
        %v662 = vsel %vm648, 0, %v661
        %663 = vst [vmem:[#allocation2 + $0x38] sm:$0x1] %v662
        %v664 = vld [vmem:[#allocation2 + $0x44] sm:$0x1]
        %v665 = vsel %vm648, 0, %v664
        %666 = vst [vmem:[#allocation2 + $0x44] sm:$0x1] %v665
        %v667 = vld [vmem:[#allocation2 + $0x50] sm:$0x1]
        %v668 = vsel %vm648, 0, %v667
        %669 = vst [vmem:[#allocation2 + $0x50] sm:$0x1] %v668
        %v670 = vld [vmem:[#allocation2 + $0x5c] sm:$0x1]
        %v671 = vsel %vm648, 0, %v670
        %672 = vst [vmem:[#allocation2 + $0x5c] sm:$0x1] %v671
        %v673 = vld [vmem:[#allocation2 + $0x68] sm:$0x1]
        %v674 = vsel %vm648, 0, %v673
        %675 = vst [vmem:[#allocation2 + $0x68] sm:$0x1] %v674
        %v676 = vld [vmem:[#allocation2 + $0x74] sm:$0x1]
        %v677 = vsel %vm648, 0, %v676
        %678 = vst [vmem:[#allocation2 + $0x74] sm:$0x1] %v677
        %v687 = vunpack.c.l.b16 %v576
        %v688 = vunpack.c.h.b16 %v576
        %v689 = vunpack.c.l.b16 %v577
        %v690 = vunpack.c.h.b16 %v577
        %v691 = vunpack.c.l.b16 %v578
        %v692 = vunpack.c.h.b16 %v578
        %v693 = vunpack.c.l.b16 %v579
        %v694 = vunpack.c.h.b16 %v579
        %v695 = vunpack.c.l.b16 %v580
        %v696 = vunpack.c.h.b16 %v580
        %v697 = vunpack.c.l.b16 %v581
        %v698 = vunpack.c.h.b16 %v581
        %v699 = vunpack.c.l.b16 %v582
        %v700 = vunpack.c.h.b16 %v582
        %v701 = vunpack.c.l.b16 %v583
        %v702 = vunpack.c.h.b16 %v583
        %v703 = vpack.c.b16 %v687, %v687
        %v704 = vpack.c.b16 %v688, %v688
        %v705 = vpack.c.b16 %v689, %v689
        %v706 = vpack.c.b16 %v690, %v690
        %v707 = vpack.c.b16 %v691, %v691
        %v708 = vpack.c.b16 %v692, %v692
        %v709 = vpack.c.b16 %v693, %v693
        %v710 = vpack.c.b16 %v694, %v694
        %v711 = vpack.c.b16 %v695, %v695
        %v712 = vpack.c.b16 %v696, %v696
        %v713 = vpack.c.b16 %v697, %v697
        %v714 = vpack.c.b16 %v698, %v698
        %v715 = vpack.c.b16 %v699, %v699
        %v716 = vpack.c.b16 %v700, %v700
        %v717 = vpack.c.b16 %v701, %v701
        %v718 = vpack.c.b16 %v702, %v702
        %vm719 = vsmask.f32 4368
        %vm720 = vmor %vm615, %vm719
        %v722 = vshrl.u32 %v703, 16
        %v724 = vrot.slane %v722, 7
        %v725 = vshll.u32 %v703, 16
        %v727 = vor.u32 %v724, %v725
        %v728 = vrot.slane %v724, 4
        %v730 = vshrl.u32 %v704, 16
        %v732 = vrot.slane %v730, 7
        %v733 = vshll.u32 %v704, 16
        %v735 = vor.u32 %v732, %v733
        %v736 = vsel %vm720, %v728, %v735
        %v737 = vrot.slane %v732, 4
        %v739 = vshrl.u32 %v705, 16
        %v741 = vrot.slane %v739, 7
        %v742 = vshll.u32 %v705, 16
        %v744 = vor.u32 %v741, %v742
        %v745 = vrot.slane %v741, 4
        %v747 = vshrl.u32 %v706, 16
        %v749 = vrot.slane %v747, 7
        %v750 = vshll.u32 %v706, 16
        %v752 = vor.u32 %v749, %v750
        %v753 = vsel %vm720, %v745, %v752
        %v754 = vrot.slane %v749, 4
        %v756 = vshrl.u32 %v707, 16
        %v758 = vrot.slane %v756, 7
        %v759 = vshll.u32 %v707, 16
        %v761 = vor.u32 %v758, %v759
        %v762 = vrot.slane %v758, 4
        %v764 = vshrl.u32 %v708, 16
        %v766 = vrot.slane %v764, 7
        %v767 = vshll.u32 %v708, 16
        %v769 = vor.u32 %v766, %v767
        %v770 = vsel %vm720, %v762, %v769
        %v771 = vrot.slane %v766, 4
        %v773 = vshrl.u32 %v709, 16
        %v775 = vrot.slane %v773, 7
        %v776 = vshll.u32 %v709, 16
        %v778 = vor.u32 %v775, %v776
        %v779 = vrot.slane %v775, 4
        %v781 = vshrl.u32 %v710, 16
        %v783 = vrot.slane %v781, 7
        %v784 = vshll.u32 %v710, 16
        %v786 = vor.u32 %v783, %v784
        %v787 = vsel %vm720, %v779, %v786
        %v788 = vrot.slane %v783, 4
        %v790 = vshrl.u32 %v711, 16
        %v792 = vrot.slane %v790, 7
        %v793 = vshll.u32 %v711, 16
        %v795 = vor.u32 %v792, %v793
        %v796 = vrot.slane %v792, 4
        %v798 = vshrl.u32 %v712, 16
        %v800 = vrot.slane %v798, 7
        %v801 = vshll.u32 %v712, 16
        %v803 = vor.u32 %v800, %v801
        %v804 = vsel %vm720, %v796, %v803
        %v805 = vrot.slane %v800, 4
        %v807 = vshrl.u32 %v713, 16
        %v809 = vrot.slane %v807, 7
        %v810 = vshll.u32 %v713, 16
        %v812 = vor.u32 %v809, %v810
        %v813 = vrot.slane %v809, 4
        %v815 = vshrl.u32 %v714, 16
        %v817 = vrot.slane %v815, 7
        %v818 = vshll.u32 %v714, 16
        %v820 = vor.u32 %v817, %v818
        %v821 = vsel %vm720, %v813, %v820
        %v822 = vrot.slane %v817, 4
        %v824 = vshrl.u32 %v715, 16
        %v826 = vrot.slane %v824, 7
        %v827 = vshll.u32 %v715, 16
        %v829 = vor.u32 %v826, %v827
        %v830 = vrot.slane %v826, 4
        %v832 = vshrl.u32 %v716, 16
        %v834 = vrot.slane %v832, 7
        %v835 = vshll.u32 %v716, 16
        %v837 = vor.u32 %v834, %v835
        %v838 = vsel %vm720, %v830, %v837
        %v839 = vrot.slane %v834, 4
        %v841 = vshrl.u32 %v717, 16
        %v843 = vrot.slane %v841, 7
        %v844 = vshll.u32 %v717, 16
        %v846 = vor.u32 %v843, %v844
        %v847 = vrot.slane %v843, 4
        %v849 = vshrl.u32 %v718, 16
        %v851 = vrot.slane %v849, 7
        %v852 = vshll.u32 %v718, 16
        %v854 = vor.u32 %v851, %v852
        %v855 = vsel %vm720, %v847, %v854
        %v856 = vrot.slane %v851, 4
        %s881 = scalar_lea.vmem [#allocation2], 12
        %vm882 = vcmask 1043456
        %vm883 = vmand %vm882, %vm647
        %v884 = vld [vmem:[%s881] sm:$0xf]
        %v885 = vsel %vm883, %v727, %v884
        %886 = vst [vmem:[%s881] sm:$0xf] %v885
        %887 = vst [vmem:[%s881 + $0x4] sm:$0xf] %v736
        %v888 = vld [vmem:[%s881 + $0x8] sm:$0x1]
        %v889 = vsel %vm616, %v737, %v888
        %890 = vst [vmem:[%s881 + $0x8] sm:$0x1] %v889
        %v891 = vld [vmem:[%s881 + $0xc] sm:$0xf]
        %v892 = vsel %vm883, %v744, %v891
        %893 = vst [vmem:[%s881 + $0xc] sm:$0xf] %v892
        %894 = vst [vmem:[%s881 + $0x10] sm:$0xf] %v753
        %v895 = vld [vmem:[%s881 + $0x14] sm:$0x1]
        %v896 = vsel %vm616, %v754, %v895
        %897 = vst [vmem:[%s881 + $0x14] sm:$0x1] %v896
        %v898 = vld [vmem:[%s881 + $0x18] sm:$0xf]
        %v899 = vsel %vm883, %v761, %v898
        %900 = vst [vmem:[%s881 + $0x18] sm:$0xf] %v899
        %901 = vst [vmem:[%s881 + $0x1c] sm:$0xf] %v770
        %v902 = vld [vmem:[%s881 + $0x20] sm:$0x1]
        %v903 = vsel %vm616, %v771, %v902
        %904 = vst [vmem:[%s881 + $0x20] sm:$0x1] %v903
        %v905 = vld [vmem:[%s881 + $0x24] sm:$0xf]
        %v906 = vsel %vm883, %v778, %v905
        %907 = vst [vmem:[%s881 + $0x24] sm:$0xf] %v906
        %908 = vst [vmem:[%s881 + $0x28] sm:$0xf] %v787
        %v909 = vld [vmem:[%s881 + $0x2c] sm:$0x1]
        %v910 = vsel %vm616, %v788, %v909
        %911 = vst [vmem:[%s881 + $0x2c] sm:$0x1] %v910
        %v912 = vld [vmem:[%s881 + $0x30] sm:$0xf]
        %v913 = vsel %vm883, %v795, %v912
        %914 = vst [vmem:[%s881 + $0x30] sm:$0xf] %v913
        %915 = vst [vmem:[%s881 + $0x34] sm:$0xf] %v804
        %v916 = vld [vmem:[%s881 + $0x38] sm:$0x1]
        %v917 = vsel %vm616, %v805, %v916
        %918 = vst [vmem:[%s881 + $0x38] sm:$0x1] %v917
        %v919 = vld [vmem:[%s881 + $0x3c] sm:$0xf]
        %v920 = vsel %vm883, %v812, %v919
        %921 = vst [vmem:[%s881 + $0x3c] sm:$0xf] %v920
        %922 = vst [vmem:[%s881 + $0x40] sm:$0xf] %v821
        %v923 = vld [vmem:[%s881 + $0x44] sm:$0x1]
        %v924 = vsel %vm616, %v822, %v923
        %925 = vst [vmem:[%s881 + $0x44] sm:$0x1] %v924
        %v926 = vld [vmem:[%s881 + $0x48] sm:$0xf]
        %v927 = vsel %vm883, %v829, %v926
        %928 = vst [vmem:[%s881 + $0x48] sm:$0xf] %v927
        %929 = vst [vmem:[%s881 + $0x4c] sm:$0xf] %v838
        %v930 = vld [vmem:[%s881 + $0x50] sm:$0x1]
        %v931 = vsel %vm616, %v839, %v930
        %932 = vst [vmem:[%s881 + $0x50] sm:$0x1] %v931
        %v933 = vld [vmem:[%s881 + $0x54] sm:$0xf]
        %v934 = vsel %vm883, %v846, %v933
        %935 = vst [vmem:[%s881 + $0x54] sm:$0xf] %v934
        %936 = vst [vmem:[%s881 + $0x58] sm:$0xf] %v855
        %v937 = vld [vmem:[%s881 + $0x5c] sm:$0x1]
        %v938 = vsel %vm616, %v856, %v937
        %939 = vst [vmem:[%s881 + $0x5c] sm:$0x1] %v938
        %v941 = vunpack.c.l.b16 %v598
        %v942 = vunpack.c.h.b16 %v598
        %v943 = vpack.c.b16 %v941, %v941
        %v944 = vpack.c.b16 %v942, %v942
        %v946 = vshrl.u32 %v943, 16
        %v948 = vrot.slane %v946, 7
        %v949 = vshll.u32 %v943, 16
        %v951 = vor.u32 %v948, %v949
        %v952 = vrot.slane %v948, 4
        %v954 = vshrl.u32 %v944, 16
        %v956 = vrot.slane %v954, 7
        %v957 = vshll.u32 %v944, 16
        %v959 = vor.u32 %v956, %v957
        %v960 = vsel %vm720, %v952, %v959
        %v961 = vrot.slane %v956, 4
        %v965 = vld [vmem:[#allocation2] sm:$0xf]
        %v966 = vsel %vm883, %v951, %v965
        %967 = vst [vmem:[#allocation2] sm:$0xf] %v966
        %968 = vst [vmem:[#allocation2 + $0x4] sm:$0xf] %v960
        %v969 = vld [vmem:[#allocation2 + $0x8] sm:$0x1]
        %v970 = vsel %vm616, %v961, %v969
        %971 = vst [vmem:[#allocation2 + $0x8] sm:$0x1] %v970
        %v973 = vunpack.c.l.b16 %v613
        %v974 = vunpack.c.h.b16 %v613
        %v975 = vpack.c.b16 %v973, %v973
        %v976 = vpack.c.b16 %v974, %v974
        %v978 = vshrl.u32 %v975, 16
        %v980 = vrot.slane %v978, 7
        %v981 = vshll.u32 %v975, 16
        %v983 = vor.u32 %v980, %v981
        %v984 = vrot.slane %v980, 4
        %v986 = vshrl.u32 %v976, 16
        %v988 = vrot.slane %v986, 7
        %v989 = vshll.u32 %v976, 16
        %v991 = vor.u32 %v988, %v989
        %v992 = vsel %vm720, %v984, %v991
        %v993 = vrot.slane %v988, 4
        %s997 = scalar_lea.vmem [#allocation2], 108
        %v998 = vld [vmem:[%s997] sm:$0xf]
        %v999 = vsel %vm883, %v983, %v998
        %1000 = vst [vmem:[%s997] sm:$0xf] %v999
        %1001 = vst [vmem:[%s997 + $0x4] sm:$0xf] %v992
        %v1002 = vld [vmem:[%s997 + $0x8] sm:$0x1]
        %v1003 = vsel %vm616, %v993, %v1002
        %1004 = vst [vmem:[%s997 + $0x8] sm:$0x1] %v1003
        %v1005 = vld [vmem:[#allocation2] sm:$0xf]
        %v1006 = vld [vmem:[#allocation2 + $0x4] sm:$0xf]
        %v1007 = vld [vmem:[#allocation2 + $0x8] sm:$0x1]
        %v1008 = vld [vmem:[#allocation2 + $0xc] sm:$0xf]
        %v1009 = vld [vmem:[#allocation2 + $0x10] sm:$0xf]
        %v1010 = vld [vmem:[#allocation2 + $0x14] sm:$0x1]
        %v1011 = vld [vmem:[#allocation2 + $0x18] sm:$0xf]
        %v1012 = vld [vmem:[#allocation2 + $0x1c] sm:$0xf]
        %v1013 = vld [vmem:[#allocation2 + $0x20] sm:$0x1]
        %v1014 = vld [vmem:[#allocation2 + $0x24] sm:$0xf]
        %v1015 = vld [vmem:[#allocation2 + $0x28] sm:$0xf]
        %v1016 = vld [vmem:[#allocation2 + $0x2c] sm:$0x1]
        %v1017 = vld [vmem:[#allocation2 + $0x30] sm:$0xf]
        %v1018 = vld [vmem:[#allocation2 + $0x34] sm:$0xf]
        %v1019 = vld [vmem:[#allocation2 + $0x38] sm:$0x1]
        %v1020 = vld [vmem:[#allocation2 + $0x3c] sm:$0xf]
        %v1021 = vld [vmem:[#allocation2 + $0x40] sm:$0xf]
        %v1022 = vld [vmem:[#allocation2 + $0x44] sm:$0x1]
        %v1023 = vld [vmem:[#allocation2 + $0x48] sm:$0xf]
        %v1024 = vld [vmem:[#allocation2 + $0x4c] sm:$0xf]
        %v1025 = vld [vmem:[#allocation2 + $0x50] sm:$0x1]
        %v1026 = vld [vmem:[#allocation2 + $0x54] sm:$0xf]
        %v1027 = vld [vmem:[#allocation2 + $0x58] sm:$0xf]
        %v1028 = vld [vmem:[#allocation2 + $0x5c] sm:$0x1]
        %v1045 = vunpack.c.l.b16 %v1005
        %v1046 = vunpack.c.l.b16 %v1006
        %v1047 = vunpack.c.l.b16 %v1008
        %v1048 = vunpack.c.l.b16 %v1009
        %v1049 = vunpack.c.l.b16 %v1011
        %v1050 = vunpack.c.l.b16 %v1012
        %v1051 = vunpack.c.l.b16 %v1014
        %v1052 = vunpack.c.l.b16 %v1015
        %v1053 = vunpack.c.l.b16 %v1017
        %v1054 = vunpack.c.l.b16 %v1018
        %v1055 = vunpack.c.l.b16 %v1020
        %v1056 = vunpack.c.l.b16 %v1021
        %v1057 = vunpack.c.l.b16 %v1023
        %v1058 = vunpack.c.l.b16 %v1024
        %v1059 = vunpack.c.l.b16 %v1026
        %v1060 = vunpack.c.l.b16 %v1027
        %v1061 = vpack.c.b16 %v1046, %v1045
        %v1062 = vpack.c.b16 %v1048, %v1047
        %v1063 = vpack.c.b16 %v1050, %v1049
        %v1064 = vpack.c.b16 %v1052, %v1051
        %v1065 = vpack.c.b16 %v1054, %v1053
        %v1066 = vpack.c.b16 %v1056, %v1055
        %v1067 = vpack.c.b16 %v1058, %v1057
        %v1068 = vpack.c.b16 %v1060, %v1059
        %v1085 = vunpack.c.l.b16 %v1007
        %v1086 = vunpack.c.l.b16 %v1010
        %v1087 = vunpack.c.l.b16 %v1013
        %v1088 = vunpack.c.l.b16 %v1016
        %v1089 = vunpack.c.l.b16 %v1019
        %v1090 = vunpack.c.l.b16 %v1022
        %v1091 = vunpack.c.l.b16 %v1025
        %v1092 = vunpack.c.l.b16 %v1028
        %v1093 = vpack.c.b16 %v1085, %v1085
        %v1094 = vpack.c.b16 %v1086, %v1086
        %v1095 = vpack.c.b16 %v1087, %v1087
        %v1096 = vpack.c.b16 %v1088, %v1088
        %v1097 = vpack.c.b16 %v1089, %v1089
        %v1098 = vpack.c.b16 %v1090, %v1090
        %v1099 = vpack.c.b16 %v1091, %v1091
        %v1100 = vpack.c.b16 %v1092, %v1092
        %vm1101 = vsmask.f32 7424
        %v1103 = vshrl.u32 %v1061, 16
        %v1105 = vshll.u32 %v1061, 16
        %v1107 = vrot.slane %v1105, 1
        %v1108 = vor.u32 %v1103, %v1107
        %v1110 = vshll.u32 %v1093, 16
        %v1112 = vrot.slane %v1110, 1
        %v1113 = vsel %vm1101, %v1108, %v1112
        %v1115 = vshrl.u32 %v1062, 16
        %v1117 = vshll.u32 %v1062, 16
        %v1119 = vrot.slane %v1117, 1
        %v1120 = vor.u32 %v1115, %v1119
        %v1122 = vshll.u32 %v1094, 16
        %v1124 = vrot.slane %v1122, 1
        %v1125 = vsel %vm1101, %v1120, %v1124
        %v1127 = vshrl.u32 %v1063, 16
        %v1129 = vshll.u32 %v1063, 16
        %v1131 = vrot.slane %v1129, 1
        %v1132 = vor.u32 %v1127, %v1131
        %v1134 = vshll.u32 %v1095, 16
        %v1136 = vrot.slane %v1134, 1
        %v1137 = vsel %vm1101, %v1132, %v1136
        %v1139 = vshrl.u32 %v1064, 16
        %v1141 = vshll.u32 %v1064, 16
        %v1143 = vrot.slane %v1141, 1
        %v1144 = vor.u32 %v1139, %v1143
        %v1146 = vshll.u32 %v1096, 16
        %v1148 = vrot.slane %v1146, 1
        %v1149 = vsel %vm1101, %v1144, %v1148
        %v1151 = vshrl.u32 %v1065, 16
        %v1153 = vshll.u32 %v1065, 16
        %v1155 = vrot.slane %v1153, 1
        %v1156 = vor.u32 %v1151, %v1155
        %v1158 = vshll.u32 %v1097, 16
        %v1160 = vrot.slane %v1158, 1
        %v1161 = vsel %vm1101, %v1156, %v1160
        %v1163 = vshrl.u32 %v1066, 16
        %v1165 = vshll.u32 %v1066, 16
        %v1167 = vrot.slane %v1165, 1
        %v1168 = vor.u32 %v1163, %v1167
        %v1170 = vshll.u32 %v1098, 16
        %v1172 = vrot.slane %v1170, 1
        %v1173 = vsel %vm1101, %v1168, %v1172
        %v1175 = vshrl.u32 %v1067, 16
        %v1177 = vshll.u32 %v1067, 16
        %v1179 = vrot.slane %v1177, 1
        %v1180 = vor.u32 %v1175, %v1179
        %v1182 = vshll.u32 %v1099, 16
        %v1184 = vrot.slane %v1182, 1
        %v1185 = vsel %vm1101, %v1180, %v1184
        %v1187 = vshrl.u32 %v1068, 16
        %v1189 = vshll.u32 %v1068, 16
        %v1191 = vrot.slane %v1189, 1
        %v1192 = vor.u32 %v1187, %v1191
        %v1194 = vshll.u32 %v1100, 16
        %v1196 = vrot.slane %v1194, 1
        %v1197 = vsel %vm1101, %v1192, %v1196
        %vm1206 = vcmask 1046528
        %v1207 = vrot.slane %v1061, 1
        %v1208 = vrot.slane %v1093, 1
        %v1209 = vsel %vm1206, %v1207, %v1208
        %v1210 = vrot.slane %v1062, 1
        %v1211 = vrot.slane %v1094, 1
        %v1212 = vsel %vm1206, %v1210, %v1211
        %v1213 = vrot.slane %v1063, 1
        %v1214 = vrot.slane %v1095, 1
        %v1215 = vsel %vm1206, %v1213, %v1214
        %v1216 = vrot.slane %v1064, 1
        %v1217 = vrot.slane %v1096, 1
        %v1218 = vsel %vm1206, %v1216, %v1217
        %v1219 = vrot.slane %v1065, 1
        %v1220 = vrot.slane %v1097, 1
        %v1221 = vsel %vm1206, %v1219, %v1220
        %v1222 = vrot.slane %v1066, 1
        %v1223 = vrot.slane %v1098, 1
        %v1224 = vsel %vm1206, %v1222, %v1223
        %v1225 = vrot.slane %v1067, 1
        %v1226 = vrot.slane %v1099, 1
        %v1227 = vsel %vm1206, %v1225, %v1226
        %v1228 = vrot.slane %v1068, 1
        %v1229 = vrot.slane %v1100, 1
        %v1230 = vsel %vm1206, %v1228, %v1229
        %v1239 = vld [vmem:[#allocation7] sm:$0xf]
        %v1240 = vld [vmem:[#allocation7 + $0x4] sm:$0xf]
        %v1241 = vld [vmem:[#allocation7 + $0x8] sm:$0xf]
        %v1242 = vld [vmem:[#allocation7 + $0xc] sm:$0xf]
        %v1243 = vld [vmem:[#allocation7 + $0x10] sm:$0xf]
        %v1244 = vld [vmem:[#allocation7 + $0x14] sm:$0xf]
        %v1245 = vld [vmem:[#allocation7 + $0x18] sm:$0xf]
        %v1246 = vld [vmem:[#allocation7 + $0x1c] sm:$0xf]
        %v1247 = vld [vmem:[#allocation7 + $0x20] sm:$0xf]
        %v1248 = vld [vmem:[#allocation7 + $0x24] sm:$0xf]
        %v1249 = vld [vmem:[#allocation7 + $0x28] sm:$0xf]
        %v1250 = vld [vmem:[#allocation7 + $0x2c] sm:$0xf]
        %v1251 = vld [vmem:[#allocation7 + $0x30] sm:$0xf]
        %v1252 = vld [vmem:[#allocation7 + $0x34] sm:$0xf]
        %v1253 = vld [vmem:[#allocation7 + $0x38] sm:$0xf]
        %v1254 = vld [vmem:[#allocation7 + $0x3c] sm:$0xf]
        %v1255 = vld [vmem:[#allocation7 + $0x40] sm:$0xf]
        %v1256 = vld [vmem:[#allocation7 + $0x44] sm:$0xf]
        %v1257 = vld [vmem:[#allocation7 + $0x48] sm:$0xf]
        %v1258 = vld [vmem:[#allocation7 + $0x4c] sm:$0xf]
        %v1259 = vld [vmem:[#allocation7 + $0x50] sm:$0xf]
        %v1260 = vld [vmem:[#allocation7 + $0x54] sm:$0xf]
        %v1261 = vld [vmem:[#allocation7 + $0x58] sm:$0xf]
        %v1262 = vld [vmem:[#allocation7 + $0x5c] sm:$0xf]
        %v1263 = vld [vmem:[#allocation7 + $0x60] sm:$0xf]
        %v1264 = vld [vmem:[#allocation7 + $0x64] sm:$0xf]
        %v1265 = vld [vmem:[#allocation7 + $0x68] sm:$0xf]
        %v1266 = vld [vmem:[#allocation7 + $0x6c] sm:$0xf]
        %v1267 = vld [vmem:[#allocation7 + $0x70] sm:$0xf]
        %v1268 = vld [vmem:[#allocation7 + $0x74] sm:$0xf]
        %v1269 = vld [vmem:[#allocation7 + $0x78] sm:$0xf]
        %v1270 = vld [vmem:[#allocation7 + $0x7c] sm:$0xf]
        %v1271 = vld [vmem:[#allocation7 + $0x80] sm:$0xf]
        %v1272 = vld [vmem:[#allocation7 + $0x84] sm:$0xf]
        %v1273 = vld [vmem:[#allocation7 + $0x88] sm:$0xf]
        %v1274 = vld [vmem:[#allocation7 + $0x8c] sm:$0xf]
        %v1275 = vld [vmem:[#allocation7 + $0x90] sm:$0xf]
        %v1276 = vld [vmem:[#allocation7 + $0x94] sm:$0xf]
        %v1277 = vld [vmem:[#allocation7 + $0x98] sm:$0xf]
        %v1278 = vld [vmem:[#allocation7 + $0x9c] sm:$0xf]
        %v1279 = vld [vmem:[#allocation7 + $0xa0] sm:$0xf]
        %v1280 = vld [vmem:[#allocation7 + $0xa4] sm:$0xf]
        %v1281 = vld [vmem:[#allocation7 + $0xa8] sm:$0xf]
        %v1282 = vld [vmem:[#allocation7 + $0xac] sm:$0xf]
        %v1283 = vld [vmem:[#allocation7 + $0xb0] sm:$0xf]
        %v1284 = vld [vmem:[#allocation7 + $0xb4] sm:$0xf]
        %v1285 = vld [vmem:[#allocation7 + $0xb8] sm:$0xf]
        %v1286 = vld [vmem:[#allocation7 + $0xbc] sm:$0xf]
        %v1335 = vunpack.c.l.b16 %v1239
        %v1336 = vunpack.c.l.b16 %v1240
        %v1337 = vunpack.c.l.b16 %v1241
        %v1338 = vunpack.c.l.b16 %v1242
        %v1339 = vunpack.c.l.b16 %v1243
        %v1340 = vunpack.c.l.b16 %v1244
        %v1341 = vunpack.c.l.b16 %v1245
        %v1342 = vunpack.c.l.b16 %v1246
        %v1343 = vunpack.c.l.b16 %v1247
        %v1344 = vunpack.c.l.b16 %v1248
        %v1345 = vunpack.c.l.b16 %v1249
        %v1346 = vunpack.c.l.b16 %v1250
        %v1347 = vunpack.c.l.b16 %v1251
        %v1348 = vunpack.c.l.b16 %v1252
        %v1349 = vunpack.c.l.b16 %v1253
        %v1350 = vunpack.c.l.b16 %v1254
        %v1351 = vunpack.c.l.b16 %v1255
        %v1352 = vunpack.c.l.b16 %v1256
        %v1353 = vunpack.c.l.b16 %v1257
        %v1354 = vunpack.c.l.b16 %v1258
        %v1355 = vunpack.c.l.b16 %v1259
        %v1356 = vunpack.c.l.b16 %v1260
        %v1357 = vunpack.c.l.b16 %v1261
        %v1358 = vunpack.c.l.b16 %v1262
        %v1359 = vunpack.c.l.b16 %v1263
        %v1360 = vunpack.c.l.b16 %v1264
        %v1361 = vunpack.c.l.b16 %v1265
        %v1362 = vunpack.c.l.b16 %v1266
        %v1363 = vunpack.c.l.b16 %v1267
        %v1364 = vunpack.c.l.b16 %v1268
        %v1365 = vunpack.c.l.b16 %v1269
        %v1366 = vunpack.c.l.b16 %v1270
        %v1367 = vunpack.c.l.b16 %v1271
        %v1368 = vunpack.c.l.b16 %v1272
        %v1369 = vunpack.c.l.b16 %v1273
        %v1370 = vunpack.c.l.b16 %v1274
        %v1371 = vunpack.c.l.b16 %v1275
        %v1372 = vunpack.c.l.b16 %v1276
        %v1373 = vunpack.c.l.b16 %v1277
        %v1374 = vunpack.c.l.b16 %v1278
        %v1375 = vunpack.c.l.b16 %v1279
        %v1376 = vunpack.c.l.b16 %v1280
        %v1377 = vunpack.c.l.b16 %v1281
        %v1378 = vunpack.c.l.b16 %v1282
        %v1379 = vunpack.c.l.b16 %v1283
        %v1380 = vunpack.c.l.b16 %v1284
        %v1381 = vunpack.c.l.b16 %v1285
        %v1382 = vunpack.c.l.b16 %v1286
        %v1383 = vpack.c.b16 %v1336, %v1335
        %v1384 = vpack.c.b16 %v1338, %v1337
        %v1385 = vpack.c.b16 %v1340, %v1339
        %v1386 = vpack.c.b16 %v1342, %v1341
        %v1387 = vpack.c.b16 %v1344, %v1343
        %v1388 = vpack.c.b16 %v1346, %v1345
        %v1389 = vpack.c.b16 %v1348, %v1347
        %v1390 = vpack.c.b16 %v1350, %v1349
        %v1391 = vpack.c.b16 %v1352, %v1351
        %v1392 = vpack.c.b16 %v1354, %v1353
        %v1393 = vpack.c.b16 %v1356, %v1355
        %v1394 = vpack.c.b16 %v1358, %v1357
        %v1395 = vpack.c.b16 %v1360, %v1359
        %v1396 = vpack.c.b16 %v1362, %v1361
        %v1397 = vpack.c.b16 %v1364, %v1363
        %v1398 = vpack.c.b16 %v1366, %v1365
        %v1399 = vpack.c.b16 %v1368, %v1367
        %v1400 = vpack.c.b16 %v1370, %v1369
        %v1401 = vpack.c.b16 %v1372, %v1371
        %v1402 = vpack.c.b16 %v1374, %v1373
        %v1403 = vpack.c.b16 %v1376, %v1375
        %v1404 = vpack.c.b16 %v1378, %v1377
        %v1405 = vpack.c.b16 %v1380, %v1379
        %v1406 = vpack.c.b16 %v1382, %v1381
        %1431 = vmatprep.subr.bf16.mxu0 0
        %1432 = vmatpush1.bf16.msra.mxu0 %v1383
        %1433 = vmatprep.subr.bf16.mxu0 0
        %1434 = vmatpush1.bf16.msra.mxu0 %v1384
        %1435 = vmatprep.subr.bf16.mxu0 0
        %1436 = vmatpush1.bf16.msra.mxu0 %v1385
        %1437 = vmatprep.subr.bf16.mxu0 0
        %1438 = vmatpush1.bf16.msra.mxu0 %v1386
        %1439 = vmatprep.subr.bf16.mxu0 0
        %1440 = vmatpush1.bf16.msra.mxu0 %v1387
        %1441 = vmatprep.subr.bf16.mxu0 0
        %1442 = vmatpush1.bf16.msra.mxu0 %v1388
        %1443 = vmatprep.subr.bf16.mxu0 0
        %1444 = vmatpush1.bf16.msra.mxu0 %v1389
        %1445 = vmatprep.subr.bf16.mxu0 0
        %1446 = vmatpush1.bf16.msra.mxu0 %v1390
        %1447 = vmatprep.subr.bf16.mxu0 0
        %1448 = vmatpush1.bf16.msra.mxu0 %v1391
        %1449 = vmatprep.subr.bf16.mxu0 0
        %1450 = vmatpush1.bf16.msra.mxu0 %v1392
        %1451 = vmatprep.subr.bf16.mxu0 0
        %1452 = vmatpush1.bf16.msra.mxu0 %v1393
        %1453 = vmatprep.subr.bf16.mxu0 0
        %1454 = vmatpush1.bf16.msra.mxu0 %v1394
        %1455 = vmatprep.subr.bf16.mxu0 0
        %1456 = vmatpush1.bf16.msra.mxu0 %v1395
        %1457 = vmatprep.subr.bf16.mxu0 0
        %1458 = vmatpush1.bf16.msra.mxu0 %v1396
        %1459 = vmatprep.subr.bf16.mxu0 0
        %1460 = vmatpush1.bf16.msra.mxu0 %v1397
        %1461 = vmatprep.subr.bf16.mxu0 0
        %1462 = vmatpush1.bf16.msra.mxu0 %v1398
        %1463 = vmatprep.mubr.bf16.mxu0 %v1113
        %1464 = vmatmul.mubr.bf16.gmra.mrb[0].mxu0 %v1061
        %v1465 = vpop.f32.mrb[0].mxu0
        %v1466 = vadd.f32 0.0, %v1465
        %v1467 = vpop.f32.mrb[0].mxu0
        %v1468 = vpop.f32.mrb[0].mxu0
        %v1469 = vadd.f32 0.0, %v1468
        %v1470 = vpop.f32.mrb[0].mxu0
        %1471 = vmatprep.mubr.bf16.mxu0 %v1125
        %1472 = vmatmul.mubr.bf16.gmra.mrb[0].mxu0 %v1062
        %v1473 = vpop.f32.mrb[0].mxu0
        %v1474 = vadd.f32 0.0, %v1473
        %v1475 = vpop.f32.mrb[0].mxu0
        %v1476 = vpop.f32.mrb[0].mxu0
        %v1477 = vadd.f32 0.0, %v1476
        %v1478 = vpop.f32.mrb[0].mxu0
        %1479 = vmatprep.mubr.bf16.mxu0 %v1137
        %1480 = vmatmul.mubr.bf16.gmra.mrb[0].mxu0 %v1063
        %v1481 = vpop.f32.mrb[0].mxu0
        %v1482 = vadd.f32 0.0, %v1481
        %v1483 = vpop.f32.mrb[0].mxu0
        %v1484 = vpop.f32.mrb[0].mxu0
        %v1485 = vadd.f32 0.0, %v1484
        %v1486 = vpop.f32.mrb[0].mxu0
        %1487 = vmatprep.mubr.bf16.mxu0 %v1149
        %1488 = vmatmul.mubr.bf16.gmra.mrb[0].mxu0 %v1064
        %v1489 = vpop.f32.mrb[0].mxu0
        %v1490 = vadd.f32 0.0, %v1489
        %v1491 = vpop.f32.mrb[0].mxu0
        %v1492 = vpop.f32.mrb[0].mxu0
        %v1493 = vadd.f32 0.0, %v1492
        %v1494 = vpop.f32.mrb[0].mxu0
        %1495 = vmatprep.mubr.bf16.mxu0 %v1161
        %1496 = vmatmul.mubr.bf16.gmra.mrb[0].mxu0 %v1065
        %v1497 = vpop.f32.mrb[0].mxu0
        %v1498 = vadd.f32 0.0, %v1497
        %v1499 = vpop.f32.mrb[0].mxu0
        %v1500 = vpop.f32.mrb[0].mxu0
        %v1501 = vadd.f32 0.0, %v1500
        %v1502 = vpop.f32.mrb[0].mxu0
        %1503 = vmatprep.mubr.bf16.mxu0 %v1173
        %1504 = vmatmul.mubr.bf16.gmra.mrb[0].mxu0 %v1066
        %v1505 = vpop.f32.mrb[0].mxu0
        %v1506 = vadd.f32 0.0, %v1505
        %v1507 = vpop.f32.mrb[0].mxu0
        %v1508 = vpop.f32.mrb[0].mxu0
        %v1509 = vadd.f32 0.0, %v1508
        %v1510 = vpop.f32.mrb[0].mxu0
        %1511 = vmatprep.mubr.bf16.mxu0 %v1185
        %1512 = vmatmul.mubr.bf16.gmra.mrb[0].mxu0 %v1067
        %v1513 = vpop.f32.mrb[0].mxu0
        %v1514 = vadd.f32 0.0, %v1513
        %v1515 = vpop.f32.mrb[0].mxu0
        %v1516 = vpop.f32.mrb[0].mxu0
        %v1517 = vadd.f32 0.0, %v1516
        %v1518 = vpop.f32.mrb[0].mxu0
        %1519 = vmatprep.mubr.bf16.mxu0 %v1197
        %1520 = vmatmul.mubr.bf16.gmra.mrb[0].mxu0 %v1068
        %v1521 = vpop.f32.mrb[0].mxu0
        %v1522 = vadd.f32 0.0, %v1521
        %v1523 = vpop.f32.mrb[0].mxu0
        %v1524 = vpop.f32.mrb[0].mxu0
        %v1525 = vadd.f32 0.0, %v1524
        %v1526 = vpop.f32.mrb[0].mxu0
        %1527 = vdwg.mxu0
        %1528 = vmatprep.subr.bf16.mxu0 0
        %1529 = vmatpush1.bf16.msra.mxu0 %v1399
        %1530 = vmatprep.subr.bf16.mxu0 0
        %1531 = vmatpush1.bf16.msra.mxu0 %v1400
        %1532 = vmatprep.subr.bf16.mxu0 0
        %1533 = vmatpush1.bf16.msra.mxu0 %v1401
        %1534 = vmatprep.subr.bf16.mxu0 0
        %1535 = vmatpush1.bf16.msra.mxu0 %v1402
        %1536 = vmatprep.subr.bf16.mxu0 0
        %1537 = vmatpush1.bf16.msra.mxu0 %v1403
        %1538 = vmatprep.subr.bf16.mxu0 0
        %1539 = vmatpush1.bf16.msra.mxu0 %v1404
        %1540 = vmatprep.subr.bf16.mxu0 0
        %1541 = vmatpush1.bf16.msra.mxu0 %v1405
        %1542 = vmatprep.subr.bf16.mxu0 0
        %1543 = vmatpush1.bf16.msra.mxu0 %v1406
        %1544 = vmatprep.subr.bf16.mxu0 0
        %1545 = vmatpush1.bf16.msra.mxu0 0
        %1546 = vmatprep.subr.bf16.mxu0 0
        %1547 = vmatpush1.bf16.msra.mxu0 0
        %1548 = vmatprep.subr.bf16.mxu0 0
        %1549 = vmatpush1.bf16.msra.mxu0 0
        %1550 = vmatprep.subr.bf16.mxu0 0
        %1551 = vmatpush1.bf16.msra.mxu0 0
        %1552 = vmatprep.subr.bf16.mxu0 0
        %1553 = vmatpush1.bf16.msra.mxu0 0
        %1554 = vmatprep.subr.bf16.mxu0 0
        %1555 = vmatpush1.bf16.msra.mxu0 0
        %1556 = vmatprep.subr.bf16.mxu0 0
        %1557 = vmatpush1.bf16.msra.mxu0 0
        %1558 = vmatprep.subr.bf16.mxu0 0
        %1559 = vmatpush1.bf16.msra.mxu0 0
        %1560 = vmatprep.mubr.bf16.mxu0 0
        %1561 = vmatmul.mubr.bf16.gmra.mrb[0].mxu0 %v1209
        %v1562 = vpop.f32.mrb[0].mxu0
        %v1563 = vadd.f32 %v1466, %v1562
        %v1564 = vpop.f32.mrb[0].mxu0
        %v1565 = vpop.f32.mrb[0].mxu0
        %v1566 = vadd.f32 %v1469, %v1565
        %v1567 = vpop.f32.mrb[0].mxu0
        %1568 = vmatprep.mubr.bf16.mxu0 0
        %1569 = vmatmul.mubr.bf16.gmra.mrb[0].mxu0 %v1212
        %v1570 = vpop.f32.mrb[0].mxu0
        %v1571 = vadd.f32 %v1474, %v1570
        %v1572 = vpop.f32.mrb[0].mxu0
        %v1573 = vpop.f32.mrb[0].mxu0
        %v1574 = vadd.f32 %v1477, %v1573
        %v1575 = vpop.f32.mrb[0].mxu0
        %1576 = vmatprep.mubr.bf16.mxu0 0
        %1577 = vmatmul.mubr.bf16.gmra.mrb[0].mxu0 %v1215
        %v1578 = vpop.f32.mrb[0].mxu0
        %v1579 = vadd.f32 %v1482, %v1578
        %v1580 = vpop.f32.mrb[0].mxu0
        %v1581 = vpop.f32.mrb[0].mxu0
        %v1582 = vadd.f32 %v1485, %v1581
        %v1583 = vpop.f32.mrb[0].mxu0
        %1584 = vmatprep.mubr.bf16.mxu0 0
        %1585 = vmatmul.mubr.bf16.gmra.mrb[0].mxu0 %v1218
        %v1586 = vpop.f32.mrb[0].mxu0
        %v1587 = vadd.f32 %v1490, %v1586
        %v1588 = vpop.f32.mrb[0].mxu0
        %v1589 = vpop.f32.mrb[0].mxu0
        %v1590 = vadd.f32 %v1493, %v1589
        %v1591 = vpop.f32.mrb[0].mxu0
        %1592 = vmatprep.mubr.bf16.mxu0 0
        %1593 = vmatmul.mubr.bf16.gmra.mrb[0].mxu0 %v1221
        %v1594 = vpop.f32.mrb[0].mxu0
        %v1595 = vadd.f32 %v1498, %v1594
        %v1596 = vpop.f32.mrb[0].mxu0
        %v1597 = vpop.f32.mrb[0].mxu0
        %v1598 = vadd.f32 %v1501, %v1597
        %v1599 = vpop.f32.mrb[0].mxu0
        %1600 = vmatprep.mubr.bf16.mxu0 0
        %1601 = vmatmul.mubr.bf16.gmra.mrb[0].mxu0 %v1224
        %v1602 = vpop.f32.mrb[0].mxu0
        %v1603 = vadd.f32 %v1506, %v1602
        %v1604 = vpop.f32.mrb[0].mxu0
        %v1605 = vpop.f32.mrb[0].mxu0
        %v1606 = vadd.f32 %v1509, %v1605
        %v1607 = vpop.f32.mrb[0].mxu0
        %1608 = vmatprep.mubr.bf16.mxu0 0
        %1609 = vmatmul.mubr.bf16.gmra.mrb[0].mxu0 %v1227
        %v1610 = vpop.f32.mrb[0].mxu0
        %v1611 = vadd.f32 %v1514, %v1610
        %v1612 = vpop.f32.mrb[0].mxu0
        %v1613 = vpop.f32.mrb[0].mxu0
        %v1614 = vadd.f32 %v1517, %v1613
        %v1615 = vpop.f32.mrb[0].mxu0
        %1616 = vmatprep.mubr.bf16.mxu0 0
        %1617 = vmatmul.mubr.bf16.gmra.mrb[0].mxu0 %v1230
        %v1618 = vpop.f32.mrb[0].mxu0
        %v1619 = vadd.f32 %v1522, %v1618
        %v1620 = vpop.f32.mrb[0].mxu0
        %v1621 = vpop.f32.mrb[0].mxu0
        %v1622 = vadd.f32 %v1525, %v1621
        %v1623 = vpop.f32.mrb[0].mxu0
        %1624 = vdwg.mxu0
        %1625 = vst [vmem:[#allocation3] sm:$0xff] %v1563
        %1626 = vst [vmem:[#allocation3 + $0x8] sm:$0xff] %v1566
        %1627 = vst [vmem:[#allocation3 + $0x10] sm:$0xff] %v1571
        %1628 = vst [vmem:[#allocation3 + $0x18] sm:$0xff] %v1574
        %1629 = vst [vmem:[#allocation3 + $0x20] sm:$0xff] %v1579
        %1630 = vst [vmem:[#allocation3 + $0x28] sm:$0xff] %v1582
        %1631 = vst [vmem:[#allocation3 + $0x30] sm:$0xff] %v1587
        %1632 = vst [vmem:[#allocation3 + $0x38] sm:$0xff] %v1590
        %1633 = vst [vmem:[#allocation3 + $0x40] sm:$0xff] %v1595
        %1634 = vst [vmem:[#allocation3 + $0x48] sm:$0xff] %v1598
        %1635 = vst [vmem:[#allocation3 + $0x50] sm:$0xff] %v1603
        %1636 = vst [vmem:[#allocation3 + $0x58] sm:$0xff] %v1606
        %1637 = vst [vmem:[#allocation3 + $0x60] sm:$0xff] %v1611
        %1638 = vst [vmem:[#allocation3 + $0x68] sm:$0xff] %v1614
        %1639 = vst [vmem:[#allocation3 + $0x70] sm:$0xff] %v1619
        %1640 = vst [vmem:[#allocation3 + $0x78] sm:$0xff] %v1622
        %v1641 = vld [vmem:[%s881] sm:$0xf]
        %v1642 = vld [vmem:[%s881 + $0x4] sm:$0xf]
        %v1643 = vld [vmem:[%s881 + $0x8] sm:$0x1]
        %v1644 = vld [vmem:[%s881 + $0xc] sm:$0xf]
        %v1645 = vld [vmem:[%s881 + $0x10] sm:$0xf]
        %v1646 = vld [vmem:[%s881 + $0x14] sm:$0x1]
        %v1647 = vld [vmem:[%s881 + $0x18] sm:$0xf]
        %v1648 = vld [vmem:[%s881 + $0x1c] sm:$0xf]
        %v1649 = vld [vmem:[%s881 + $0x20] sm:$0x1]
        %v1650 = vld [vmem:[%s881 + $0x24] sm:$0xf]
        %v1651 = vld [vmem:[%s881 + $0x28] sm:$0xf]
        %v1652 = vld [vmem:[%s881 + $0x2c] sm:$0x1]
        %v1653 = vld [vmem:[%s881 + $0x30] sm:$0xf]
        %v1654 = vld [vmem:[%s881 + $0x34] sm:$0xf]
        %v1655 = vld [vmem:[%s881 + $0x38] sm:$0x1]
        %v1656 = vld [vmem:[%s881 + $0x3c] sm:$0xf]
        %v1657 = vld [vmem:[%s881 + $0x40] sm:$0xf]
        %v1658 = vld [vmem:[%s881 + $0x44] sm:$0x1]
        %v1659 = vld [vmem:[%s881 + $0x48] sm:$0xf]
        %v1660 = vld [vmem:[%s881 + $0x4c] sm:$0xf]
        %v1661 = vld [vmem:[%s881 + $0x50] sm:$0x1]
        %v1662 = vld [vmem:[%s881 + $0x54] sm:$0xf]
        %v1663 = vld [vmem:[%s881 + $0x58] sm:$0xf]
        %v1664 = vld [vmem:[%s881 + $0x5c] sm:$0x1]
        %v1681 = vunpack.c.l.b16 %v1641
        %v1682 = vunpack.c.l.b16 %v1642
        %v1683 = vunpack.c.l.b16 %v1644
        %v1684 = vunpack.c.l.b16 %v1645
        %v1685 = vunpack.c.l.b16 %v1647
        %v1686 = vunpack.c.l.b16 %v1648
        %v1687 = vunpack.c.l.b16 %v1650
        %v1688 = vunpack.c.l.b16 %v1651
        %v1689 = vunpack.c.l.b16 %v1653
        %v1690 = vunpack.c.l.b16 %v1654
        %v1691 = vunpack.c.l.b16 %v1656
        %v1692 = vunpack.c.l.b16 %v1657
        %v1693 = vunpack.c.l.b16 %v1659
        %v1694 = vunpack.c.l.b16 %v1660
        %v1695 = vunpack.c.l.b16 %v1662
        %v1696 = vunpack.c.l.b16 %v1663
        %v1697 = vpack.c.b16 %v1682, %v1681
        %v1698 = vpack.c.b16 %v1684, %v1683
        %v1699 = vpack.c.b16 %v1686, %v1685
        %v1700 = vpack.c.b16 %v1688, %v1687
        %v1701 = vpack.c.b16 %v1690, %v1689
        %v1702 = vpack.c.b16 %v1692, %v1691
        %v1703 = vpack.c.b16 %v1694, %v1693
        %v1704 = vpack.c.b16 %v1696, %v1695
        %v1721 = vunpack.c.l.b16 %v1643
        %v1722 = vunpack.c.l.b16 %v1646
        %v1723 = vunpack.c.l.b16 %v1649
        %v1724 = vunpack.c.l.b16 %v1652
        %v1725 = vunpack.c.l.b16 %v1655
        %v1726 = vunpack.c.l.b16 %v1658
        %v1727 = vunpack.c.l.b16 %v1661
        %v1728 = vunpack.c.l.b16 %v1664
        %v1729 = vpack.c.b16 %v1721, %v1721
        %v1730 = vpack.c.b16 %v1722, %v1722
        %v1731 = vpack.c.b16 %v1723, %v1723
        %v1732 = vpack.c.b16 %v1724, %v1724
        %v1733 = vpack.c.b16 %v1725, %v1725
        %v1734 = vpack.c.b16 %v1726, %v1726
        %v1735 = vpack.c.b16 %v1727, %v1727
        %v1736 = vpack.c.b16 %v1728, %v1728
        %v1738 = vshrl.u32 %v1697, 16
        %v1740 = vshll.u32 %v1697, 16
        %v1742 = vrot.slane %v1740, 1
        %v1743 = vor.u32 %v1738, %v1742
        %v1745 = vshll.u32 %v1729, 16
        %v1747 = vrot.slane %v1745, 1
        %v1748 = vsel %vm1101, %v1743, %v1747
        %v1750 = vshrl.u32 %v1698, 16
        %v1752 = vshll.u32 %v1698, 16
        %v1754 = vrot.slane %v1752, 1
        %v1755 = vor.u32 %v1750, %v1754
        %v1757 = vshll.u32 %v1730, 16
        %v1759 = vrot.slane %v1757, 1
        %v1760 = vsel %vm1101, %v1755, %v1759
        %v1762 = vshrl.u32 %v1699, 16
        %v1764 = vshll.u32 %v1699, 16
        %v1766 = vrot.slane %v1764, 1
        %v1767 = vor.u32 %v1762, %v1766
        %v1769 = vshll.u32 %v1731, 16
        %v1771 = vrot.slane %v1769, 1
        %v1772 = vsel %vm1101, %v1767, %v1771
        %v1774 = vshrl.u32 %v1700, 16
        %v1776 = vshll.u32 %v1700, 16
        %v1778 = vrot.slane %v1776, 1
        %v1779 = vor.u32 %v1774, %v1778
        %v1781 = vshll.u32 %v1732, 16
        %v1783 = vrot.slane %v1781, 1
        %v1784 = vsel %vm1101, %v1779, %v1783
        %v1786 = vshrl.u32 %v1701, 16
        %v1788 = vshll.u32 %v1701, 16
        %v1790 = vrot.slane %v1788, 1
        %v1791 = vor.u32 %v1786, %v1790
        %v1793 = vshll.u32 %v1733, 16
        %v1795 = vrot.slane %v1793, 1
        %v1796 = vsel %vm1101, %v1791, %v1795
        %v1798 = vshrl.u32 %v1702, 16
        %v1800 = vshll.u32 %v1702, 16
        %v1802 = vrot.slane %v1800, 1
        %v1803 = vor.u32 %v1798, %v1802
        %v1805 = vshll.u32 %v1734, 16
        %v1807 = vrot.slane %v1805, 1
        %v1808 = vsel %vm1101, %v1803, %v1807
        %v1810 = vshrl.u32 %v1703, 16
        %v1812 = vshll.u32 %v1703, 16
        %v1814 = vrot.slane %v1812, 1
        %v1815 = vor.u32 %v1810, %v1814
        %v1817 = vshll.u32 %v1735, 16
        %v1819 = vrot.slane %v1817, 1
        %v1820 = vsel %vm1101, %v1815, %v1819
        %v1822 = vshrl.u32 %v1704, 16
        %v1824 = vshll.u32 %v1704, 16
        %v1826 = vrot.slane %v1824, 1
        %v1827 = vor.u32 %v1822, %v1826
        %v1829 = vshll.u32 %v1736, 16
        %v1831 = vrot.slane %v1829, 1
        %v1832 = vsel %vm1101, %v1827, %v1831
        %v1841 = vrot.slane %v1697, 1
        %v1842 = vrot.slane %v1729, 1
        %v1843 = vsel %vm1206, %v1841, %v1842
        %v1844 = vrot.slane %v1698, 1
        %v1845 = vrot.slane %v1730, 1
        %v1846 = vsel %vm1206, %v1844, %v1845
        %v1847 = vrot.slane %v1699, 1
        %v1848 = vrot.slane %v1731, 1
        %v1849 = vsel %vm1206, %v1847, %v1848
        %v1850 = vrot.slane %v1700, 1
        %v1851 = vrot.slane %v1732, 1
        %v1852 = vsel %vm1206, %v1850, %v1851
        %v1853 = vrot.slane %v1701, 1
        %v1854 = vrot.slane %v1733, 1
        %v1855 = vsel %vm1206, %v1853, %v1854
        %v1856 = vrot.slane %v1702, 1
        %v1857 = vrot.slane %v1734, 1
        %v1858 = vsel %vm1206, %v1856, %v1857
        %v1859 = vrot.slane %v1703, 1
        %v1860 = vrot.slane %v1735, 1
        %v1861 = vsel %vm1206, %v1859, %v1860
        %v1862 = vrot.slane %v1704, 1
        %v1863 = vrot.slane %v1736, 1
        %v1864 = vsel %vm1206, %v1862, %v1863
        %s1873 = scalar_lea.vmem [#allocation7], 192
        %v1874 = vld [vmem:[%s1873] sm:$0xf]
        %v1875 = vld [vmem:[%s1873 + $0x4] sm:$0xf]
        %v1876 = vld [vmem:[%s1873 + $0x8] sm:$0xf]
        %v1877 = vld [vmem:[%s1873 + $0xc] sm:$0xf]
        %v1878 = vld [vmem:[%s1873 + $0x10] sm:$0xf]
        %v1879 = vld [vmem:[%s1873 + $0x14] sm:$0xf]
        %v1880 = vld [vmem:[%s1873 + $0x18] sm:$0xf]
        %v1881 = vld [vmem:[%s1873 + $0x1c] sm:$0xf]
        %v1882 = vld [vmem:[%s1873 + $0x20] sm:$0xf]
        %v1883 = vld [vmem:[%s1873 + $0x24] sm:$0xf]
        %v1884 = vld [vmem:[%s1873 + $0x28] sm:$0xf]
        %v1885 = vld [vmem:[%s1873 + $0x2c] sm:$0xf]
        %v1886 = vld [vmem:[%s1873 + $0x30] sm:$0xf]
        %v1887 = vld [vmem:[%s1873 + $0x34] sm:$0xf]
        %v1888 = vld [vmem:[%s1873 + $0x38] sm:$0xf]
        %v1889 = vld [vmem:[%s1873 + $0x3c] sm:$0xf]
        %v1890 = vld [vmem:[%s1873 + $0x40] sm:$0xf]
        %v1891 = vld [vmem:[%s1873 + $0x44] sm:$0xf]
        %v1892 = vld [vmem:[%s1873 + $0x48] sm:$0xf]
        %v1893 = vld [vmem:[%s1873 + $0x4c] sm:$0xf]
        %v1894 = vld [vmem:[%s1873 + $0x50] sm:$0xf]
        %v1895 = vld [vmem:[%s1873 + $0x54] sm:$0xf]
        %v1896 = vld [vmem:[%s1873 + $0x58] sm:$0xf]
        %v1897 = vld [vmem:[%s1873 + $0x5c] sm:$0xf]
        %v1898 = vld [vmem:[%s1873 + $0x60] sm:$0xf]
        %v1899 = vld [vmem:[%s1873 + $0x64] sm:$0xf]
        %v1900 = vld [vmem:[%s1873 + $0x68] sm:$0xf]
        %v1901 = vld [vmem:[%s1873 + $0x6c] sm:$0xf]
        %v1902 = vld [vmem:[%s1873 + $0x70] sm:$0xf]
        %v1903 = vld [vmem:[%s1873 + $0x74] sm:$0xf]
        %v1904 = vld [vmem:[%s1873 + $0x78] sm:$0xf]
        %v1905 = vld [vmem:[%s1873 + $0x7c] sm:$0xf]
        %v1906 = vld [vmem:[%s1873 + $0x80] sm:$0xf]
        %v1907 = vld [vmem:[%s1873 + $0x84] sm:$0xf]
        %v1908 = vld [vmem:[%s1873 + $0x88] sm:$0xf]
        %v1909 = vld [vmem:[%s1873 + $0x8c] sm:$0xf]
        %v1910 = vld [vmem:[%s1873 + $0x90] sm:$0xf]
        %v1911 = vld [vmem:[%s1873 + $0x94] sm:$0xf]
        %v1912 = vld [vmem:[%s1873 + $0x98] sm:$0xf]
        %v1913 = vld [vmem:[%s1873 + $0x9c] sm:$0xf]
        %v1914 = vld [vmem:[%s1873 + $0xa0] sm:$0xf]
        %v1915 = vld [vmem:[%s1873 + $0xa4] sm:$0xf]
        %v1916 = vld [vmem:[%s1873 + $0xa8] sm:$0xf]
        %v1917 = vld [vmem:[%s1873 + $0xac] sm:$0xf]
        %v1918 = vld [vmem:[%s1873 + $0xb0] sm:$0xf]
        %v1919 = vld [vmem:[%s1873 + $0xb4] sm:$0xf]
        %v1920 = vld [vmem:[%s1873 + $0xb8] sm:$0xf]
        %v1921 = vld [vmem:[%s1873 + $0xbc] sm:$0xf]
        %v1970 = vunpack.c.l.b16 %v1874
        %v1971 = vunpack.c.l.b16 %v1875
        %v1972 = vunpack.c.l.b16 %v1876
        %v1973 = vunpack.c.l.b16 %v1877
        %v1974 = vunpack.c.l.b16 %v1878
        %v1975 = vunpack.c.l.b16 %v1879
        %v1976 = vunpack.c.l.b16 %v1880
        %v1977 = vunpack.c.l.b16 %v1881
        %v1978 = vunpack.c.l.b16 %v1882
        %v1979 = vunpack.c.l.b16 %v1883
        %v1980 = vunpack.c.l.b16 %v1884
        %v1981 = vunpack.c.l.b16 %v1885
        %v1982 = vunpack.c.l.b16 %v1886
        %v1983 = vunpack.c.l.b16 %v1887
        %v1984 = vunpack.c.l.b16 %v1888
        %v1985 = vunpack.c.l.b16 %v1889
        %v1986 = vunpack.c.l.b16 %v1890
        %v1987 = vunpack.c.l.b16 %v1891
        %v1988 = vunpack.c.l.b16 %v1892
        %v1989 = vunpack.c.l.b16 %v1893
        %v1990 = vunpack.c.l.b16 %v1894
        %v1991 = vunpack.c.l.b16 %v1895
        %v1992 = vunpack.c.l.b16 %v1896
        %v1993 = vunpack.c.l.b16 %v1897
        %v1994 = vunpack.c.l.b16 %v1898
        %v1995 = vunpack.c.l.b16 %v1899
        %v1996 = vunpack.c.l.b16 %v1900
        %v1997 = vunpack.c.l.b16 %v1901
        %v1998 = vunpack.c.l.b16 %v1902
        %v1999 = vunpack.c.l.b16 %v1903
        %v2000 = vunpack.c.l.b16 %v1904
        %v2001 = vunpack.c.l.b16 %v1905
        %v2002 = vunpack.c.l.b16 %v1906
        %v2003 = vunpack.c.l.b16 %v1907
        %v2004 = vunpack.c.l.b16 %v1908
        %v2005 = vunpack.c.l.b16 %v1909
        %v2006 = vunpack.c.l.b16 %v1910
        %v2007 = vunpack.c.l.b16 %v1911
        %v2008 = vunpack.c.l.b16 %v1912
        %v2009 = vunpack.c.l.b16 %v1913
        %v2010 = vunpack.c.l.b16 %v1914
        %v2011 = vunpack.c.l.b16 %v1915
        %v2012 = vunpack.c.l.b16 %v1916
        %v2013 = vunpack.c.l.b16 %v1917
        %v2014 = vunpack.c.l.b16 %v1918
        %v2015 = vunpack.c.l.b16 %v1919
        %v2016 = vunpack.c.l.b16 %v1920
        %v2017 = vunpack.c.l.b16 %v1921
        %v2018 = vpack.c.b16 %v1971, %v1970
        %v2019 = vpack.c.b16 %v1973, %v1972
        %v2020 = vpack.c.b16 %v1975, %v1974
        %v2021 = vpack.c.b16 %v1977, %v1976
        %v2022 = vpack.c.b16 %v1979, %v1978
        %v2023 = vpack.c.b16 %v1981, %v1980
        %v2024 = vpack.c.b16 %v1983, %v1982
        %v2025 = vpack.c.b16 %v1985, %v1984
        %v2026 = vpack.c.b16 %v1987, %v1986
        %v2027 = vpack.c.b16 %v1989, %v1988
        %v2028 = vpack.c.b16 %v1991, %v1990
        %v2029 = vpack.c.b16 %v1993, %v1992
        %v2030 = vpack.c.b16 %v1995, %v1994
        %v2031 = vpack.c.b16 %v1997, %v1996
        %v2032 = vpack.c.b16 %v1999, %v1998
        %v2033 = vpack.c.b16 %v2001, %v2000
        %v2034 = vpack.c.b16 %v2003, %v2002
        %v2035 = vpack.c.b16 %v2005, %v2004
        %v2036 = vpack.c.b16 %v2007, %v2006
        %v2037 = vpack.c.b16 %v2009, %v2008
        %v2038 = vpack.c.b16 %v2011, %v2010
        %v2039 = vpack.c.b16 %v2013, %v2012
        %v2040 = vpack.c.b16 %v2015, %v2014
        %v2041 = vpack.c.b16 %v2017, %v2016
        %2066 = vmatprep.subr.bf16.mxu0 0
        %2067 = vmatpush1.bf16.msra.mxu0 %v2018
        %2068 = vmatprep.subr.bf16.mxu0 0
        %2069 = vmatpush1.bf16.msra.mxu0 %v2019
        %2070 = vmatprep.subr.bf16.mxu0 0
        %2071 = vmatpush1.bf16.msra.mxu0 %v2020
        %2072 = vmatprep.subr.bf16.mxu0 0
        %2073 = vmatpush1.bf16.msra.mxu0 %v2021
        %2074 = vmatprep.subr.bf16.mxu0 0
        %2075 = vmatpush1.bf16.msra.mxu0 %v2022
        %2076 = vmatprep.subr.bf16.mxu0 0
        %2077 = vmatpush1.bf16.msra.mxu0 %v2023
        %2078 = vmatprep.subr.bf16.mxu0 0
        %2079 = vmatpush1.bf16.msra.mxu0 %v2024
        %2080 = vmatprep.subr.bf16.mxu0 0
        %2081 = vmatpush1.bf16.msra.mxu0 %v2025
        %2082 = vmatprep.subr.bf16.mxu0 0
        %2083 = vmatpush1.bf16.msra.mxu0 %v2026
        %2084 = vmatprep.subr.bf16.mxu0 0
        %2085 = vmatpush1.bf16.msra.mxu0 %v2027
        %2086 = vmatprep.subr.bf16.mxu0 0
        %2087 = vmatpush1.bf16.msra.mxu0 %v2028
        %2088 = vmatprep.subr.bf16.mxu0 0
        %2089 = vmatpush1.bf16.msra.mxu0 %v2029
        %2090 = vmatprep.subr.bf16.mxu0 0
        %2091 = vmatpush1.bf16.msra.mxu0 %v2030
        %2092 = vmatprep.subr.bf16.mxu0 0
        %2093 = vmatpush1.bf16.msra.mxu0 %v2031
        %2094 = vmatprep.subr.bf16.mxu0 0
        %2095 = vmatpush1.bf16.msra.mxu0 %v2032
        %2096 = vmatprep.subr.bf16.mxu0 0
        %2097 = vmatpush1.bf16.msra.mxu0 %v2033
        %2098 = vmatprep.mubr.bf16.mxu0 %v1748
        %2099 = vmatmul.mubr.bf16.gmra.mrb[0].mxu0 %v1697
        %v2100 = vpop.f32.mrb[0].mxu0
        %v2101 = vadd.f32 0.0, %v2100
        %v2102 = vpop.f32.mrb[0].mxu0
        %v2103 = vpop.f32.mrb[0].mxu0
        %v2104 = vadd.f32 0.0, %v2103
        %v2105 = vpop.f32.mrb[0].mxu0
        %2106 = vmatprep.mubr.bf16.mxu0 %v1760
        %2107 = vmatmul.mubr.bf16.gmra.mrb[0].mxu0 %v1698
        %v2108 = vpop.f32.mrb[0].mxu0
        %v2109 = vadd.f32 0.0, %v2108
        %v2110 = vpop.f32.mrb[0].mxu0
        %v2111 = vpop.f32.mrb[0].mxu0
        %v2112 = vadd.f32 0.0, %v2111
        %v2113 = vpop.f32.mrb[0].mxu0
        %2114 = vmatprep.mubr.bf16.mxu0 %v1772
        %2115 = vmatmul.mubr.bf16.gmra.mrb[0].mxu0 %v1699
        %v2116 = vpop.f32.mrb[0].mxu0
        %v2117 = vadd.f32 0.0, %v2116
        %v2118 = vpop.f32.mrb[0].mxu0
        %v2119 = vpop.f32.mrb[0].mxu0
        %v2120 = vadd.f32 0.0, %v2119
        %v2121 = vpop.f32.mrb[0].mxu0
        %2122 = vmatprep.mubr.bf16.mxu0 %v1784
        %2123 = vmatmul.mubr.bf16.gmra.mrb[0].mxu0 %v1700
        %v2124 = vpop.f32.mrb[0].mxu0
        %v2125 = vadd.f32 0.0, %v2124
        %v2126 = vpop.f32.mrb[0].mxu0
        %v2127 = vpop.f32.mrb[0].mxu0
        %v2128 = vadd.f32 0.0, %v2127
        %v2129 = vpop.f32.mrb[0].mxu0
        %2130 = vmatprep.mubr.bf16.mxu0 %v1796
        %2131 = vmatmul.mubr.bf16.gmra.mrb[0].mxu0 %v1701
        %v2132 = vpop.f32.mrb[0].mxu0
        %v2133 = vadd.f32 0.0, %v2132
        %v2134 = vpop.f32.mrb[0].mxu0
        %v2135 = vpop.f32.mrb[0].mxu0
        %v2136 = vadd.f32 0.0, %v2135
        %v2137 = vpop.f32.mrb[0].mxu0
        %2138 = vmatprep.mubr.bf16.mxu0 %v1808
        %2139 = vmatmul.mubr.bf16.gmra.mrb[0].mxu0 %v1702
        %v2140 = vpop.f32.mrb[0].mxu0
        %v2141 = vadd.f32 0.0, %v2140
        %v2142 = vpop.f32.mrb[0].mxu0
        %v2143 = vpop.f32.mrb[0].mxu0
        %v2144 = vadd.f32 0.0, %v2143
        %v2145 = vpop.f32.mrb[0].mxu0
        %2146 = vmatprep.mubr.bf16.mxu0 %v1820
        %2147 = vmatmul.mubr.bf16.gmra.mrb[0].mxu0 %v1703
        %v2148 = vpop.f32.mrb[0].mxu0
        %v2149 = vadd.f32 0.0, %v2148
        %v2150 = vpop.f32.mrb[0].mxu0
        %v2151 = vpop.f32.mrb[0].mxu0
        %v2152 = vadd.f32 0.0, %v2151
        %v2153 = vpop.f32.mrb[0].mxu0
        %2154 = vmatprep.mubr.bf16.mxu0 %v1832
        %2155 = vmatmul.mubr.bf16.gmra.mrb[0].mxu0 %v1704
        %v2156 = vpop.f32.mrb[0].mxu0
        %v2157 = vadd.f32 0.0, %v2156
        %v2158 = vpop.f32.mrb[0].mxu0
        %v2159 = vpop.f32.mrb[0].mxu0
        %v2160 = vadd.f32 0.0, %v2159
        %v2161 = vpop.f32.mrb[0].mxu0
        %2162 = vdwg.mxu0
        %2163 = vmatprep.subr.bf16.mxu0 0
        %2164 = vmatpush1.bf16.msra.mxu0 %v2034
        %2165 = vmatprep.subr.bf16.mxu0 0
        %2166 = vmatpush1.bf16.msra.mxu0 %v2035
        %2167 = vmatprep.subr.bf16.mxu0 0
        %2168 = vmatpush1.bf16.msra.mxu0 %v2036
        %2169 = vmatprep.subr.bf16.mxu0 0
        %2170 = vmatpush1.bf16.msra.mxu0 %v2037
        %2171 = vmatprep.subr.bf16.mxu0 0
        %2172 = vmatpush1.bf16.msra.mxu0 %v2038
        %2173 = vmatprep.subr.bf16.mxu0 0
        %2174 = vmatpush1.bf16.msra.mxu0 %v2039
        %2175 = vmatprep.subr.bf16.mxu0 0
        %2176 = vmatpush1.bf16.msra.mxu0 %v2040
        %2177 = vmatprep.subr.bf16.mxu0 0
        %2178 = vmatpush1.bf16.msra.mxu0 %v2041
        %2179 = vmatprep.subr.bf16.mxu0 0
        %2180 = vmatpush1.bf16.msra.mxu0 0
        %2181 = vmatprep.subr.bf16.mxu0 0
        %2182 = vmatpush1.bf16.msra.mxu0 0
        %2183 = vmatprep.subr.bf16.mxu0 0
        %2184 = vmatpush1.bf16.msra.mxu0 0
        %2185 = vmatprep.subr.bf16.mxu0 0
        %2186 = vmatpush1.bf16.msra.mxu0 0
        %2187 = vmatprep.subr.bf16.mxu0 0
        %2188 = vmatpush1.bf16.msra.mxu0 0
        %2189 = vmatprep.subr.bf16.mxu0 0
        %2190 = vmatpush1.bf16.msra.mxu0 0
        %2191 = vmatprep.subr.bf16.mxu0 0
        %2192 = vmatpush1.bf16.msra.mxu0 0
        %2193 = vmatprep.subr.bf16.mxu0 0
        %2194 = vmatpush1.bf16.msra.mxu0 0
        %2195 = vmatprep.mubr.bf16.mxu0 0
        %2196 = vmatmul.mubr.bf16.gmra.mrb[0].mxu0 %v1843
        %v2197 = vpop.f32.mrb[0].mxu0
        %v2198 = vadd.f32 %v2101, %v2197
        %v2199 = vpop.f32.mrb[0].mxu0
        %v2200 = vpop.f32.mrb[0].mxu0
        %v2201 = vadd.f32 %v2104, %v2200
        %v2202 = vpop.f32.mrb[0].mxu0
        %2203 = vmatprep.mubr.bf16.mxu0 0
        %2204 = vmatmul.mubr.bf16.gmra.mrb[0].mxu0 %v1846
        %v2205 = vpop.f32.mrb[0].mxu0
        %v2206 = vadd.f32 %v2109, %v2205
        %v2207 = vpop.f32.mrb[0].mxu0
        %v2208 = vpop.f32.mrb[0].mxu0
        %v2209 = vadd.f32 %v2112, %v2208
        %v2210 = vpop.f32.mrb[0].mxu0
        %2211 = vmatprep.mubr.bf16.mxu0 0
        %2212 = vmatmul.mubr.bf16.gmra.mrb[0].mxu0 %v1849
        %v2213 = vpop.f32.mrb[0].mxu0
        %v2214 = vadd.f32 %v2117, %v2213
        %v2215 = vpop.f32.mrb[0].mxu0
        %v2216 = vpop.f32.mrb[0].mxu0
        %v2217 = vadd.f32 %v2120, %v2216
        %v2218 = vpop.f32.mrb[0].mxu0
        %2219 = vmatprep.mubr.bf16.mxu0 0
        %2220 = vmatmul.mubr.bf16.gmra.mrb[0].mxu0 %v1852
        %v2221 = vpop.f32.mrb[0].mxu0
        %v2222 = vadd.f32 %v2125, %v2221
        %v2223 = vpop.f32.mrb[0].mxu0
        %v2224 = vpop.f32.mrb[0].mxu0
        %v2225 = vadd.f32 %v2128, %v2224
        %v2226 = vpop.f32.mrb[0].mxu0
        %2227 = vmatprep.mubr.bf16.mxu0 0
        %2228 = vmatmul.mubr.bf16.gmra.mrb[0].mxu0 %v1855
        %v2229 = vpop.f32.mrb[0].mxu0
        %v2230 = vadd.f32 %v2133, %v2229
        %v2231 = vpop.f32.mrb[0].mxu0
        %v2232 = vpop.f32.mrb[0].mxu0
        %v2233 = vadd.f32 %v2136, %v2232
        %v2234 = vpop.f32.mrb[0].mxu0
        %2235 = vmatprep.mubr.bf16.mxu0 0
        %2236 = vmatmul.mubr.bf16.gmra.mrb[0].mxu0 %v1858
        %v2237 = vpop.f32.mrb[0].mxu0
        %v2238 = vadd.f32 %v2141, %v2237
        %v2239 = vpop.f32.mrb[0].mxu0
        %v2240 = vpop.f32.mrb[0].mxu0
        %v2241 = vadd.f32 %v2144, %v2240
        %v2242 = vpop.f32.mrb[0].mxu0
        %2243 = vmatprep.mubr.bf16.mxu0 0
        %2244 = vmatmul.mubr.bf16.gmra.mrb[0].mxu0 %v1861
        %v2245 = vpop.f32.mrb[0].mxu0
        %v2246 = vadd.f32 %v2149, %v2245
        %v2247 = vpop.f32.mrb[0].mxu0
        %v2248 = vpop.f32.mrb[0].mxu0
        %v2249 = vadd.f32 %v2152, %v2248
        %v2250 = vpop.f32.mrb[0].mxu0
        %2251 = vmatprep.mubr.bf16.mxu0 0
        %2252 = vmatmul.mubr.bf16.gmra.mrb[0].mxu0 %v1864
        %v2253 = vpop.f32.mrb[0].mxu0
        %v2254 = vadd.f32 %v2157, %v2253
        %v2255 = vpop.f32.mrb[0].mxu0
        %v2256 = vpop.f32.mrb[0].mxu0
        %v2257 = vadd.f32 %v2160, %v2256
        %v2258 = vpop.f32.mrb[0].mxu0
        %2259 = vdwg.mxu0
        %v2260 = vld [vmem:[#allocation3] sm:$0xff]
        %v2261 = vld [vmem:[#allocation3 + $0x8] sm:$0xff]
        %v2262 = vld [vmem:[#allocation3 + $0x10] sm:$0xff]
        %v2263 = vld [vmem:[#allocation3 + $0x18] sm:$0xff]
        %v2264 = vld [vmem:[#allocation3 + $0x20] sm:$0xff]
        %v2265 = vld [vmem:[#allocation3 + $0x28] sm:$0xff]
        %v2266 = vld [vmem:[#allocation3 + $0x30] sm:$0xff]
        %v2267 = vld [vmem:[#allocation3 + $0x38] sm:$0xff]
        %v2268 = vld [vmem:[#allocation3 + $0x40] sm:$0xff]
        %v2269 = vld [vmem:[#allocation3 + $0x48] sm:$0xff]
        %v2270 = vld [vmem:[#allocation3 + $0x50] sm:$0xff]
        %v2271 = vld [vmem:[#allocation3 + $0x58] sm:$0xff]
        %v2272 = vld [vmem:[#allocation3 + $0x60] sm:$0xff]
        %v2273 = vld [vmem:[#allocation3 + $0x68] sm:$0xff]
        %v2274 = vld [vmem:[#allocation3 + $0x70] sm:$0xff]
        %v2275 = vld [vmem:[#allocation3 + $0x78] sm:$0xff]
        %v2276 = vadd.f32 %v2260, %v2198
        %v2277 = vadd.f32 %v2261, %v2201
        %v2278 = vadd.f32 %v2262, %v2206
        %v2279 = vadd.f32 %v2263, %v2209
        %v2280 = vadd.f32 %v2264, %v2214
        %v2281 = vadd.f32 %v2265, %v2217
        %v2282 = vadd.f32 %v2266, %v2222
        %v2283 = vadd.f32 %v2267, %v2225
        %v2284 = vadd.f32 %v2268, %v2230
        %v2285 = vadd.f32 %v2269, %v2233
        %v2286 = vadd.f32 %v2270, %v2238
        %v2287 = vadd.f32 %v2271, %v2241
        %v2288 = vadd.f32 %v2272, %v2246
        %v2289 = vadd.f32 %v2273, %v2249
        %v2290 = vadd.f32 %v2274, %v2254
        %v2291 = vadd.f32 %v2275, %v2257
        %2292 = vst [vmem:[#allocation3] sm:$0xff] %v2276
        %2293 = vst [vmem:[#allocation3 + $0x8] sm:$0xff] %v2277
        %2294 = vst [vmem:[#allocation3 + $0x10] sm:$0xff] %v2278
        %2295 = vst [vmem:[#allocation3 + $0x18] sm:$0xff] %v2279
        %2296 = vst [vmem:[#allocation3 + $0x20] sm:$0xff] %v2280
        %2297 = vst [vmem:[#allocation3 + $0x28] sm:$0xff] %v2281
        %2298 = vst [vmem:[#allocation3 + $0x30] sm:$0xff] %v2282
        %2299 = vst [vmem:[#allocation3 + $0x38] sm:$0xff] %v2283
        %2300 = vst [vmem:[#allocation3 + $0x40] sm:$0xff] %v2284
        %2301 = vst [vmem:[#allocation3 + $0x48] sm:$0xff] %v2285
        %2302 = vst [vmem:[#allocation3 + $0x50] sm:$0xff] %v2286
        %2303 = vst [vmem:[#allocation3 + $0x58] sm:$0xff] %v2287
        %2304 = vst [vmem:[#allocation3 + $0x60] sm:$0xff] %v2288
        %2305 = vst [vmem:[#allocation3 + $0x68] sm:$0xff] %v2289
        %2306 = vst [vmem:[#allocation3 + $0x70] sm:$0xff] %v2290
        %2307 = vst [vmem:[#allocation3 + $0x78] sm:$0xff] %v2291
        %s2308 = scalar_lea.vmem [#allocation2], 24
        %v2309 = vld [vmem:[%s2308] sm:$0xf]
        %v2310 = vld [vmem:[%s2308 + $0x4] sm:$0xf]
        %v2311 = vld [vmem:[%s2308 + $0x8] sm:$0x1]
        %v2312 = vld [vmem:[%s2308 + $0xc] sm:$0xf]
        %v2313 = vld [vmem:[%s2308 + $0x10] sm:$0xf]
        %v2314 = vld [vmem:[%s2308 + $0x14] sm:$0x1]
        %v2315 = vld [vmem:[%s2308 + $0x18] sm:$0xf]
        %v2316 = vld [vmem:[%s2308 + $0x1c] sm:$0xf]
        %v2317 = vld [vmem:[%s2308 + $0x20] sm:$0x1]
        %v2318 = vld [vmem:[%s2308 + $0x24] sm:$0xf]
        %v2319 = vld [vmem:[%s2308 + $0x28] sm:$0xf]
        %v2320 = vld [vmem:[%s2308 + $0x2c] sm:$0x1]
        %v2321 = vld [vmem:[%s2308 + $0x30] sm:$0xf]
        %v2322 = vld [vmem:[%s2308 + $0x34] sm:$0xf]
        %v2323 = vld [vmem:[%s2308 + $0x38] sm:$0x1]
        %v2324 = vld [vmem:[%s2308 + $0x3c] sm:$0xf]
        %v2325 = vld [vmem:[%s2308 + $0x40] sm:$0xf]
        %v2326 = vld [vmem:[%s2308 + $0x44] sm:$0x1]
        %v2327 = vld [vmem:[%s2308 + $0x48] sm:$0xf]
        %v2328 = vld [vmem:[%s2308 + $0x4c] sm:$0xf]
        %v2329 = vld [vmem:[%s2308 + $0x50] sm:$0x1]
        %v2330 = vld [vmem:[%s2308 + $0x54] sm:$0xf]
        %v2331 = vld [vmem:[%s2308 + $0x58] sm:$0xf]
        %v2332 = vld [vmem:[%s2308 + $0x5c] sm:$0x1]
        %v2349 = vunpack.c.l.b16 %v2309
        %v2350 = vunpack.c.l.b16 %v2310
        %v2351 = vunpack.c.l.b16 %v2312
        %v2352 = vunpack.c.l.b16 %v2313
        %v2353 = vunpack.c.l.b16 %v2315
        %v2354 = vunpack.c.l.b16 %v2316
        %v2355 = vunpack.c.l.b16 %v2318
        %v2356 = vunpack.c.l.b16 %v2319
        %v2357 = vunpack.c.l.b16 %v2321
        %v2358 = vunpack.c.l.b16 %v2322
        %v2359 = vunpack.c.l.b16 %v2324
        %v2360 = vunpack.c.l.b16 %v2325
        %v2361 = vunpack.c.l.b16 %v2327
        %v2362 = vunpack.c.l.b16 %v2328
        %v2363 = vunpack.c.l.b16 %v2330
        %v2364 = vunpack.c.l.b16 %v2331
        %v2365 = vpack.c.b16 %v2350, %v2349
        %v2366 = vpack.c.b16 %v2352, %v2351
        %v2367 = vpack.c.b16 %v2354, %v2353
        %v2368 = vpack.c.b16 %v2356, %v2355
        %v2369 = vpack.c.b16 %v2358, %v2357
        %v2370 = vpack.c.b16 %v2360, %v2359
        %v2371 = vpack.c.b16 %v2362, %v2361
        %v2372 = vpack.c.b16 %v2364, %v2363
        %v2389 = vunpack.c.l.b16 %v2311
        %v2390 = vunpack.c.l.b16 %v2314
        %v2391 = vunpack.c.l.b16 %v2317
        %v2392 = vunpack.c.l.b16 %v2320
        %v2393 = vunpack.c.l.b16 %v2323
        %v2394 = vunpack.c.l.b16 %v2326
        %v2395 = vunpack.c.l.b16 %v2329
        %v2396 = vunpack.c.l.b16 %v2332
        %v2397 = vpack.c.b16 %v2389, %v2389
        %v2398 = vpack.c.b16 %v2390, %v2390
        %v2399 = vpack.c.b16 %v2391, %v2391
        %v2400 = vpack.c.b16 %v2392, %v2392
        %v2401 = vpack.c.b16 %v2393, %v2393
        %v2402 = vpack.c.b16 %v2394, %v2394
        %v2403 = vpack.c.b16 %v2395, %v2395
        %v2404 = vpack.c.b16 %v2396, %v2396
        %v2406 = vshrl.u32 %v2365, 16
        %v2408 = vshll.u32 %v2365, 16
        %v2410 = vrot.slane %v2408, 1
        %v2411 = vor.u32 %v2406, %v2410
        %v2413 = vshll.u32 %v2397, 16
        %v2415 = vrot.slane %v2413, 1
        %v2416 = vsel %vm1101, %v2411, %v2415
        %v2418 = vshrl.u32 %v2366, 16
        %v2420 = vshll.u32 %v2366, 16
        %v2422 = vrot.slane %v2420, 1
        %v2423 = vor.u32 %v2418, %v2422
        %v2425 = vshll.u32 %v2398, 16
        %v2427 = vrot.slane %v2425, 1
        %v2428 = vsel %vm1101, %v2423, %v2427
        %v2430 = vshrl.u32 %v2367, 16
        %v2432 = vshll.u32 %v2367, 16
        %v2434 = vrot.slane %v2432, 1
        %v2435 = vor.u32 %v2430, %v2434
        %v2437 = vshll.u32 %v2399, 16
        %v2439 = vrot.slane %v2437, 1
        %v2440 = vsel %vm1101, %v2435, %v2439
        %v2442 = vshrl.u32 %v2368, 16
        %v2444 = vshll.u32 %v2368, 16
        %v2446 = vrot.slane %v2444, 1
        %v2447 = vor.u32 %v2442, %v2446
        %v2449 = vshll.u32 %v2400, 16
        %v2451 = vrot.slane %v2449, 1
        %v2452 = vsel %vm1101, %v2447, %v2451
        %v2454 = vshrl.u32 %v2369, 16
        %v2456 = vshll.u32 %v2369, 16
        %v2458 = vrot.slane %v2456, 1
        %v2459 = vor.u32 %v2454, %v2458
        %v2461 = vshll.u32 %v2401, 16
        %v2463 = vrot.slane %v2461, 1
        %v2464 = vsel %vm1101, %v2459, %v2463
        %v2466 = vshrl.u32 %v2370, 16
        %v2468 = vshll.u32 %v2370, 16
        %v2470 = vrot.slane %v2468, 1
        %v2471 = vor.u32 %v2466, %v2470
        %v2473 = vshll.u32 %v2402, 16
        %v2475 = vrot.slane %v2473, 1
        %v2476 = vsel %vm1101, %v2471, %v2475
        %v2478 = vshrl.u32 %v2371, 16
        %v2480 = vshll.u32 %v2371, 16
        %v2482 = vrot.slane %v2480, 1
        %v2483 = vor.u32 %v2478, %v2482
        %v2485 = vshll.u32 %v2403, 16
        %v2487 = vrot.slane %v2485, 1
        %v2488 = vsel %vm1101, %v2483, %v2487
        %v2490 = vshrl.u32 %v2372, 16
        %v2492 = vshll.u32 %v2372, 16
        %v2494 = vrot.slane %v2492, 1
        %v2495 = vor.u32 %v2490, %v2494
        %v2497 = vshll.u32 %v2404, 16
        %v2499 = vrot.slane %v2497, 1
        %v2500 = vsel %vm1101, %v2495, %v2499
        %v2509 = vrot.slane %v2365, 1
        %v2510 = vrot.slane %v2397, 1
        %v2511 = vsel %vm1206, %v2509, %v2510
        %v2512 = vrot.slane %v2366, 1
        %v2513 = vrot.slane %v2398, 1
        %v2514 = vsel %vm1206, %v2512, %v2513
        %v2515 = vrot.slane %v2367, 1
        %v2516 = vrot.slane %v2399, 1
        %v2517 = vsel %vm1206, %v2515, %v2516
        %v2518 = vrot.slane %v2368, 1
        %v2519 = vrot.slane %v2400, 1
        %v2520 = vsel %vm1206, %v2518, %v2519
        %v2521 = vrot.slane %v2369, 1
        %v2522 = vrot.slane %v2401, 1
        %v2523 = vsel %vm1206, %v2521, %v2522
        %v2524 = vrot.slane %v2370, 1
        %v2525 = vrot.slane %v2402, 1
        %v2526 = vsel %vm1206, %v2524, %v2525
        %v2527 = vrot.slane %v2371, 1
        %v2528 = vrot.slane %v2403, 1
        %v2529 = vsel %vm1206, %v2527, %v2528
        %v2530 = vrot.slane %v2372, 1
        %v2531 = vrot.slane %v2404, 1
        %v2532 = vsel %vm1206, %v2530, %v2531
        %s2541 = scalar_lea.vmem [#allocation7], 384
        %v2542 = vld [vmem:[%s2541] sm:$0xf]
        %v2543 = vld [vmem:[%s2541 + $0x4] sm:$0xf]
        %v2544 = vld [vmem:[%s2541 + $0x8] sm:$0xf]
        %v2545 = vld [vmem:[%s2541 + $0xc] sm:$0xf]
        %v2546 = vld [vmem:[%s2541 + $0x10] sm:$0xf]
        %v2547 = vld [vmem:[%s2541 + $0x14] sm:$0xf]
        %v2548 = vld [vmem:[%s2541 + $0x18] sm:$0xf]
        %v2549 = vld [vmem:[%s2541 + $0x1c] sm:$0xf]
        %v2550 = vld [vmem:[%s2541 + $0x20] sm:$0xf]
        %v2551 = vld [vmem:[%s2541 + $0x24] sm:$0xf]
        %v2552 = vld [vmem:[%s2541 + $0x28] sm:$0xf]
        %v2553 = vld [vmem:[%s2541 + $0x2c] sm:$0xf]
        %v2554 = vld [vmem:[%s2541 + $0x30] sm:$0xf]
        %v2555 = vld [vmem:[%s2541 + $0x34] sm:$0xf]
        %v2556 = vld [vmem:[%s2541 + $0x38] sm:$0xf]
        %v2557 = vld [vmem:[%s2541 + $0x3c] sm:$0xf]
        %v2558 = vld [vmem:[%s2541 + $0x40] sm:$0xf]
        %v2559 = vld [vmem:[%s2541 + $0x44] sm:$0xf]
        %v2560 = vld [vmem:[%s2541 + $0x48] sm:$0xf]
        %v2561 = vld [vmem:[%s2541 + $0x4c] sm:$0xf]
        %v2562 = vld [vmem:[%s2541 + $0x50] sm:$0xf]
        %v2563 = vld [vmem:[%s2541 + $0x54] sm:$0xf]
        %v2564 = vld [vmem:[%s2541 + $0x58] sm:$0xf]
        %v2565 = vld [vmem:[%s2541 + $0x5c] sm:$0xf]
        %v2566 = vld [vmem:[%s2541 + $0x60] sm:$0xf]
        %v2567 = vld [vmem:[%s2541 + $0x64] sm:$0xf]
        %v2568 = vld [vmem:[%s2541 + $0x68] sm:$0xf]
        %v2569 = vld [vmem:[%s2541 + $0x6c] sm:$0xf]
        %v2570 = vld [vmem:[%s2541 + $0x70] sm:$0xf]
        %v2571 = vld [vmem:[%s2541 + $0x74] sm:$0xf]
        %v2572 = vld [vmem:[%s2541 + $0x78] sm:$0xf]
        %v2573 = vld [vmem:[%s2541 + $0x7c] sm:$0xf]
        %v2574 = vld [vmem:[%s2541 + $0x80] sm:$0xf]
        %v2575 = vld [vmem:[%s2541 + $0x84] sm:$0xf]
        %v2576 = vld [vmem:[%s2541 + $0x88] sm:$0xf]
        %v2577 = vld [vmem:[%s2541 + $0x8c] sm:$0xf]
        %v2578 = vld [vmem:[%s2541 + $0x90] sm:$0xf]
        %v2579 = vld [vmem:[%s2541 + $0x94] sm:$0xf]
        %v2580 = vld [vmem:[%s2541 + $0x98] sm:$0xf]
        %v2581 = vld [vmem:[%s2541 + $0x9c] sm:$0xf]
        %v2582 = vld [vmem:[%s2541 + $0xa0] sm:$0xf]
        %v2583 = vld [vmem:[%s2541 + $0xa4] sm:$0xf]
        %v2584 = vld [vmem:[%s2541 + $0xa8] sm:$0xf]
        %v2585 = vld [vmem:[%s2541 + $0xac] sm:$0xf]
        %v2586 = vld [vmem:[%s2541 + $0xb0] sm:$0xf]
        %v2587 = vld [vmem:[%s2541 + $0xb4] sm:$0xf]
        %v2588 = vld [vmem:[%s2541 + $0xb8] sm:$0xf]
        %v2589 = vld [vmem:[%s2541 + $0xbc] sm:$0xf]
        %v2638 = vunpack.c.l.b16 %v2542
        %v2639 = vunpack.c.l.b16 %v2543
        %v2640 = vunpack.c.l.b16 %v2544
        %v2641 = vunpack.c.l.b16 %v2545
        %v2642 = vunpack.c.l.b16 %v2546
        %v2643 = vunpack.c.l.b16 %v2547
        %v2644 = vunpack.c.l.b16 %v2548
        %v2645 = vunpack.c.l.b16 %v2549
        %v2646 = vunpack.c.l.b16 %v2550
        %v2647 = vunpack.c.l.b16 %v2551
        %v2648 = vunpack.c.l.b16 %v2552
        %v2649 = vunpack.c.l.b16 %v2553
        %v2650 = vunpack.c.l.b16 %v2554
        %v2651 = vunpack.c.l.b16 %v2555
        %v2652 = vunpack.c.l.b16 %v2556
        %v2653 = vunpack.c.l.b16 %v2557
        %v2654 = vunpack.c.l.b16 %v2558
        %v2655 = vunpack.c.l.b16 %v2559
        %v2656 = vunpack.c.l.b16 %v2560
        %v2657 = vunpack.c.l.b16 %v2561
        %v2658 = vunpack.c.l.b16 %v2562
        %v2659 = vunpack.c.l.b16 %v2563
        %v2660 = vunpack.c.l.b16 %v2564
        %v2661 = vunpack.c.l.b16 %v2565
        %v2662 = vunpack.c.l.b16 %v2566
        %v2663 = vunpack.c.l.b16 %v2567
        %v2664 = vunpack.c.l.b16 %v2568
        %v2665 = vunpack.c.l.b16 %v2569
        %v2666 = vunpack.c.l.b16 %v2570
        %v2667 = vunpack.c.l.b16 %v2571
        %v2668 = vunpack.c.l.b16 %v2572
        %v2669 = vunpack.c.l.b16 %v2573
        %v2670 = vunpack.c.l.b16 %v2574
        %v2671 = vunpack.c.l.b16 %v2575
        %v2672 = vunpack.c.l.b16 %v2576
        %v2673 = vunpack.c.l.b16 %v2577
        %v2674 = vunpack.c.l.b16 %v2578
        %v2675 = vunpack.c.l.b16 %v2579
        %v2676 = vunpack.c.l.b16 %v2580
        %v2677 = vunpack.c.l.b16 %v2581
        %v2678 = vunpack.c.l.b16 %v2582
        %v2679 = vunpack.c.l.b16 %v2583
        %v2680 = vunpack.c.l.b16 %v2584
        %v2681 = vunpack.c.l.b16 %v2585
        %v2682 = vunpack.c.l.b16 %v2586
        %v2683 = vunpack.c.l.b16 %v2587
        %v2684 = vunpack.c.l.b16 %v2588
        %v2685 = vunpack.c.l.b16 %v2589
        %v2686 = vpack.c.b16 %v2639, %v2638
        %v2687 = vpack.c.b16 %v2641, %v2640
        %v2688 = vpack.c.b16 %v2643, %v2642
        %v2689 = vpack.c.b16 %v2645, %v2644
        %v2690 = vpack.c.b16 %v2647, %v2646
        %v2691 = vpack.c.b16 %v2649, %v2648
        %v2692 = vpack.c.b16 %v2651, %v2650
        %v2693 = vpack.c.b16 %v2653, %v2652
        %v2694 = vpack.c.b16 %v2655, %v2654
        %v2695 = vpack.c.b16 %v2657, %v2656
        %v2696 = vpack.c.b16 %v2659, %v2658
        %v2697 = vpack.c.b16 %v2661, %v2660
        %v2698 = vpack.c.b16 %v2663, %v2662
        %v2699 = vpack.c.b16 %v2665, %v2664
        %v2700 = vpack.c.b16 %v2667, %v2666
        %v2701 = vpack.c.b16 %v2669, %v2668
        %v2702 = vpack.c.b16 %v2671, %v2670
        %v2703 = vpack.c.b16 %v2673, %v2672
        %v2704 = vpack.c.b16 %v2675, %v2674
        %v2705 = vpack.c.b16 %v2677, %v2676
        %v2706 = vpack.c.b16 %v2679, %v2678
        %v2707 = vpack.c.b16 %v2681, %v2680
        %v2708 = vpack.c.b16 %v2683, %v2682
        %v2709 = vpack.c.b16 %v2685, %v2684
        %2734 = vmatprep.subr.bf16.mxu0 0
        %2735 = vmatpush1.bf16.msra.mxu0 %v2686
        %2736 = vmatprep.subr.bf16.mxu0 0
        %2737 = vmatpush1.bf16.msra.mxu0 %v2687
        %2738 = vmatprep.subr.bf16.mxu0 0
        %2739 = vmatpush1.bf16.msra.mxu0 %v2688
        %2740 = vmatprep.subr.bf16.mxu0 0
        %2741 = vmatpush1.bf16.msra.mxu0 %v2689
        %2742 = vmatprep.subr.bf16.mxu0 0
        %2743 = vmatpush1.bf16.msra.mxu0 %v2690
        %2744 = vmatprep.subr.bf16.mxu0 0
        %2745 = vmatpush1.bf16.msra.mxu0 %v2691
        %2746 = vmatprep.subr.bf16.mxu0 0
        %2747 = vmatpush1.bf16.msra.mxu0 %v2692
        %2748 = vmatprep.subr.bf16.mxu0 0
        %2749 = vmatpush1.bf16.msra.mxu0 %v2693
        %2750 = vmatprep.subr.bf16.mxu0 0
        %2751 = vmatpush1.bf16.msra.mxu0 %v2694
        %2752 = vmatprep.subr.bf16.mxu0 0
        %2753 = vmatpush1.bf16.msra.mxu0 %v2695
        %2754 = vmatprep.subr.bf16.mxu0 0
        %2755 = vmatpush1.bf16.msra.mxu0 %v2696
        %2756 = vmatprep.subr.bf16.mxu0 0
        %2757 = vmatpush1.bf16.msra.mxu0 %v2697
        %2758 = vmatprep.subr.bf16.mxu0 0
        %2759 = vmatpush1.bf16.msra.mxu0 %v2698
        %2760 = vmatprep.subr.bf16.mxu0 0
        %2761 = vmatpush1.bf16.msra.mxu0 %v2699
        %2762 = vmatprep.subr.bf16.mxu0 0
        %2763 = vmatpush1.bf16.msra.mxu0 %v2700
        %2764 = vmatprep.subr.bf16.mxu0 0
        %2765 = vmatpush1.bf16.msra.mxu0 %v2701
        %2766 = vmatprep.mubr.bf16.mxu0 %v2416
        %2767 = vmatmul.mubr.bf16.gmra.mrb[0].mxu0 %v2365
        %v2768 = vpop.f32.mrb[0].mxu0
        %v2769 = vadd.f32 0.0, %v2768
        %v2770 = vpop.f32.mrb[0].mxu0
        %v2771 = vpop.f32.mrb[0].mxu0
        %v2772 = vadd.f32 0.0, %v2771
        %v2773 = vpop.f32.mrb[0].mxu0
        %2774 = vmatprep.mubr.bf16.mxu0 %v2428
        %2775 = vmatmul.mubr.bf16.gmra.mrb[0].mxu0 %v2366
        %v2776 = vpop.f32.mrb[0].mxu0
        %v2777 = vadd.f32 0.0, %v2776
        %v2778 = vpop.f32.mrb[0].mxu0
        %v2779 = vpop.f32.mrb[0].mxu0
        %v2780 = vadd.f32 0.0, %v2779
        %v2781 = vpop.f32.mrb[0].mxu0
        %2782 = vmatprep.mubr.bf16.mxu0 %v2440
        %2783 = vmatmul.mubr.bf16.gmra.mrb[0].mxu0 %v2367
        %v2784 = vpop.f32.mrb[0].mxu0
        %v2785 = vadd.f32 0.0, %v2784
        %v2786 = vpop.f32.mrb[0].mxu0
        %v2787 = vpop.f32.mrb[0].mxu0
        %v2788 = vadd.f32 0.0, %v2787
        %v2789 = vpop.f32.mrb[0].mxu0
        %2790 = vmatprep.mubr.bf16.mxu0 %v2452
        %2791 = vmatmul.mubr.bf16.gmra.mrb[0].mxu0 %v2368
        %v2792 = vpop.f32.mrb[0].mxu0
        %v2793 = vadd.f32 0.0, %v2792
        %v2794 = vpop.f32.mrb[0].mxu0
        %v2795 = vpop.f32.mrb[0].mxu0
        %v2796 = vadd.f32 0.0, %v2795
        %v2797 = vpop.f32.mrb[0].mxu0
        %2798 = vmatprep.mubr.bf16.mxu0 %v2464
        %2799 = vmatmul.mubr.bf16.gmra.mrb[0].mxu0 %v2369
        %v2800 = vpop.f32.mrb[0].mxu0
        %v2801 = vadd.f32 0.0, %v2800
        %v2802 = vpop.f32.mrb[0].mxu0
        %v2803 = vpop.f32.mrb[0].mxu0
        %v2804 = vadd.f32 0.0, %v2803
        %v2805 = vpop.f32.mrb[0].mxu0
        %2806 = vmatprep.mubr.bf16.mxu0 %v2476
        %2807 = vmatmul.mubr.bf16.gmra.mrb[0].mxu0 %v2370
        %v2808 = vpop.f32.mrb[0].mxu0
        %v2809 = vadd.f32 0.0, %v2808
        %v2810 = vpop.f32.mrb[0].mxu0
        %v2811 = vpop.f32.mrb[0].mxu0
        %v2812 = vadd.f32 0.0, %v2811
        %v2813 = vpop.f32.mrb[0].mxu0
        %2814 = vmatprep.mubr.bf16.mxu0 %v2488
        %2815 = vmatmul.mubr.bf16.gmra.mrb[0].mxu0 %v2371
        %v2816 = vpop.f32.mrb[0].mxu0
        %v2817 = vadd.f32 0.0, %v2816
        %v2818 = vpop.f32.mrb[0].mxu0
        %v2819 = vpop.f32.mrb[0].mxu0
        %v2820 = vadd.f32 0.0, %v2819
        %v2821 = vpop.f32.mrb[0].mxu0
        %2822 = vmatprep.mubr.bf16.mxu0 %v2500
        %2823 = vmatmul.mubr.bf16.gmra.mrb[0].mxu0 %v2372
        %v2824 = vpop.f32.mrb[0].mxu0
        %v2825 = vadd.f32 0.0, %v2824
        %v2826 = vpop.f32.mrb[0].mxu0
        %v2827 = vpop.f32.mrb[0].mxu0
        %v2828 = vadd.f32 0.0, %v2827
        %v2829 = vpop.f32.mrb[0].mxu0
        %2830 = vdwg.mxu0
        %2831 = vmatprep.subr.bf16.mxu0 0
        %2832 = vmatpush1.bf16.msra.mxu0 %v2702
        %2833 = vmatprep.subr.bf16.mxu0 0
        %2834 = vmatpush1.bf16.msra.mxu0 %v2703
        %2835 = vmatprep.subr.bf16.mxu0 0
        %2836 = vmatpush1.bf16.msra.mxu0 %v2704
        %2837 = vmatprep.subr.bf16.mxu0 0
        %2838 = vmatpush1.bf16.msra.mxu0 %v2705
        %2839 = vmatprep.subr.bf16.mxu0 0
        %2840 = vmatpush1.bf16.msra.mxu0 %v2706
        %2841 = vmatprep.subr.bf16.mxu0 0
        %2842 = vmatpush1.bf16.msra.mxu0 %v2707
        %2843 = vmatprep.subr.bf16.mxu0 0
        %2844 = vmatpush1.bf16.msra.mxu0 %v2708
        %2845 = vmatprep.subr.bf16.mxu0 0
        %2846 = vmatpush1.bf16.msra.mxu0 %v2709
        %2847 = vmatprep.subr.bf16.mxu0 0
        %2848 = vmatpush1.bf16.msra.mxu0 0
        %2849 = vmatprep.subr.bf16.mxu0 0
        %2850 = vmatpush1.bf16.msra.mxu0 0
        %2851 = vmatprep.subr.bf16.mxu0 0
        %2852 = vmatpush1.bf16.msra.mxu0 0
        %2853 = vmatprep.subr.bf16.mxu0 0
        %2854 = vmatpush1.bf16.msra.mxu0 0
        %2855 = vmatprep.subr.bf16.mxu0 0
        %2856 = vmatpush1.bf16.msra.mxu0 0
        %2857 = vmatprep.subr.bf16.mxu0 0
        %2858 = vmatpush1.bf16.msra.mxu0 0
        %2859 = vmatprep.subr.bf16.mxu0 0
        %2860 = vmatpush1.bf16.msra.mxu0 0
        %2861 = vmatprep.subr.bf16.mxu0 0
        %2862 = vmatpush1.bf16.msra.mxu0 0
        %2863 = vmatprep.mubr.bf16.mxu0 0
        %2864 = vmatmul.mubr.bf16.gmra.mrb[0].mxu0 %v2511
        %v2865 = vpop.f32.mrb[0].mxu0
        %v2866 = vadd.f32 %v2769, %v2865
        %v2867 = vpop.f32.mrb[0].mxu0
        %v2868 = vpop.f32.mrb[0].mxu0
        %v2869 = vadd.f32 %v2772, %v2868
        %v2870 = vpop.f32.mrb[0].mxu0
        %2871 = vmatprep.mubr.bf16.mxu0 0
        %2872 = vmatmul.mubr.bf16.gmra.mrb[0].mxu0 %v2514
        %v2873 = vpop.f32.mrb[0].mxu0
        %v2874 = vadd.f32 %v2777, %v2873
        %v2875 = vpop.f32.mrb[0].mxu0
        %v2876 = vpop.f32.mrb[0].mxu0
        %v2877 = vadd.f32 %v2780, %v2876
        %v2878 = vpop.f32.mrb[0].mxu0
        %2879 = vmatprep.mubr.bf16.mxu0 0
        %2880 = vmatmul.mubr.bf16.gmra.mrb[0].mxu0 %v2517
        %v2881 = vpop.f32.mrb[0].mxu0
        %v2882 = vadd.f32 %v2785, %v2881
        %v2883 = vpop.f32.mrb[0].mxu0
        %v2884 = vpop.f32.mrb[0].mxu0
        %v2885 = vadd.f32 %v2788, %v2884
        %v2886 = vpop.f32.mrb[0].mxu0
        %2887 = vmatprep.mubr.bf16.mxu0 0
        %2888 = vmatmul.mubr.bf16.gmra.mrb[0].mxu0 %v2520
        %v2889 = vpop.f32.mrb[0].mxu0
        %v2890 = vadd.f32 %v2793, %v2889
        %v2891 = vpop.f32.mrb[0].mxu0
        %v2892 = vpop.f32.mrb[0].mxu0
        %v2893 = vadd.f32 %v2796, %v2892
        %v2894 = vpop.f32.mrb[0].mxu0
        %2895 = vmatprep.mubr.bf16.mxu0 0
        %2896 = vmatmul.mubr.bf16.gmra.mrb[0].mxu0 %v2523
        %v2897 = vpop.f32.mrb[0].mxu0
        %v2898 = vadd.f32 %v2801, %v2897
        %v2899 = vpop.f32.mrb[0].mxu0
        %v2900 = vpop.f32.mrb[0].mxu0
        %v2901 = vadd.f32 %v2804, %v2900
        %v2902 = vpop.f32.mrb[0].mxu0
        %2903 = vmatprep.mubr.bf16.mxu0 0
        %2904 = vmatmul.mubr.bf16.gmra.mrb[0].mxu0 %v2526
        %v2905 = vpop.f32.mrb[0].mxu0
        %v2906 = vadd.f32 %v2809, %v2905
        %v2907 = vpop.f32.mrb[0].mxu0
        %v2908 = vpop.f32.mrb[0].mxu0
        %v2909 = vadd.f32 %v2812, %v2908
        %v2910 = vpop.f32.mrb[0].mxu0
        %2911 = vmatprep.mubr.bf16.mxu0 0
        %2912 = vmatmul.mubr.bf16.gmra.mrb[0].mxu0 %v2529
        %v2913 = vpop.f32.mrb[0].mxu0
        %v2914 = vadd.f32 %v2817, %v2913
        %v2915 = vpop.f32.mrb[0].mxu0
        %v2916 = vpop.f32.mrb[0].mxu0
        %v2917 = vadd.f32 %v2820, %v2916
        %v2918 = vpop.f32.mrb[0].mxu0
        %2919 = vmatprep.mubr.bf16.mxu0 0
        %2920 = vmatmul.mubr.bf16.gmra.mrb[0].mxu0 %v2532
        %v2921 = vpop.f32.mrb[0].mxu0
        %v2922 = vadd.f32 %v2825, %v2921
        %v2923 = vpop.f32.mrb[0].mxu0
        %v2924 = vpop.f32.mrb[0].mxu0
        %v2925 = vadd.f32 %v2828, %v2924
        %v2926 = vpop.f32.mrb[0].mxu0
        %2927 = vdwg.mxu0
        %v2928 = vld [vmem:[#allocation3] sm:$0xff]
        %v2929 = vld [vmem:[#allocation3 + $0x8] sm:$0xff]
        %v2930 = vld [vmem:[#allocation3 + $0x10] sm:$0xff]
        %v2931 = vld [vmem:[#allocation3 + $0x18] sm:$0xff]
        %v2932 = vld [vmem:[#allocation3 + $0x20] sm:$0xff]
        %v2933 = vld [vmem:[#allocation3 + $0x28] sm:$0xff]
        %v2934 = vld [vmem:[#allocation3 + $0x30] sm:$0xff]
        %v2935 = vld [vmem:[#allocation3 + $0x38] sm:$0xff]
        %v2936 = vld [vmem:[#allocation3 + $0x40] sm:$0xff]
        %v2937 = vld [vmem:[#allocation3 + $0x48] sm:$0xff]
        %v2938 = vld [vmem:[#allocation3 + $0x50] sm:$0xff]
        %v2939 = vld [vmem:[#allocation3 + $0x58] sm:$0xff]
        %v2940 = vld [vmem:[#allocation3 + $0x60] sm:$0xff]
        %v2941 = vld [vmem:[#allocation3 + $0x68] sm:$0xff]
        %v2942 = vld [vmem:[#allocation3 + $0x70] sm:$0xff]
        %v2943 = vld [vmem:[#allocation3 + $0x78] sm:$0xff]
        %v2944 = vadd.f32 %v2928, %v2866
        %v2945 = vadd.f32 %v2929, %v2869
        %v2946 = vadd.f32 %v2930, %v2874
        %v2947 = vadd.f32 %v2931, %v2877
        %v2948 = vadd.f32 %v2932, %v2882
        %v2949 = vadd.f32 %v2933, %v2885
        %v2950 = vadd.f32 %v2934, %v2890
        %v2951 = vadd.f32 %v2935, %v2893
        %v2952 = vadd.f32 %v2936, %v2898
        %v2953 = vadd.f32 %v2937, %v2901
        %v2954 = vadd.f32 %v2938, %v2906
        %v2955 = vadd.f32 %v2939, %v2909
        %v2956 = vadd.f32 %v2940, %v2914
        %v2957 = vadd.f32 %v2941, %v2917
        %v2958 = vadd.f32 %v2942, %v2922
        %v2959 = vadd.f32 %v2943, %v2925
        %2960 = vst [vmem:[#allocation3] sm:$0xff] %v2944
        %2961 = vst [vmem:[#allocation3 + $0x8] sm:$0xff] %v2945
        %2962 = vst [vmem:[#allocation3 + $0x10] sm:$0xff] %v2946
        %2963 = vst [vmem:[#allocation3 + $0x18] sm:$0xff] %v2947
        %2964 = vst [vmem:[#allocation3 + $0x20] sm:$0xff] %v2948
        %2965 = vst [vmem:[#allocation3 + $0x28] sm:$0xff] %v2949
        %2966 = vst [vmem:[#allocation3 + $0x30] sm:$0xff] %v2950
        %2967 = vst [vmem:[#allocation3 + $0x38] sm:$0xff] %v2951
        %2968 = vst [vmem:[#allocation3 + $0x40] sm:$0xff] %v2952
        %2969 = vst [vmem:[#allocation3 + $0x48] sm:$0xff] %v2953
        %2970 = vst [vmem:[#allocation3 + $0x50] sm:$0xff] %v2954
        %2971 = vst [vmem:[#allocation3 + $0x58] sm:$0xff] %v2955
        %2972 = vst [vmem:[#allocation3 + $0x60] sm:$0xff] %v2956
        %2973 = vst [vmem:[#allocation3 + $0x68] sm:$0xff] %v2957
        %2974 = vst [vmem:[#allocation3 + $0x70] sm:$0xff] %v2958
        %2975 = vst [vmem:[#allocation3 + $0x78] sm:$0xff] %v2959
        %v2976 = vld [vmem:[#allocation3] sm:$0xff]
        %v2977 = vld [vmem:[#allocation3 + $0x8] sm:$0xff]
        %v2978 = vld [vmem:[#allocation3 + $0x10] sm:$0xff]
        %v2979 = vld [vmem:[#allocation3 + $0x18] sm:$0xff]
        %v2980 = vld [vmem:[#allocation3 + $0x20] sm:$0xff]
        %v2981 = vld [vmem:[#allocation3 + $0x28] sm:$0xff]
        %v2982 = vld [vmem:[#allocation3 + $0x30] sm:$0xff]
        %v2983 = vld [vmem:[#allocation3 + $0x38] sm:$0xff]
        %v2984 = vld [vmem:[#allocation3 + $0x40] sm:$0xff]
        %v2985 = vld [vmem:[#allocation3 + $0x48] sm:$0xff]
        %v2986 = vld [vmem:[#allocation3 + $0x50] sm:$0xff]
        %v2987 = vld [vmem:[#allocation3 + $0x58] sm:$0xff]
        %v2988 = vld [vmem:[#allocation3 + $0x60] sm:$0xff]
        %v2989 = vld [vmem:[#allocation3 + $0x68] sm:$0xff]
        %v2990 = vld [vmem:[#allocation3 + $0x70] sm:$0xff]
        %v2991 = vld [vmem:[#allocation3 + $0x78] sm:$0xff]
        %v2992 = vld [vmem:[%s3] sm:$0x1]
        %v2994 = vlaneseq
        %v2995 = vshrl.u32 %v2994, 7
        %v2996 = vsub.s32 0, %v2995
        %v2997 = vrot.slane %v2992, %v2996
        %v2999 = vadd.f32 %v2976, %v2997
        %v3000 = vadd.f32 %v2977, %v2997
        %v3001 = vadd.f32 %v2978, %v2997
        %v3002 = vadd.f32 %v2979, %v2997
        %v3003 = vadd.f32 %v2980, %v2997
        %v3004 = vadd.f32 %v2981, %v2997
        %v3005 = vadd.f32 %v2982, %v2997
        %v3006 = vadd.f32 %v2983, %v2997
        %v3007 = vadd.f32 %v2984, %v2997
        %v3008 = vadd.f32 %v2985, %v2997
        %v3009 = vadd.f32 %v2986, %v2997
        %v3010 = vadd.f32 %v2987, %v2997
        %v3011 = vadd.f32 %v2988, %v2997
        %v3012 = vadd.f32 %v2989, %v2997
        %v3013 = vadd.f32 %v2990, %v2997
        %v3014 = vadd.f32 %v2991, %v2997
        %v3015 = vadd.f32 %v2999, %v3000
        %v3016 = vadd.f32 %v3015, %v3001
        %v3017 = vadd.f32 %v3016, %v3002
        %v3018 = vadd.f32 %v3017, %v3003
        %v3019 = vadd.f32 %v3018, %v3004
        %v3020 = vadd.f32 %v3019, %v3005
        %v3021 = vadd.f32 %v3020, %v3006
        %v3022 = vadd.f32 %v3021, %v3007
        %v3023 = vadd.f32 %v3022, %v3008
        %v3024 = vadd.f32 %v3023, %v3009
        %v3025 = vadd.f32 %v3024, %v3010
        %v3026 = vadd.f32 %v3025, %v3011
        %v3027 = vadd.f32 %v3026, %v3012
        %v3028 = vadd.f32 %v3027, %v3013
        %v3029 = vadd.f32 %v3028, %v3014
        %v3030 = vrot.slane %v3029, 4
        %v3031 = vadd.f32 %v3029, %v3030
        %v3032 = vrot.slane %v3031, 2
        %v3033 = vadd.f32 %v3031, %v3032
        %v3034 = vrot.slane %v3033, 1
        %v3035 = vadd.f32 %v3033, %v3034
        %v3036 = vmul.f32 %v2999, %v2999
        %v3037 = vmul.f32 %v3000, %v3000
        %v3038 = vmul.f32 %v3001, %v3001
        %v3039 = vmul.f32 %v3002, %v3002
        %v3040 = vmul.f32 %v3003, %v3003
        %v3041 = vmul.f32 %v3004, %v3004
        %v3042 = vmul.f32 %v3005, %v3005
        %v3043 = vmul.f32 %v3006, %v3006
        %v3044 = vmul.f32 %v3007, %v3007
        %v3045 = vmul.f32 %v3008, %v3008
        %v3046 = vmul.f32 %v3009, %v3009
        %v3047 = vmul.f32 %v3010, %v3010
        %v3048 = vmul.f32 %v3011, %v3011
        %v3049 = vmul.f32 %v3012, %v3012
        %v3050 = vmul.f32 %v3013, %v3013
        %v3051 = vmul.f32 %v3014, %v3014
        %v3052 = vadd.f32 %v3036, %v3037
        %v3053 = vadd.f32 %v3052, %v3038
        %v3054 = vadd.f32 %v3053, %v3039
        %v3055 = vadd.f32 %v3054, %v3040
        %v3056 = vadd.f32 %v3055, %v3041
        %v3057 = vadd.f32 %v3056, %v3042
        %v3058 = vadd.f32 %v3057, %v3043
        %v3059 = vadd.f32 %v3058, %v3044
        %v3060 = vadd.f32 %v3059, %v3045
        %v3061 = vadd.f32 %v3060, %v3046
        %v3062 = vadd.f32 %v3061, %v3047
        %v3063 = vadd.f32 %v3062, %v3048
        %v3064 = vadd.f32 %v3063, %v3049
        %v3065 = vadd.f32 %v3064, %v3050
        %v3066 = vadd.f32 %v3065, %v3051
        %v3067 = vrot.slane %v3066, 4
        %v3068 = vadd.f32 %v3066, %v3067
        %v3069 = vrot.slane %v3068, 2
        %v3070 = vadd.f32 %v3068, %v3069
        %v3071 = vrot.slane %v3070, 1
        %v3072 = vadd.f32 %v3070, %v3071
        %vm3073 = vcmask 1040384
        %v3074 = vsel %vm3073, %v3035, %v3072
        %3075 = vst [vmem:[%s486] sm:$0x3] %v3074
        %v3076 = vpack.c.bf16 %v3000, %v2999
        %v3077 = vpack.c.bf16 %v3002, %v3001
        %v3078 = vpack.c.bf16 %v3004, %v3003
        %v3079 = vpack.c.bf16 %v3006, %v3005
        %v3080 = vpack.c.bf16 %v3008, %v3007
        %v3081 = vpack.c.bf16 %v3010, %v3009
        %v3082 = vpack.c.bf16 %v3012, %v3011
        %v3083 = vpack.c.bf16 %v3014, %v3013
        %v3092 = vunpack.c.l.b16 %v3076
        %v3093 = vunpack.c.h.b16 %v3076
        %v3094 = vunpack.c.l.b16 %v3077
        %v3095 = vunpack.c.h.b16 %v3077
        %v3096 = vunpack.c.l.b16 %v3078
        %v3097 = vunpack.c.h.b16 %v3078
        %v3098 = vunpack.c.l.b16 %v3079
        %v3099 = vunpack.c.h.b16 %v3079
        %v3100 = vunpack.c.l.b16 %v3080
        %v3101 = vunpack.c.h.b16 %v3080
        %v3102 = vunpack.c.l.b16 %v3081
        %v3103 = vunpack.c.h.b16 %v3081
        %v3104 = vunpack.c.l.b16 %v3082
        %v3105 = vunpack.c.h.b16 %v3082
        %v3106 = vunpack.c.l.b16 %v3083
        %v3107 = vunpack.c.h.b16 %v3083
        %v3108 = vpack.c.b16 %v3092, %v3092
        %v3109 = vpack.c.b16 %v3093, %v3093
        %v3110 = vpack.c.b16 %v3094, %v3094
        %v3111 = vpack.c.b16 %v3095, %v3095
        %v3112 = vpack.c.b16 %v3096, %v3096
        %v3113 = vpack.c.b16 %v3097, %v3097
        %v3114 = vpack.c.b16 %v3098, %v3098
        %v3115 = vpack.c.b16 %v3099, %v3099
        %v3116 = vpack.c.b16 %v3100, %v3100
        %v3117 = vpack.c.b16 %v3101, %v3101
        %v3118 = vpack.c.b16 %v3102, %v3102
        %v3119 = vpack.c.b16 %v3103, %v3103
        %v3120 = vpack.c.b16 %v3104, %v3104
        %v3121 = vpack.c.b16 %v3105, %v3105
        %v3122 = vpack.c.b16 %v3106, %v3106
        %v3123 = vpack.c.b16 %v3107, %v3107
        %3140 = vst [vmem:[%s479] sm:$0xf] %v3108
        %3141 = vst [vmem:[%s479 + $0x4] sm:$0xf] %v3109
        %3142 = vst [vmem:[%s479 + $0x8] sm:$0xf] %v3110
        %3143 = vst [vmem:[%s479 + $0xc] sm:$0xf] %v3111
        %3144 = vst [vmem:[%s479 + $0x10] sm:$0xf] %v3112
        %3145 = vst [vmem:[%s479 + $0x14] sm:$0xf] %v3113
        %3146 = vst [vmem:[%s479 + $0x18] sm:$0xf] %v3114
        %3147 = vst [vmem:[%s479 + $0x1c] sm:$0xf] %v3115
        %3148 = vst [vmem:[%s479 + $0x20] sm:$0xf] %v3116
        %3149 = vst [vmem:[%s479 + $0x24] sm:$0xf] %v3117
        %3150 = vst [vmem:[%s479 + $0x28] sm:$0xf] %v3118
        %3151 = vst [vmem:[%s479 + $0x2c] sm:$0xf] %v3119
        %3152 = vst [vmem:[%s479 + $0x30] sm:$0xf] %v3120
        %3153 = vst [vmem:[%s479 + $0x34] sm:$0xf] %v3121
        %3154 = vst [vmem:[%s479 + $0x38] sm:$0xf] %v3122
        %3155 = vst [vmem:[%s479 + $0x3c] sm:$0xf] %v3123
        %s3156 = sand.u32 %s234, 1
        %s3157 = scalar_lea.sflag [#allocation6], %s3156
        %s3158 = sand.u32 %s234, 1
        %s3159 = smul.addr %s3158, 64
        %s3160 = scalar_lea.vmem [#allocation12], %s3159
        %s3161 = sand.u32 %s262, 1
        %s3162 = scalar_lea.sflag [#allocation14], %s3161
        %s3163 = sand.u32 %s262, 1
        %s3164 = smul.addr %s3163, 2
        %s3165 = scalar_lea.vmem [#allocation13], %s3164
        // Predicated region
        $region69: #{tpu_custom_call.1} parent=47 // pred_check
          %p3166 = pneg %p244
        $region70: #{tpu_custom_call.1} parent=47 // pred_check_branch
          %3168 = sbr.rel (%p3166) target = $region72
        $region71: #{tpu_custom_call.1} parent=47 // pred_region
          %s3169 = smul.u32 8, %s33
          %s3171 = ssub.s32 1024, 1024
          %3172 = vsyncadd %s3157, %s3171
          %s3173 = smul.addr %s3169, 2
          %s3174 = smul.addr %s32, 32
          %s3175 = sadd.s32 %s3173, %s3174
          %s3176 = smul.addr %s3175, 64
          %s3177 = scalar_lea.hbm %s7, %s3176
          %s3178 = sshll.u32 %s3160, 4
          %s3179 = int_to_ptr.vmem [resolvable:$true] %s3178
          %3184 = dma.vmem_to_hbm [thread:$0]  %s3179, 1024, %s3177, %s3157, 64, 64, 4
        $region72: #{tpu_custom_call.1} parent=47 // pred_fallthru
          _
        // Predicated region
        $region73: #{tpu_custom_call.1} parent=47 // pred_check
          %p3185 = pneg %p272
        $region74: #{tpu_custom_call.1} parent=47 // pred_check_branch
          %3187 = sbr.rel (%p3185) target = $region76
        $region75: #{tpu_custom_call.1} parent=47 // pred_region
          %s3189 = ssub.s32 32, 32
          %3190 = vsyncadd %s3162, %s3189
          %s3191 = smul.addr %s32, 2
          %s3192 = sadd.s32 %s33, %s3191
          %s3193 = smul.addr %s3192, 32
          %s3194 = scalar_lea.hbm %s8, %s3193
          %s3196 = sshll.u32 %s3165, 4
          %s3197 = int_to_ptr.vmem [resolvable:$true] %s3196
          %3199 = dma.vmem_to_hbm [thread:$0]  %s3197, 32, %s3194, %s3162
        $region76: #{tpu_custom_call.1} parent=47 // pred_fallthru
          _
      $region48: #{tpu_custom_call.1} parent=5 // pred_fallthru
        _
      %p3200 = scmp.le.s32.totalorder 2, %s23
      // Predicated region
      $region77: #{tpu_custom_call.1} parent=5 // pred_check
        %p3201 = pneg %p3200
      $region78: #{tpu_custom_call.1} parent=5 // pred_check_branch
        %3203 = sbr.rel (%p3201) target = $region80
      $region79: #{tpu_custom_call.1} parent=5 // pred_region
        %s3204 = ssub.s32 %s23, 2
        // Predicated region
        $region81: #{tpu_custom_call.1} parent=79 // pred_check
          %p3205 = pneg %p250
        $region82: #{tpu_custom_call.1} parent=79 // pred_check_branch
          %3207 = sbr.rel (%p3205) target = $region84
        $region83: #{tpu_custom_call.1} parent=79 // pred_region
          %s3208 = sand.u32 %s235, 1
          %s3209 = scalar_lea.sflag [#allocation6], %s3208
          %s3210 = sand.u32 %s235, 1
          %s3211 = smul.addr %s3210, 64
          %s3212 = scalar_lea.vmem [#allocation12], %s3211
          %3213 = dma.done %s3209, 1024
        $region84: #{tpu_custom_call.1} parent=79 // pred_fallthru
          _
        // Predicated region
        $region85: #{tpu_custom_call.1} parent=79 // pred_check
          %p3214 = pneg %p278
        $region86: #{tpu_custom_call.1} parent=79 // pred_check_branch
          %3216 = sbr.rel (%p3214) target = $region88
        $region87: #{tpu_custom_call.1} parent=79 // pred_region
          %s3217 = sand.u32 %s263, 1
          %s3218 = scalar_lea.sflag [#allocation14], %s3217
          %s3219 = sand.u32 %s263, 1
          %s3220 = smul.addr %s3219, 2
          %s3221 = scalar_lea.vmem [#allocation13], %s3220
          %3222 = dma.done %s3218, 32
        $region88: #{tpu_custom_call.1} parent=79 // pred_fallthru
          _
      $region80: #{tpu_custom_call.1} parent=5 // pred_fallthru
        _
    $region6: #{tpu_custom_call.1} parent=1 // loop_footer
      %s27 = sadd.s32 1, %s23
    $region7: #{tpu_custom_call.1} parent=1 // loop_footer_branch
      %22 = sbr.rel target = $region3
    $region8: #{tpu_custom_call.1} parent=1 // loop_exit
      _
    %3223 = vsyncpa [#allocation5], 1
    %s3224 = scalar_lea.sflag [#allocation5], 1
    %3225 = vsyncpa %s3224, 1
    %3226 = vsyncpa [#allocation8], 1
    %3227 = vsyncpa [#allocation6], 1
    %s3228 = scalar_lea.sflag [#allocation6], 1
    %3229 = vsyncpa %s3228, 1
    %3230 = vsyncpa [#allocation14], 1
    %s3231 = scalar_lea.sflag [#allocation14], 1
    %3232 = vsyncpa %s3231, 1

</llo_original>
